<compile_context>
chip_gen: v6e
topology: v6e:2x2x1
jax: 0.10.0
libtpu: 0.0.40
codegen_flags: <defaults>
</compile_context>

<pallas_src>
import jax
import jax.numpy as jnp
import numpy as np
from jax import lax
from jax.experimental import pallas as pl
from jax.experimental.pallas import tpu as pltpu

# Shapes implied by the module.
C_IN, C_OUT, KSIZE = 3, 6, 5
H_IN = W_IN = 32
OH = OW = H_IN - KSIZE + 1          # 28
POS = OH * OW                       # 784 flattened conv positions per channel
HW = H_IN * W_IN                    # 1024 flattened input positions (h*32 + w)
N_TAPS = KSIZE * KSIZE              # 25 filter taps
CPAD = 8                            # conv channels padded 6 -> 8 (sublane tile)
PAD_LANES = 256                     # lane padding so every tap slice is in-bounds
N_OUT = 10


# ----------------------------- Pallas kernel -------------------------------

def net_fused_kernel(x_ref, w_ref, fw_ref, fb_ref, o_ref, y_ref):
    # x_ref : (1, 3, 1024)  f32   one image, x[ci, h*32 + w]
    # w_ref : (200, 3)      f32   w[(kh*5+kw)*8 + co, ci] = conv_w[co, ci, kh, kw]
    #                             (rows co=6,7 of every tap group are zero)
    # fw_ref: (10, 8, 1024) bf16  fw[o, co, h*32+w] = fc_w[o, co*784 + h*28 + w]
    #                             for co<6, h<28, w<28; zero elsewhere
    # fb_ref: (1, 10)       f32   fc bias with the conv bias folded in
    # o_ref : (1, 1, 10)    f32   logits for this image
    # y_ref : (200, 1280)   f32   VMEM scratch: per-tap conv contributions

    # conv1: a single MXU matmul computes, for every tap (kh, kw) and channel,
    #   y[(kh*5+kw)*8 + co, q] = sum_ci conv_w[co, ci, kh, kw] * x[ci, q]
    # over the whole (zero lane-padded) image at once.
    x = x_ref[0]                                                  # (3, 1024)
    xp = jnp.concatenate(
        [x, jnp.zeros((C_IN, PAD_LANES), x.dtype)], axis=1)       # (3, 1280)
    y_ref[...] = jnp.dot(w_ref[...], xp,
                         preferred_element_type=jnp.float32)      # (200, 1280)

    # Align the 25 tap contributions: the tap (kh, kw) value needed at output
    # position q = oh*32 + ow sits at lane q + kh*32 + kw.  Static lane slices
    # shift each group into place; the sum is the conv output (no bias) in the
    # "holey" h*32+w layout.  Lanes with oh>=28 or ow>=28 are junk and are
    # zeroed by the fc weight layout.
    conv = None
    for g in range(N_TAPS):                        # 25 taps, static unroll
        kh, kw = divmod(g, KSIZE)
        shift = kh * W_IN + kw
        tap = y_ref[g * CPAD:(g + 1) * CPAD, :]    # (8, 1280), aligned load
        contrib = tap[:, shift:shift + HW]         # (8, 1024)
        conv = contrib if conv is None else conv + contrib

    # fc1: elementwise multiply by the layout-matched bf16 weight and reduce
    # over (channel, position) on the VPU/XLU.  The 10 x 4704 contraction is
    # far too small to be worth more MXU issues; this avoids any in-kernel
    # relayout of the conv activations.
    prod = fw_ref[...] * conv[None, :, :]                         # (10, 8, 1024) f32
    logits = jnp.sum(jnp.sum(prod, axis=-1), axis=-1)             # (10,)
    o_ref[0] = logits[None, :] + fb_ref[...]


# --------------------------- parameter re-layout ----------------------------

def prepare_params(conv_w, conv_b, fc_w, fc_b):
    """One-time re-layout of the PyTorch parameters into kernel layout."""
    # Conv weight: one row per (tap, output channel); channels padded 6 -> 8
    # so each tap group is an aligned 8-sublane slice.
    w = jnp.transpose(conv_w, (2, 3, 0, 1))                  # (kh, kw, co, ci)
    w = w.reshape(N_TAPS, C_OUT, C_IN)
    w = jnp.pad(w, ((0, 0), (0, CPAD - C_OUT), (0, 0)))      # (25, 8, 3)
    wstack = w.reshape(N_TAPS * CPAD, C_IN).astype(jnp.float32)

    # fc weight: re-laid to the conv output's (co, h*32+w) layout, zero at the
    # padded channels and the invalid (oh>=28 / ow>=28) lanes; bf16 halves the
    # dominant DMA (accumulation stays f32 in the kernel).
    fw = fc_w.reshape(N_OUT, C_OUT, OH, OW)
    fw = jnp.pad(fw, ((0, 0), (0, CPAD - C_OUT),
                      (0, H_IN - OH), (0, W_IN - OW)))        # (10, 8, 32, 32)
    fwr = fw.reshape(N_OUT, CPAD, HW).astype(jnp.bfloat16)

    # Fold the conv bias into the fc bias (flatten + linear is affine):
    #   fb_eff[o] = fc_b[o] + sum_c conv_b[c] * sum_pos fc_w[o, c*784 + pos]
    fb_eff = fc_b + fc_w.reshape(N_OUT, C_OUT, POS).sum(-1) @ conv_b
    fb_eff = fb_eff.reshape(1, N_OUT).astype(jnp.float32)
    return wstack, fwr, fb_eff


# ------------------------------ JAX wrapper ---------------------------------

@jax.jit
def net_forward(x, wstack, fwr, fb_eff):
    N = x.shape[0]
    xr = x.reshape(N, C_IN, HW)          # contiguous merge of (H, W): free

    out = pl.pallas_call(
        net_fused_kernel,
        out_shape=jax.ShapeDtypeStruct((N, 1, N_OUT), jnp.float32),
        grid_spec=pltpu.PrefetchScalarGridSpec(
            num_scalar_prefetch=0,
            grid=(N,),                                   # one image per step
            in_specs=[
                pl.BlockSpec((1, C_IN, HW), lambda n: (n, 0, 0)),
                pl.BlockSpec((N_TAPS * CPAD, C_IN), lambda n: (0, 0)),
                pl.BlockSpec((N_OUT, CPAD, HW), lambda n: (0, 0, 0)),
                pl.BlockSpec((1, N_OUT), lambda n: (0, 0)),
            ],
            out_specs=pl.BlockSpec((1, 1, N_OUT), lambda n: (n, 0, 0)),
            scratch_shapes=[
                pltpu.VMEM((N_TAPS * CPAD, HW + PAD_LANES), jnp.float32)],
        ),
        compiler_params=pltpu.CompilerParams(
            dimension_semantics=("parallel",)),          # v7x megacore split
    )(xr, wstack, fwr, fb_eff)
    return out.reshape(N, N_OUT)


# ------------------------------- reference ----------------------------------

def net_reference(x, conv_w, conv_b, fc_w, fc_b):
    conv = jax.lax.conv_general_dilated(
        x, conv_w, window_strides=(1, 1), padding="VALID",
        dimension_numbers=("NCHW", "OIHW", "NCHW"),
        precision=lax.Precision.HIGHEST,
    ) + conv_b[None, :, None, None]
    flat = conv.reshape(x.shape[0], -1)                  # co*784 + oh*28 + ow
    return jnp.dot(flat, fc_w.T, precision=lax.Precision.HIGHEST) + fc_b


# --------------------------------- main --------------------------------------

if __name__ == "__main__":
    key = jax.random.PRNGKey(0)
    k1, k2, k3, k4, k5 = jax.random.split(key, 5)

    # Deterministic parameter init (PyTorch-style uniform bounds, same shapes).
    fan_conv = C_IN * KSIZE * KSIZE
    bc = 1.0 / np.sqrt(fan_conv)
    conv_w = jax.random.uniform(
        k1, (C_OUT, C_IN, KSIZE, KSIZE), jnp.float32, -bc, bc)
    conv_b = jax.random.uniform(k2, (C_OUT,), jnp.float32, -bc, bc)

    fan_fc = POS * C_OUT
    bf = 1.0 / np.sqrt(fan_fc)
    fc_w = jax.random.uniform(k3, (N_OUT, fan_fc), jnp.float32, -bf, bf)
    fc_b = jax.random.uniform(k4, (N_OUT,), jnp.float32, -bf, bf)

    # Input implied by the module: 32x32 so the conv yields 28x28x6.
    x = jax.random.normal(k5, (2, C_IN, H_IN, W_IN), jnp.float32)

    wstack, fwr, fb_eff = prepare_params(conv_w, conv_b, fc_w, fc_b)
    out = jax.block_until_ready(net_forward(x, wstack, fwr, fb_eff))

    ref = jax.block_until_ready(net_reference(x, conv_w, conv_b, fc_w, fc_b))
    assert out.shape == (2, N_OUT)
    assert np.allclose(np.asarray(out), np.asarray(ref), rtol=1e-2, atol=1e-2)

    print("KERNEL_OK")
</pallas_src>

<mosaic_0001>
module attributes {stable_mosaic.version = 11 : i64} {
  func.func @net_fused_kernel(%arg0: i32, %arg1: memref<1x3x1024xf32, #tpu.memory_space<vmem>>, %arg2: memref<200x3xf32, #tpu.memory_space<vmem>>, %arg3: memref<10x8x1024xbf16, #tpu.memory_space<vmem>>, %arg4: memref<1x10xf32, #tpu.memory_space<vmem>>, %arg5: memref<1x1x10xf32, #tpu.memory_space<vmem>>, %arg6: memref<200x1280xf32, #tpu.memory_space<vmem>>) attributes {dimension_semantics = [#tpu.dimension_semantics<parallel>], iteration_bounds = array<i64: 2>, scalar_prefetch = 0 : i64, scratch_operands = 1 : i64, tpu.core_type = #tpu.core_type<tc>, window_params = [{transform_indices = @transform_0, window_bounds = array<i64: 1, 3, 1024>}, {pipeline_mode = #tpu.pipeline_mode<synchronous>, transform_indices = @transform_1, window_bounds = array<i64: 200, 3>}, {pipeline_mode = #tpu.pipeline_mode<synchronous>, transform_indices = @transform_2, window_bounds = array<i64: 10, 8, 1024>}, {pipeline_mode = #tpu.pipeline_mode<synchronous>, transform_indices = @transform_3, window_bounds = array<i64: 1, 10>}, {transform_indices = @transform_4, window_bounds = array<i64: 1, 1, 10>}]} {
    %c0 = arith.constant 0 : index
    %c0_0 = arith.constant 0 : index
    %c0_1 = arith.constant 0 : index
    %0 = vector.load %arg1[%c0, %c0_0, %c0_1] : memref<1x3x1024xf32, #tpu.memory_space<vmem>>, vector<1x3x1024xf32>
    %1 = vector.shape_cast %0 : vector<1x3x1024xf32> to vector<3x1024xf32>
    %cst = arith.constant 0.000000e+00 : f32
    %2 = vector.broadcast %cst : f32 to vector<3x256xf32>
    %3 = tpu.concatenate %1, %2 in 1 : vector<3x1024xf32>, vector<3x256xf32> -> vector<3x1280xf32>
    %c0_2 = arith.constant 0 : index
    %c0_3 = arith.constant 0 : index
    %4 = vector.load %arg2[%c0_2, %c0_3] : memref<200x3xf32, #tpu.memory_space<vmem>>, vector<200x3xf32>
    %cst_4 = arith.constant dense<0.000000e+00> : vector<200x1280xf32>
    %5 = tpu.matmul %4, %3, %cst_4 {dimension_numbers = #tpu.dot_dimension_numbers<[1], [0], [0], [1], [0, 0, 1, 1], [], []>} : vector<200x3xf32>, vector<3x1280xf32>, vector<200x1280xf32> -> vector<200x1280xf32>
    %c0_5 = arith.constant 0 : index
    %c0_6 = arith.constant 0 : index
    %6 = vector.load %arg6[%c0_5, %c0_6] : memref<200x1280xf32, #tpu.memory_space<vmem>>, vector<200x1280xf32>
    tpu.vector_store %arg6[%c0_5, %c0_6], %5 {strides = array<i32>} : memref<200x1280xf32, #tpu.memory_space<vmem>>, vector<200x1280xf32>,
    %c0_7 = arith.constant 0 : index
    %c0_8 = arith.constant 0 : index
    %7 = vector.load %arg6[%c0_7, %c0_8] : memref<200x1280xf32, #tpu.memory_space<vmem>>, vector<8x1280xf32>
    %8 = vector.extract_strided_slice %7 {offsets = [0, 0], sizes = [8, 1024], strides = [1, 1]} : vector<8x1280xf32> to vector<8x1024xf32>
    %c8 = arith.constant 8 : index
    %c0_9 = arith.constant 0 : index
    %9 = vector.load %arg6[%c8, %c0_9] : memref<200x1280xf32, #tpu.memory_space<vmem>>, vector<8x1280xf32>
    %10 = vector.extract_strided_slice %9 {offsets = [0, 1], sizes = [8, 1024], strides = [1, 1]} : vector<8x1280xf32> to vector<8x1024xf32>
    %11 = arith.addf %8, %10 : vector<8x1024xf32>
    %c16 = arith.constant 16 : index
    %c0_10 = arith.constant 0 : index
    %12 = vector.load %arg6[%c16, %c0_10] : memref<200x1280xf32, #tpu.memory_space<vmem>>, vector<8x1280xf32>
    %13 = vector.extract_strided_slice %12 {offsets = [0, 2], sizes = [8, 1024], strides = [1, 1]} : vector<8x1280xf32> to vector<8x1024xf32>
    %14 = arith.addf %11, %13 : vector<8x1024xf32>
    %c24 = arith.constant 24 : index
    %c0_11 = arith.constant 0 : index
    %15 = vector.load %arg6[%c24, %c0_11] : memref<200x1280xf32, #tpu.memory_space<vmem>>, vector<8x1280xf32>
    %16 = vector.extract_strided_slice %15 {offsets = [0, 3], sizes = [8, 1024], strides = [1, 1]} : vector<8x1280xf32> to vector<8x1024xf32>
    %17 = arith.addf %14, %16 : vector<8x1024xf32>
    %c32 = arith.constant 32 : index
    %c0_12 = arith.constant 0 : index
    %18 = vector.load %arg6[%c32, %c0_12] : memref<200x1280xf32, #tpu.memory_space<vmem>>, vector<8x1280xf32>
    %19 = vector.extract_strided_slice %18 {offsets = [0, 4], sizes = [8, 1024], strides = [1, 1]} : vector<8x1280xf32> to vector<8x1024xf32>
    %20 = arith.addf %17, %19 : vector<8x1024xf32>
    %c40 = arith.constant 40 : index
    %c0_13 = arith.constant 0 : index
    %21 = vector.load %arg6[%c40, %c0_13] : memref<200x1280xf32, #tpu.memory_space<vmem>>, vector<8x1280xf32>
    %22 = vector.extract_strided_slice %21 {offsets = [0, 32], sizes = [8, 1024], strides = [1, 1]} : vector<8x1280xf32> to vector<8x1024xf32>
    %23 = arith.addf %20, %22 : vector<8x1024xf32>
    %c48 = arith.constant 48 : index
    %c0_14 = arith.constant 0 : index
    %24 = vector.load %arg6[%c48, %c0_14] : memref<200x1280xf32, #tpu.memory_space<vmem>>, vector<8x1280xf32>
    %25 = vector.extract_strided_slice %24 {offsets = [0, 33], sizes = [8, 1024], strides = [1, 1]} : vector<8x1280xf32> to vector<8x1024xf32>
    %26 = arith.addf %23, %25 : vector<8x1024xf32>
    %c56 = arith.constant 56 : index
    %c0_15 = arith.constant 0 : index
    %27 = vector.load %arg6[%c56, %c0_15] : memref<200x1280xf32, #tpu.memory_space<vmem>>, vector<8x1280xf32>
    %28 = vector.extract_strided_slice %27 {offsets = [0, 34], sizes = [8, 1024], strides = [1, 1]} : vector<8x1280xf32> to vector<8x1024xf32>
    %29 = arith.addf %26, %28 : vector<8x1024xf32>
    %c64 = arith.constant 64 : index
    %c0_16 = arith.constant 0 : index
    %30 = vector.load %arg6[%c64, %c0_16] : memref<200x1280xf32, #tpu.memory_space<vmem>>, vector<8x1280xf32>
    %31 = vector.extract_strided_slice %30 {offsets = [0, 35], sizes = [8, 1024], strides = [1, 1]} : vector<8x1280xf32> to vector<8x1024xf32>
    %32 = arith.addf %29, %31 : vector<8x1024xf32>
    %c72 = arith.constant 72 : index
    %c0_17 = arith.constant 0 : index
    %33 = vector.load %arg6[%c72, %c0_17] : memref<200x1280xf32, #tpu.memory_space<vmem>>, vector<8x1280xf32>
    %34 = vector.extract_strided_slice %33 {offsets = [0, 36], sizes = [8, 1024], strides = [1, 1]} : vector<8x1280xf32> to vector<8x1024xf32>
    %35 = arith.addf %32, %34 : vector<8x1024xf32>
    %c80 = arith.constant 80 : index
    %c0_18 = arith.constant 0 : index
    %36 = vector.load %arg6[%c80, %c0_18] : memref<200x1280xf32, #tpu.memory_space<vmem>>, vector<8x1280xf32>
    %37 = vector.extract_strided_slice %36 {offsets = [0, 64], sizes = [8, 1024], strides = [1, 1]} : vector<8x1280xf32> to vector<8x1024xf32>
    %38 = arith.addf %35, %37 : vector<8x1024xf32>
    %c88 = arith.constant 88 : index
    %c0_19 = arith.constant 0 : index
    %39 = vector.load %arg6[%c88, %c0_19] : memref<200x1280xf32, #tpu.memory_space<vmem>>, vector<8x1280xf32>
    %40 = vector.extract_strided_slice %39 {offsets = [0, 65], sizes = [8, 1024], strides = [1, 1]} : vector<8x1280xf32> to vector<8x1024xf32>
    %41 = arith.addf %38, %40 : vector<8x1024xf32>
    %c96 = arith.constant 96 : index
    %c0_20 = arith.constant 0 : index
    %42 = vector.load %arg6[%c96, %c0_20] : memref<200x1280xf32, #tpu.memory_space<vmem>>, vector<8x1280xf32>
    %43 = vector.extract_strided_slice %42 {offsets = [0, 66], sizes = [8, 1024], strides = [1, 1]} : vector<8x1280xf32> to vector<8x1024xf32>
    %44 = arith.addf %41, %43 : vector<8x1024xf32>
    %c104 = arith.constant 104 : index
    %c0_21 = arith.constant 0 : index
    %45 = vector.load %arg6[%c104, %c0_21] : memref<200x1280xf32, #tpu.memory_space<vmem>>, vector<8x1280xf32>
    %46 = vector.extract_strided_slice %45 {offsets = [0, 67], sizes = [8, 1024], strides = [1, 1]} : vector<8x1280xf32> to vector<8x1024xf32>
    %47 = arith.addf %44, %46 : vector<8x1024xf32>
    %c112 = arith.constant 112 : index
    %c0_22 = arith.constant 0 : index
    %48 = vector.load %arg6[%c112, %c0_22] : memref<200x1280xf32, #tpu.memory_space<vmem>>, vector<8x1280xf32>
    %49 = vector.extract_strided_slice %48 {offsets = [0, 68], sizes = [8, 1024], strides = [1, 1]} : vector<8x1280xf32> to vector<8x1024xf32>
    %50 = arith.addf %47, %49 : vector<8x1024xf32>
    %c120 = arith.constant 120 : index
    %c0_23 = arith.constant 0 : index
    %51 = vector.load %arg6[%c120, %c0_23] : memref<200x1280xf32, #tpu.memory_space<vmem>>, vector<8x1280xf32>
    %52 = vector.extract_strided_slice %51 {offsets = [0, 96], sizes = [8, 1024], strides = [1, 1]} : vector<8x1280xf32> to vector<8x1024xf32>
    %53 = arith.addf %50, %52 : vector<8x1024xf32>
    %c128 = arith.constant 128 : index
    %c0_24 = arith.constant 0 : index
    %54 = vector.load %arg6[%c128, %c0_24] : memref<200x1280xf32, #tpu.memory_space<vmem>>, vector<8x1280xf32>
    %55 = vector.extract_strided_slice %54 {offsets = [0, 97], sizes = [8, 1024], strides = [1, 1]} : vector<8x1280xf32> to vector<8x1024xf32>
    %56 = arith.addf %53, %55 : vector<8x1024xf32>
    %c136 = arith.constant 136 : index
    %c0_25 = arith.constant 0 : index
    %57 = vector.load %arg6[%c136, %c0_25] : memref<200x1280xf32, #tpu.memory_space<vmem>>, vector<8x1280xf32>
    %58 = vector.extract_strided_slice %57 {offsets = [0, 98], sizes = [8, 1024], strides = [1, 1]} : vector<8x1280xf32> to vector<8x1024xf32>
    %59 = arith.addf %56, %58 : vector<8x1024xf32>
    %c144 = arith.constant 144 : index
    %c0_26 = arith.constant 0 : index
    %60 = vector.load %arg6[%c144, %c0_26] : memref<200x1280xf32, #tpu.memory_space<vmem>>, vector<8x1280xf32>
    %61 = vector.extract_strided_slice %60 {offsets = [0, 99], sizes = [8, 1024], strides = [1, 1]} : vector<8x1280xf32> to vector<8x1024xf32>
    %62 = arith.addf %59, %61 : vector<8x1024xf32>
    %c152 = arith.constant 152 : index
    %c0_27 = arith.constant 0 : index
    %63 = vector.load %arg6[%c152, %c0_27] : memref<200x1280xf32, #tpu.memory_space<vmem>>, vector<8x1280xf32>
    %64 = vector.extract_strided_slice %63 {offsets = [0, 100], sizes = [8, 1024], strides = [1, 1]} : vector<8x1280xf32> to vector<8x1024xf32>
    %65 = arith.addf %62, %64 : vector<8x1024xf32>
    %c160 = arith.constant 160 : index
    %c0_28 = arith.constant 0 : index
    %66 = vector.load %arg6[%c160, %c0_28] : memref<200x1280xf32, #tpu.memory_space<vmem>>, vector<8x1280xf32>
    %67 = vector.extract_strided_slice %66 {offsets = [0, 128], sizes = [8, 1024], strides = [1, 1]} : vector<8x1280xf32> to vector<8x1024xf32>
    %68 = arith.addf %65, %67 : vector<8x1024xf32>
    %c168 = arith.constant 168 : index
    %c0_29 = arith.constant 0 : index
    %69 = vector.load %arg6[%c168, %c0_29] : memref<200x1280xf32, #tpu.memory_space<vmem>>, vector<8x1280xf32>
    %70 = vector.extract_strided_slice %69 {offsets = [0, 129], sizes = [8, 1024], strides = [1, 1]} : vector<8x1280xf32> to vector<8x1024xf32>
    %71 = arith.addf %68, %70 : vector<8x1024xf32>
    %c176 = arith.constant 176 : index
    %c0_30 = arith.constant 0 : index
    %72 = vector.load %arg6[%c176, %c0_30] : memref<200x1280xf32, #tpu.memory_space<vmem>>, vector<8x1280xf32>
    %73 = vector.extract_strided_slice %72 {offsets = [0, 130], sizes = [8, 1024], strides = [1, 1]} : vector<8x1280xf32> to vector<8x1024xf32>
    %74 = arith.addf %71, %73 : vector<8x1024xf32>
    %c184 = arith.constant 184 : index
    %c0_31 = arith.constant 0 : index
    %75 = vector.load %arg6[%c184, %c0_31] : memref<200x1280xf32, #tpu.memory_space<vmem>>, vector<8x1280xf32>
    %76 = vector.extract_strided_slice %75 {offsets = [0, 131], sizes = [8, 1024], strides = [1, 1]} : vector<8x1280xf32> to vector<8x1024xf32>
    %77 = arith.addf %74, %76 : vector<8x1024xf32>
    %c192 = arith.constant 192 : index
    %c0_32 = arith.constant 0 : index
    %78 = vector.load %arg6[%c192, %c0_32] : memref<200x1280xf32, #tpu.memory_space<vmem>>, vector<8x1280xf32>
    %79 = vector.extract_strided_slice %78 {offsets = [0, 132], sizes = [8, 1024], strides = [1, 1]} : vector<8x1280xf32> to vector<8x1024xf32>
    %80 = arith.addf %77, %79 : vector<8x1024xf32>
    %c0_33 = arith.constant 0 : index
    %c0_34 = arith.constant 0 : index
    %c0_35 = arith.constant 0 : index
    %81 = vector.load %arg3[%c0_33, %c0_34, %c0_35] : memref<10x8x1024xbf16, #tpu.memory_space<vmem>>, vector<10x8x1024xbf16>
    %82 = vector.shape_cast %80 : vector<8x1024xf32> to vector<1x8x1024xf32>
    %83 = arith.extf %81 : vector<10x8x1024xbf16> to vector<10x8x1024xf32>
    %84 = vector.broadcast %82 : vector<1x8x1024xf32> to vector<10x8x1024xf32>
    %85 = arith.mulf %83, %84 : vector<10x8x1024xf32>
    %cst_36 = arith.constant dense<0.000000e+00> : vector<10x8xf32>
    %86 = vector.multi_reduction <add>, %85, %cst_36 [2] : vector<10x8x1024xf32> to vector<10x8xf32>
    %cst_37 = arith.constant dense<0.000000e+00> : vector<10xf32>
    %87 = vector.multi_reduction <add>, %86, %cst_37 [1] : vector<10x8xf32> to vector<10xf32>
    %88 = vector.shape_cast %87 : vector<10xf32> to vector<1x10xf32>
    %c0_38 = arith.constant 0 : index
    %c0_39 = arith.constant 0 : index
    %89 = vector.load %arg4[%c0_38, %c0_39] : memref<1x10xf32, #tpu.memory_space<vmem>>, vector<1x10xf32>
    %90 = arith.addf %88, %89 : vector<1x10xf32>
    %c0_40 = arith.constant 0 : index
    %c0_41 = arith.constant 0 : index
    %c0_42 = arith.constant 0 : index
    %91 = vector.load %arg5[%c0_40, %c0_41, %c0_42] : memref<1x1x10xf32, #tpu.memory_space<vmem>>, vector<1x1x10xf32>
    %92 = vector.shape_cast %91 : vector<1x1x10xf32> to vector<1x10xf32>
    %93 = vector.shape_cast %90 : vector<1x10xf32> to vector<1x1x10xf32>
    tpu.vector_store %arg5[%c0_40, %c0_41, %c0_42], %93 {strides = array<i32>} : memref<1x1x10xf32, #tpu.memory_space<vmem>>, vector<1x1x10xf32>,
    return
  }
  func.func @transform_0(%arg0: i32) -> (i32, i32, i32) {
    %c0_i32 = arith.constant 0 : i32
    %c0_i32_0 = arith.constant 0 : i32
    %c0_i32_1 = arith.constant 0 : i32
    return %arg0, %c0_i32, %c0_i32_0 : i32, i32, i32
  }
  func.func @transform_1(%arg0: i32) -> (i32, i32) {
    %c0_i32 = arith.constant 0 : i32
    %c0_i32_0 = arith.constant 0 : i32
    %c0_i32_1 = arith.constant 0 : i32
    return %c0_i32, %c0_i32_0 : i32, i32
  }
  func.func @transform_2(%arg0: i32) -> (i32, i32, i32) {
    %c0_i32 = arith.constant 0 : i32
    %c0_i32_0 = arith.constant 0 : i32
    %c0_i32_1 = arith.constant 0 : i32
    %c0_i32_2 = arith.constant 0 : i32
    return %c0_i32, %c0_i32_0, %c0_i32_1 : i32, i32, i32
  }
  func.func @transform_3(%arg0: i32) -> (i32, i32) {
    %c0_i32 = arith.constant 0 : i32
    %c0_i32_0 = arith.constant 0 : i32
    %c0_i32_1 = arith.constant 0 : i32
    return %c0_i32, %c0_i32_0 : i32, i32
  }
  func.func @transform_4(%arg0: i32) -> (i32, i32, i32) {
    %c0_i32 = arith.constant 0 : i32
    %c0_i32_0 = arith.constant 0 : i32
    %c0_i32_1 = arith.constant 0 : i32
    return %arg0, %c0_i32, %c0_i32_0 : i32, i32, i32
  }
}

</mosaic_0001>

<llo_original>
// kernel: net_forward.1
$region0: #{net_forward.1}
  #allocation0 [shape = 'u32[]', space=smem, size = 0x4, offset = 0x4, fixed_abs, tag = 'smem constant byte address 0x4 - core index']
  #allocation1 [shape = 'u32[144,128]{1,0:T(1,128)}', space=vmem, size = 0x12000, scoped, tag = 'internal scratch']
  #allocation2 [shape = 'f32[200,1280]{1,0:T(8,128)}', space=vmem, size = 0xfa000, scoped, tag = 'scratch operand']
  %s0 = inlined_call_operand.vmem [shape: f32[2,3,1024], index: 0, kind: input, shape index: {}]
  %s1 = inlined_call_operand.vmem [shape: f32[200,3], index: 1, kind: input, shape index: {}]
  %s2 = inlined_call_operand.vmem [shape: bf16[10,8,1024], index: 2, kind: input, shape index: {}]
  %s3 = inlined_call_operand.vmem [shape: f32[1,10], index: 3, kind: input, shape index: {}]
  %s4 = inlined_call_operand.hbm [shape: f32[2,1,10], index: 4, kind: output, shape index: {}]
  %s5 = sld [smem:[#allocation0]]
  $region49: #{net_forward.1} parent=0
    _
  %s7 = ssub.s32 1, %s5
  %s8 = scalar_select 0, %s7, %s5
  $region1: #{net_forward.1} parent=0
    #allocation3 [shape = 'u8[1024]{0}', space=vmem, size = 0x400, scoped, tag = 'output window, operand 0']
    #allocation4 [shape = 's32[2]{0}', space=sflag, size = 0x8, scoped, tag = 'scoped memory for net_forward.1']
    %9 = vsyncpa [#allocation4], 0
    %s10 = scalar_lea.sflag [#allocation4], 1
    %11 = vsyncpa %s10, 0
    loop: start=0, step=1, limit=4
    $region2: #{net_forward.1} parent=1 // loop_pre_header
      _
    $region3: #{net_forward.1} parent=1 // loop_header
      %s13 = sphi 0, %s17
      %p14 = scmp.ge.s32.totalorder %s13, 4
      %s23 = sphi 0, %s25
      %s26 = sphi 0, %s23
      %s27 = sphi 0, %s26
      %s43 = sphi 0, %s27
      %s47 = sphi 0, %s47
      %s49 = sphi 0, %s47
      %s50 = sphi 0, %s49
      %s64 = sphi 0, %s50
      %s68 = sphi 0, %s68
      %s70 = sphi 0, %s68
      %s71 = sphi 0, %s70
      %s85 = sphi 0, %s71
      %s89 = sphi 0, %s89
      %s91 = sphi 0, %s89
      %s92 = sphi 0, %s91
      %s106 = sphi 0, %s92
      %s112 = sphi 0, %s114
      %s115 = sphi 0, %s112
      %s116 = sphi 0, %s115
      %s132 = sphi 0, %s116
    $region4: #{net_forward.1} parent=1 // loop_header_branch
      %16 = sbr.rel (%p14) target = $region8
    $region5: #{net_forward.1} parent=1 // loop_body
      %s18 = ssub.s32 %s13, 1
      %s19 = ssub.s32 %s13, 2
      %s20 = sadd.s32 %s13, 1
      %s21 = ssub.s32 %s13, %s20
      %p22 = scmp.eq.s32.totalorder %s21, 0
      %s24 = sadd.s32 %s23, 1
      %s25 = scalar_select %p22, %s23, %s24
      %p28 = pneg %p22
      %p29 = scmp.eq.s32.totalorder %s13, 1
      %p30 = por %p28, %p29
      %p31 = scmp.ne.s32.totalorder %s23, %s26
      %p32 = scmp.eq.s32.totalorder %s13, 0
      %p33 = por %p31, %p32
      %p34 = scmp.ne.s32.totalorder %s23, %s26
      %p35 = scmp.eq.s32.totalorder %s18, 1
      %p36 = por %p34, %p35
      %p37 = scmp.ne.s32.totalorder %s26, %s27
      %p38 = scmp.eq.s32.totalorder %s18, 0
      %p39 = por %p37, %p38
      %p40 = scmp.ne.s32.totalorder %s26, %s27
      %p41 = scmp.eq.s32.totalorder %s19, 1
      %p42 = por %p40, %p41
      %p44 = scmp.ne.s32.totalorder %s27, %s43
      %p45 = scmp.eq.s32.totalorder %s19, 0
      %p46 = por %p44, %p45
      %s48 = sadd.s32 %s47, 1
      %p51 = scmp.eq.s32.totalorder %s13, 1
      %p52 = scmp.ne.s32.totalorder %s47, %s49
      %p53 = scmp.eq.s32.totalorder %s13, 0
      %p54 = por %p52, %p53
      %p55 = scmp.ne.s32.totalorder %s47, %s49
      %p56 = scmp.eq.s32.totalorder %s18, 1
      %p57 = por %p55, %p56
      %p58 = scmp.ne.s32.totalorder %s49, %s50
      %p59 = scmp.eq.s32.totalorder %s18, 0
      %p60 = por %p58, %p59
      %p61 = scmp.ne.s32.totalorder %s49, %s50
      %p62 = scmp.eq.s32.totalorder %s19, 1
      %p63 = por %p61, %p62
      %p65 = scmp.ne.s32.totalorder %s50, %s64
      %p66 = scmp.eq.s32.totalorder %s19, 0
      %p67 = por %p65, %p66
      %s69 = sadd.s32 %s68, 1
      %p72 = scmp.eq.s32.totalorder %s13, 1
      %p73 = scmp.ne.s32.totalorder %s68, %s70
      %p74 = scmp.eq.s32.totalorder %s13, 0
      %p75 = por %p73, %p74
      %p76 = scmp.ne.s32.totalorder %s68, %s70
      %p77 = scmp.eq.s32.totalorder %s18, 1
      %p78 = por %p76, %p77
      %p79 = scmp.ne.s32.totalorder %s70, %s71
      %p80 = scmp.eq.s32.totalorder %s18, 0
      %p81 = por %p79, %p80
      %p82 = scmp.ne.s32.totalorder %s70, %s71
      %p83 = scmp.eq.s32.totalorder %s19, 1
      %p84 = por %p82, %p83
      %p86 = scmp.ne.s32.totalorder %s71, %s85
      %p87 = scmp.eq.s32.totalorder %s19, 0
      %p88 = por %p86, %p87
      %s90 = sadd.s32 %s89, 1
      %p93 = scmp.eq.s32.totalorder %s13, 1
      %p94 = scmp.ne.s32.totalorder %s89, %s91
      %p95 = scmp.eq.s32.totalorder %s13, 0
      %p96 = por %p94, %p95
      %p97 = scmp.ne.s32.totalorder %s89, %s91
      %p98 = scmp.eq.s32.totalorder %s18, 1
      %p99 = por %p97, %p98
      %p100 = scmp.ne.s32.totalorder %s91, %s92
      %p101 = scmp.eq.s32.totalorder %s18, 0
      %p102 = por %p100, %p101
      %p103 = scmp.ne.s32.totalorder %s91, %s92
      %p104 = scmp.eq.s32.totalorder %s19, 1
      %p105 = por %p103, %p104
      %p107 = scmp.ne.s32.totalorder %s92, %s106
      %p108 = scmp.eq.s32.totalorder %s19, 0
      %p109 = por %p107, %p108
      %s110 = ssub.s32 %s13, %s20
      %p111 = scmp.eq.s32.totalorder %s110, 0
      %s113 = sadd.s32 %s112, 1
      %s114 = scalar_select %p111, %s112, %s113
      %p117 = pneg %p111
      %p118 = scmp.eq.s32.totalorder %s13, 1
      %p119 = por %p117, %p118
      %p120 = scmp.ne.s32.totalorder %s112, %s115
      %p121 = scmp.eq.s32.totalorder %s13, 0
      %p122 = por %p120, %p121
      %p123 = scmp.ne.s32.totalorder %s112, %s115
      %p124 = scmp.eq.s32.totalorder %s18, 1
      %p125 = por %p123, %p124
      %p126 = scmp.ne.s32.totalorder %s115, %s116
      %p127 = scmp.eq.s32.totalorder %s18, 0
      %p128 = por %p126, %p127
      %p129 = scmp.ne.s32.totalorder %s115, %s116
      %p130 = scmp.eq.s32.totalorder %s19, 1
      %p131 = por %p129, %p130
      %p133 = scmp.ne.s32.totalorder %s116, %s132
      %p134 = scmp.eq.s32.totalorder %s19, 0
      %p135 = por %p133, %p134
      %p136 = scmp.le.s32.totalorder 1, %s13
      %p137 = scmp.lt.s32.totalorder %s13, 3
      %p138 = pnand %p136, %p137
      %p139 = pneg %p138
      // Predicated region
      $region9: #{net_forward.1} parent=5 // pred_check
        _
      $region10: #{net_forward.1} parent=5 // pred_check_branch
        %141 = sbr.rel (%p138) target = $region12
      $region11: #{net_forward.1} parent=5 // pred_region
        %s142 = ssub.s32 %s13, 1
        // Predicated region
        $region13: #{net_forward.1} parent=11 // pred_check
          %p143 = pneg %p60
        $region14: #{net_forward.1} parent=11 // pred_check_branch
          %145 = sbr.rel (%p143) target = $region16
        $region15: #{net_forward.1} parent=11 // pred_region
          _
        $region16: #{net_forward.1} parent=11 // pred_fallthru
          _
        // Predicated region
        $region17: #{net_forward.1} parent=11 // pred_check
          %p146 = pneg %p81
        $region18: #{net_forward.1} parent=11 // pred_check_branch
          %148 = sbr.rel (%p146) target = $region20
        $region19: #{net_forward.1} parent=11 // pred_region
          _
        $region20: #{net_forward.1} parent=11 // pred_fallthru
          _
        // Predicated region
        $region21: #{net_forward.1} parent=11 // pred_check
          %p149 = pneg %p102
        $region22: #{net_forward.1} parent=11 // pred_check_branch
          %151 = sbr.rel (%p149) target = $region24
        $region23: #{net_forward.1} parent=11 // pred_region
          _
        $region24: #{net_forward.1} parent=11 // pred_fallthru
          _
      $region12: #{net_forward.1} parent=5 // pred_fallthru
        _
      %p152 = scmp.lt.s32.totalorder %s13, 2
      // Predicated region
      $region25: #{net_forward.1} parent=5 // pred_check
        %p153 = pneg %p152
      $region26: #{net_forward.1} parent=5 // pred_check_branch
        %155 = sbr.rel (%p153) target = $region28
      $region27: #{net_forward.1} parent=5 // pred_region
        // Predicated region
        $region29: #{net_forward.1} parent=27 // pred_check
          %p156 = pneg %p33
        $region30: #{net_forward.1} parent=27 // pred_check_branch
          %158 = sbr.rel (%p156) target = $region32
        $region31: #{net_forward.1} parent=27 // pred_region
          %p159 = scmp.lt.s32.totalorder %s13, 1
          %s160 = scalar_select %p159, %s13, 1
          %s161 = smul.addr %s160, 8
          %s162 = smul.addr %s161, 4
          %s163 = scalar_lea.vmem %s0, %s162
        $region32: #{net_forward.1} parent=27 // pred_fallthru
          _
      $region28: #{net_forward.1} parent=5 // pred_fallthru
        _
      %p164 = scmp.le.s32.totalorder 1, %s13
      %p165 = scmp.lt.s32.totalorder %s13, 3
      %p166 = pnand %p164, %p165
      %p167 = pneg %p166
      // Predicated region
      $region33: #{net_forward.1} parent=5 // pred_check
        _
      $region34: #{net_forward.1} parent=5 // pred_check_branch
        %169 = sbr.rel (%p166) target = $region36
      $region35: #{net_forward.1} parent=5 // pred_region
        %s170 = ssub.s32 %s13, 1
        %p171 = scmp.lt.s32.totalorder %s18, 1
        %s172 = scalar_select %p171, %s18, 1
        %s173 = smul.addr %s172, 8
        %s174 = smul.addr %s173, 4
        %s175 = scalar_lea.vmem %s0, %s174
        %p176 = pneg %p39
        %p177 = pneg %p36
        %p178 = pneg %p60
        %p179 = pneg %p57
        %p180 = pneg %p81
        %p181 = pneg %p78
        %p182 = pneg %p102
        %p183 = pneg %p99
        %p184 = pneg %p128
        %p185 = pneg %p125
        %s186 = sand.u32 %s115, 1
        %s187 = scalar_lea.sflag [#allocation4], %s186
        %s188 = sand.u32 %s115, 1
        %s189 = scalar_lea.vmem [#allocation3], %s188
        %p190 = scmp.lt.s32.totalorder %s18, 1
        %s191 = scalar_select %p190, %s18, 1
        %s192 = smul.addr %s191, 8
        %s193 = smul.addr %s192, 4
        %s194 = scalar_lea.vmem %s0, %s193
        %v195 = vld [vmem:[%s194] sm:$0x77]
        %v196 = vld [vmem:[%s194 + $0x8] sm:$0x77]
        %v197 = vld [vmem:[%s194 + $0x10] sm:$0x77]
        %v198 = vld [vmem:[%s194 + $0x18] sm:$0x77]
        %v203 = vcombine.high %v195, %v195
        %v204 = vcombine.high %v196, %v196
        %v205 = vcombine.high %v197, %v197
        %v206 = vcombine.high %v198, %v198
        %v207 = vld [vmem:[%s1] sm:$0xff]
        %v208 = vld [vmem:[%s1 + $0x8] sm:$0xff]
        %v209 = vld [vmem:[%s1 + $0x10] sm:$0xff]
        %v210 = vld [vmem:[%s1 + $0x18] sm:$0xff]
        %v211 = vld [vmem:[%s1 + $0x20] sm:$0xff]
        %v212 = vld [vmem:[%s1 + $0x28] sm:$0xff]
        %v213 = vld [vmem:[%s1 + $0x30] sm:$0xff]
        %v214 = vld [vmem:[%s1 + $0x38] sm:$0xff]
        %v215 = vld [vmem:[%s1 + $0x40] sm:$0xff]
        %v216 = vld [vmem:[%s1 + $0x48] sm:$0xff]
        %v217 = vld [vmem:[%s1 + $0x50] sm:$0xff]
        %v218 = vld [vmem:[%s1 + $0x58] sm:$0xff]
        %v219 = vld [vmem:[%s1 + $0x60] sm:$0xff]
        %v220 = vld [vmem:[%s1 + $0x68] sm:$0xff]
        %v221 = vld [vmem:[%s1 + $0x70] sm:$0xff]
        %v222 = vld [vmem:[%s1 + $0x78] sm:$0xff]
        %v223 = vld [vmem:[%s1 + $0x80] sm:$0xff]
        %v224 = vld [vmem:[%s1 + $0x88] sm:$0xff]
        %v225 = vld [vmem:[%s1 + $0x90] sm:$0xff]
        %v226 = vld [vmem:[%s1 + $0x98] sm:$0xff]
        %v227 = vld [vmem:[%s1 + $0xa0] sm:$0xff]
        %v228 = vld [vmem:[%s1 + $0xa8] sm:$0xff]
        %v229 = vld [vmem:[%s1 + $0xb0] sm:$0xff]
        %v230 = vld [vmem:[%s1 + $0xb8] sm:$0xff]
        %v231 = vld [vmem:[%s1 + $0xc0] sm:$0xff]
        %vm232 = vcmask 23552
        %v234 = vsel %vm232, %v207, 0
        %v237 = vsel %vm232, %v208, 0
        %v240 = vsel %vm232, %v209, 0
        %v243 = vsel %vm232, %v210, 0
        %v246 = vsel %vm232, %v211, 0
        %v249 = vsel %vm232, %v212, 0
        %v252 = vsel %vm232, %v213, 0
        %v255 = vsel %vm232, %v214, 0
        %v258 = vsel %vm232, %v215, 0
        %v261 = vsel %vm232, %v216, 0
        %v264 = vsel %vm232, %v217, 0
        %v267 = vsel %vm232, %v218, 0
        %v270 = vsel %vm232, %v219, 0
        %v273 = vsel %vm232, %v220, 0
        %v276 = vsel %vm232, %v221, 0
        %v279 = vsel %vm232, %v222, 0
        %v282 = vsel %vm232, %v223, 0
        %v285 = vsel %vm232, %v224, 0
        %v288 = vsel %vm232, %v225, 0
        %v291 = vsel %vm232, %v226, 0
        %v294 = vsel %vm232, %v227, 0
        %v297 = vsel %vm232, %v228, 0
        %v300 = vsel %vm232, %v229, 0
        %v303 = vsel %vm232, %v230, 0
        %v306 = vsel %vm232, %v231, 0
        %vm308 = vcmask 1042432
        %v309 = vsel %vm308, %v195, 0
        %v311 = vsel %vm308, %v203, 0
        %v313 = vsel %vm308, %v196, 0
        %v315 = vsel %vm308, %v204, 0
        %v317 = vsel %vm308, %v197, 0
        %v319 = vsel %vm308, %v205, 0
        %v321 = vsel %vm308, %v198, 0
        %v323 = vsel %vm308, %v206, 0
        %v326 = vsel %vm308, 0.0, 0
        %328 = vmatprep.subr.mxu0 0.0
        %329 = vmatpush1.msra.mxu0 0.0
        %330 = vmatprep.subr.mxu0 0.0
        %331 = vmatpush1.msra.mxu0 0.0
        %332 = vmatprep.subr.mxu0 0.0
        %333 = vmatpush1.msra.mxu0 0.0
        %334 = vmatprep.subr.mxu0 0.0
        %335 = vmatpush1.msra.mxu0 0.0
        %336 = vmatprep.subr.mxu0 0.0
        %337 = vmatpush1.msra.mxu0 0.0
        %338 = vmatprep.subr.mxu0 0.0
        %339 = vmatpush1.msra.mxu0 0.0
        %340 = vmatprep.subr.mxu0 0.0
        %341 = vmatpush1.msra.mxu0 0.0
        %342 = vmatprep.subr.mxu0 0.0
        %343 = vmatpush1.msra.mxu0 0.0
        %344 = vmatprep.subr.mxu0 0.0
        %345 = vmatpush1.msra.mxu0 0.0
        %346 = vmatprep.subr.mxu0 0.0
        %347 = vmatpush1.msra.mxu0 0.0
        %348 = vmatprep.subr.mxu0 0.0
        %349 = vmatpush1.msra.mxu0 0.0
        %350 = vmatprep.subr.mxu0 0.0
        %351 = vmatpush1.msra.mxu0 0.0
        %352 = vmatprep.subr.mxu0 0.0
        %353 = vmatpush1.msra.mxu0 0.0
        %354 = vmatprep.subr.mxu0 0.0
        %355 = vmatpush1.msra.mxu0 0.0
        %356 = vmatprep.subr.mxu0 0.0
        %357 = vmatpush1.msra.mxu0 0.0
        %358 = vmatprep.subr.mxu0 %v311
        %359 = vmatpush1.msra.mxu0 %v309
        %360 = vmatprep.subr.mxu0 0.0
        %361 = vmatpush2.msra.mxu0 0.0
        %362 = vmatprep.subr.mxu0 0.0
        %363 = vmatpush2.msra.mxu0 0.0
        %364 = vmatprep.subr.mxu0 0.0
        %365 = vmatpush2.msra.mxu0 0.0
        %366 = vmatprep.subr.mxu0 0.0
        %367 = vmatpush2.msra.mxu0 0.0
        %368 = vmatprep.subr.mxu0 0.0
        %369 = vmatpush2.msra.mxu0 0.0
        %370 = vmatprep.subr.mxu0 0.0
        %371 = vmatpush2.msra.mxu0 0.0
        %372 = vmatprep.subr.mxu0 0.0
        %373 = vmatpush2.msra.mxu0 0.0
        %374 = vmatprep.subr.mxu0 0.0
        %375 = vmatpush2.msra.mxu0 0.0
        %376 = vmatprep.subr.mxu0 0.0
        %377 = vmatpush2.msra.mxu0 0.0
        %378 = vmatprep.subr.mxu0 0.0
        %379 = vmatpush2.msra.mxu0 0.0
        %380 = vmatprep.subr.mxu0 0.0
        %381 = vmatpush2.msra.mxu0 0.0
        %382 = vmatprep.subr.mxu0 0.0
        %383 = vmatpush2.msra.mxu0 0.0
        %384 = vmatprep.subr.mxu0 0.0
        %385 = vmatpush2.msra.mxu0 0.0
        %386 = vmatprep.subr.mxu0 0.0
        %387 = vmatpush2.msra.mxu0 0.0
        %388 = vmatprep.subr.mxu0 0.0
        %389 = vmatpush2.msra.mxu0 0.0
        %390 = vmatprep.subr.mxu0 0.0
        %391 = vmatpush2.msra.mxu0 0.0
        %392 = vmatprep.mubr.f32.mxu0 0.0
        %393 = vmatmul.mubr.f32.gmra.mxu0 %v234
        %v394 = vpop.f32.mrf.mxu0
        %v395 = vadd.f32 0.0, %v394
        %v396 = vpop.f32.mrf.mxu0
        %v397 = vadd.f32 0.0, %v396
        %398 = vmatprep.mubr.f32.mxu0 0.0
        %399 = vmatmul.mubr.f32.gmra.mxu0 %v237
        %v400 = vpop.f32.mrf.mxu0
        %v401 = vadd.f32 0.0, %v400
        %v402 = vpop.f32.mrf.mxu0
        %v403 = vadd.f32 0.0, %v402
        %404 = vmatprep.mubr.f32.mxu0 0.0
        %405 = vmatmul.mubr.f32.gmra.mxu0 %v240
        %v406 = vpop.f32.mrf.mxu0
        %v407 = vadd.f32 0.0, %v406
        %v408 = vpop.f32.mrf.mxu0
        %v409 = vadd.f32 0.0, %v408
        %410 = vmatprep.mubr.f32.mxu0 0.0
        %411 = vmatmul.mubr.f32.gmra.mxu0 %v243
        %v412 = vpop.f32.mrf.mxu0
        %v413 = vadd.f32 0.0, %v412
        %v414 = vpop.f32.mrf.mxu0
        %v415 = vadd.f32 0.0, %v414
        %416 = vmatprep.mubr.f32.mxu0 0.0
        %417 = vmatmul.mubr.f32.gmra.mxu0 %v246
        %v418 = vpop.f32.mrf.mxu0
        %v419 = vadd.f32 0.0, %v418
        %v420 = vpop.f32.mrf.mxu0
        %v421 = vadd.f32 0.0, %v420
        %422 = vmatprep.mubr.f32.mxu0 0.0
        %423 = vmatmul.mubr.f32.gmra.mxu0 %v249
        %v424 = vpop.f32.mrf.mxu0
        %v425 = vadd.f32 0.0, %v424
        %v426 = vpop.f32.mrf.mxu0
        %v427 = vadd.f32 0.0, %v426
        %428 = vmatprep.mubr.f32.mxu0 0.0
        %429 = vmatmul.mubr.f32.gmra.mxu0 %v252
        %v430 = vpop.f32.mrf.mxu0
        %v431 = vadd.f32 0.0, %v430
        %v432 = vpop.f32.mrf.mxu0
        %v433 = vadd.f32 0.0, %v432
        %434 = vmatprep.mubr.f32.mxu0 0.0
        %435 = vmatmul.mubr.f32.gmra.mxu0 %v255
        %v436 = vpop.f32.mrf.mxu0
        %v437 = vadd.f32 0.0, %v436
        %v438 = vpop.f32.mrf.mxu0
        %v439 = vadd.f32 0.0, %v438
        %440 = vmatprep.mubr.f32.mxu0 0.0
        %441 = vmatmul.mubr.f32.gmra.mxu0 %v258
        %v442 = vpop.f32.mrf.mxu0
        %v443 = vadd.f32 0.0, %v442
        %v444 = vpop.f32.mrf.mxu0
        %v445 = vadd.f32 0.0, %v444
        %446 = vmatprep.mubr.f32.mxu0 0.0
        %447 = vmatmul.mubr.f32.gmra.mxu0 %v261
        %v448 = vpop.f32.mrf.mxu0
        %v449 = vadd.f32 0.0, %v448
        %v450 = vpop.f32.mrf.mxu0
        %v451 = vadd.f32 0.0, %v450
        %452 = vmatprep.mubr.f32.mxu0 0.0
        %453 = vmatmul.mubr.f32.gmra.mxu0 %v264
        %v454 = vpop.f32.mrf.mxu0
        %v455 = vadd.f32 0.0, %v454
        %v456 = vpop.f32.mrf.mxu0
        %v457 = vadd.f32 0.0, %v456
        %458 = vmatprep.mubr.f32.mxu0 0.0
        %459 = vmatmul.mubr.f32.gmra.mxu0 %v267
        %v460 = vpop.f32.mrf.mxu0
        %v461 = vadd.f32 0.0, %v460
        %v462 = vpop.f32.mrf.mxu0
        %v463 = vadd.f32 0.0, %v462
        %464 = vmatprep.mubr.f32.mxu0 0.0
        %465 = vmatmul.mubr.f32.gmra.mxu0 %v270
        %v466 = vpop.f32.mrf.mxu0
        %v467 = vadd.f32 0.0, %v466
        %v468 = vpop.f32.mrf.mxu0
        %v469 = vadd.f32 0.0, %v468
        %470 = vmatprep.mubr.f32.mxu0 0.0
        %471 = vmatmul.mubr.f32.gmra.mxu0 %v273
        %v472 = vpop.f32.mrf.mxu0
        %v473 = vadd.f32 0.0, %v472
        %v474 = vpop.f32.mrf.mxu0
        %v475 = vadd.f32 0.0, %v474
        %476 = vmatprep.mubr.f32.mxu0 0.0
        %477 = vmatmul.mubr.f32.gmra.mxu0 %v276
        %v478 = vpop.f32.mrf.mxu0
        %v479 = vadd.f32 0.0, %v478
        %v480 = vpop.f32.mrf.mxu0
        %v481 = vadd.f32 0.0, %v480
        %482 = vmatprep.mubr.f32.mxu0 0.0
        %483 = vmatmul.mubr.f32.gmra.mxu0 %v279
        %v484 = vpop.f32.mrf.mxu0
        %v485 = vadd.f32 0.0, %v484
        %v486 = vpop.f32.mrf.mxu0
        %v487 = vadd.f32 0.0, %v486
        %488 = vmatprep.mubr.f32.mxu0 0.0
        %489 = vmatmul.mubr.f32.gmra.mxu0 %v282
        %v490 = vpop.f32.mrf.mxu0
        %v491 = vadd.f32 0.0, %v490
        %v492 = vpop.f32.mrf.mxu0
        %v493 = vadd.f32 0.0, %v492
        %494 = vmatprep.mubr.f32.mxu0 0.0
        %495 = vmatmul.mubr.f32.gmra.mxu0 %v285
        %v496 = vpop.f32.mrf.mxu0
        %v497 = vadd.f32 0.0, %v496
        %v498 = vpop.f32.mrf.mxu0
        %v499 = vadd.f32 0.0, %v498
        %500 = vmatprep.mubr.f32.mxu0 0.0
        %501 = vmatmul.mubr.f32.gmra.mxu0 %v288
        %v502 = vpop.f32.mrf.mxu0
        %v503 = vadd.f32 0.0, %v502
        %v504 = vpop.f32.mrf.mxu0
        %v505 = vadd.f32 0.0, %v504
        %506 = vmatprep.mubr.f32.mxu0 0.0
        %507 = vmatmul.mubr.f32.gmra.mxu0 %v291
        %v508 = vpop.f32.mrf.mxu0
        %v509 = vadd.f32 0.0, %v508
        %v510 = vpop.f32.mrf.mxu0
        %v511 = vadd.f32 0.0, %v510
        %512 = vmatprep.mubr.f32.mxu0 0.0
        %513 = vmatmul.mubr.f32.gmra.mxu0 %v294
        %v514 = vpop.f32.mrf.mxu0
        %v515 = vadd.f32 0.0, %v514
        %v516 = vpop.f32.mrf.mxu0
        %v517 = vadd.f32 0.0, %v516
        %518 = vmatprep.mubr.f32.mxu0 0.0
        %519 = vmatmul.mubr.f32.gmra.mxu0 %v297
        %v520 = vpop.f32.mrf.mxu0
        %v521 = vadd.f32 0.0, %v520
        %v522 = vpop.f32.mrf.mxu0
        %v523 = vadd.f32 0.0, %v522
        %524 = vmatprep.mubr.f32.mxu0 0.0
        %525 = vmatmul.mubr.f32.gmra.mxu0 %v300
        %v526 = vpop.f32.mrf.mxu0
        %v527 = vadd.f32 0.0, %v526
        %v528 = vpop.f32.mrf.mxu0
        %v529 = vadd.f32 0.0, %v528
        %530 = vmatprep.mubr.f32.mxu0 0.0
        %531 = vmatmul.mubr.f32.gmra.mxu0 %v303
        %v532 = vpop.f32.mrf.mxu0
        %v533 = vadd.f32 0.0, %v532
        %v534 = vpop.f32.mrf.mxu0
        %v535 = vadd.f32 0.0, %v534
        %536 = vmatprep.mubr.f32.mxu0 0.0
        %537 = vmatmul.mubr.f32.gmra.mxu0 %v306
        %v538 = vpop.f32.mrf.mxu0
        %v539 = vadd.f32 0.0, %v538
        %v540 = vpop.f32.mrf.mxu0
        %v541 = vadd.f32 0.0, %v540
        %542 = vdwg.mxu0
        %543 = vmatprep.subr.mxu0 0.0
        %544 = vmatpush1.msra.mxu0 0.0
        %545 = vmatprep.subr.mxu0 0.0
        %546 = vmatpush1.msra.mxu0 0.0
        %547 = vmatprep.subr.mxu0 0.0
        %548 = vmatpush1.msra.mxu0 0.0
        %549 = vmatprep.subr.mxu0 0.0
        %550 = vmatpush1.msra.mxu0 0.0
        %551 = vmatprep.subr.mxu0 0.0
        %552 = vmatpush1.msra.mxu0 0.0
        %553 = vmatprep.subr.mxu0 0.0
        %554 = vmatpush1.msra.mxu0 0.0
        %555 = vmatprep.subr.mxu0 0.0
        %556 = vmatpush1.msra.mxu0 0.0
        %557 = vmatprep.subr.mxu0 0.0
        %558 = vmatpush1.msra.mxu0 0.0
        %559 = vmatprep.subr.mxu0 0.0
        %560 = vmatpush1.msra.mxu0 0.0
        %561 = vmatprep.subr.mxu0 0.0
        %562 = vmatpush1.msra.mxu0 0.0
        %563 = vmatprep.subr.mxu0 0.0
        %564 = vmatpush1.msra.mxu0 0.0
        %565 = vmatprep.subr.mxu0 0.0
        %566 = vmatpush1.msra.mxu0 0.0
        %567 = vmatprep.subr.mxu0 0.0
        %568 = vmatpush1.msra.mxu0 0.0
        %569 = vmatprep.subr.mxu0 0.0
        %570 = vmatpush1.msra.mxu0 0.0
        %571 = vmatprep.subr.mxu0 0.0
        %572 = vmatpush1.msra.mxu0 0.0
        %573 = vmatprep.subr.mxu0 %v315
        %574 = vmatpush1.msra.mxu0 %v313
        %575 = vmatprep.subr.mxu0 0.0
        %576 = vmatpush2.msra.mxu0 0.0
        %577 = vmatprep.subr.mxu0 0.0
        %578 = vmatpush2.msra.mxu0 0.0
        %579 = vmatprep.subr.mxu0 0.0
        %580 = vmatpush2.msra.mxu0 0.0
        %581 = vmatprep.subr.mxu0 0.0
        %582 = vmatpush2.msra.mxu0 0.0
        %583 = vmatprep.subr.mxu0 0.0
        %584 = vmatpush2.msra.mxu0 0.0
        %585 = vmatprep.subr.mxu0 0.0
        %586 = vmatpush2.msra.mxu0 0.0
        %587 = vmatprep.subr.mxu0 0.0
        %588 = vmatpush2.msra.mxu0 0.0
        %589 = vmatprep.subr.mxu0 0.0
        %590 = vmatpush2.msra.mxu0 0.0
        %591 = vmatprep.subr.mxu0 0.0
        %592 = vmatpush2.msra.mxu0 0.0
        %593 = vmatprep.subr.mxu0 0.0
        %594 = vmatpush2.msra.mxu0 0.0
        %595 = vmatprep.subr.mxu0 0.0
        %596 = vmatpush2.msra.mxu0 0.0
        %597 = vmatprep.subr.mxu0 0.0
        %598 = vmatpush2.msra.mxu0 0.0
        %599 = vmatprep.subr.mxu0 0.0
        %600 = vmatpush2.msra.mxu0 0.0
        %601 = vmatprep.subr.mxu0 0.0
        %602 = vmatpush2.msra.mxu0 0.0
        %603 = vmatprep.subr.mxu0 0.0
        %604 = vmatpush2.msra.mxu0 0.0
        %605 = vmatprep.subr.mxu0 0.0
        %606 = vmatpush2.msra.mxu0 0.0
        %607 = vmatprep.mubr.f32.mxu0 0.0
        %608 = vmatmul.mubr.f32.gmra.mxu0 %v234
        %v609 = vpop.f32.mrf.mxu0
        %v610 = vadd.f32 0.0, %v609
        %v611 = vpop.f32.mrf.mxu0
        %v612 = vadd.f32 0.0, %v611
        %613 = vmatprep.mubr.f32.mxu0 0.0
        %614 = vmatmul.mubr.f32.gmra.mxu0 %v237
        %v615 = vpop.f32.mrf.mxu0
        %v616 = vadd.f32 0.0, %v615
        %v617 = vpop.f32.mrf.mxu0
        %v618 = vadd.f32 0.0, %v617
        %619 = vmatprep.mubr.f32.mxu0 0.0
        %620 = vmatmul.mubr.f32.gmra.mxu0 %v240
        %v621 = vpop.f32.mrf.mxu0
        %v622 = vadd.f32 0.0, %v621
        %v623 = vpop.f32.mrf.mxu0
        %v624 = vadd.f32 0.0, %v623
        %625 = vmatprep.mubr.f32.mxu0 0.0
        %626 = vmatmul.mubr.f32.gmra.mxu0 %v243
        %v627 = vpop.f32.mrf.mxu0
        %v628 = vadd.f32 0.0, %v627
        %v629 = vpop.f32.mrf.mxu0
        %v630 = vadd.f32 0.0, %v629
        %631 = vmatprep.mubr.f32.mxu0 0.0
        %632 = vmatmul.mubr.f32.gmra.mxu0 %v246
        %v633 = vpop.f32.mrf.mxu0
        %v634 = vadd.f32 0.0, %v633
        %v635 = vpop.f32.mrf.mxu0
        %v636 = vadd.f32 0.0, %v635
        %637 = vmatprep.mubr.f32.mxu0 0.0
        %638 = vmatmul.mubr.f32.gmra.mxu0 %v249
        %v639 = vpop.f32.mrf.mxu0
        %v640 = vadd.f32 0.0, %v639
        %v641 = vpop.f32.mrf.mxu0
        %v642 = vadd.f32 0.0, %v641
        %643 = vmatprep.mubr.f32.mxu0 0.0
        %644 = vmatmul.mubr.f32.gmra.mxu0 %v252
        %v645 = vpop.f32.mrf.mxu0
        %v646 = vadd.f32 0.0, %v645
        %v647 = vpop.f32.mrf.mxu0
        %v648 = vadd.f32 0.0, %v647
        %649 = vmatprep.mubr.f32.mxu0 0.0
        %650 = vmatmul.mubr.f32.gmra.mxu0 %v255
        %v651 = vpop.f32.mrf.mxu0
        %v652 = vadd.f32 0.0, %v651
        %v653 = vpop.f32.mrf.mxu0
        %v654 = vadd.f32 0.0, %v653
        %655 = vmatprep.mubr.f32.mxu0 0.0
        %656 = vmatmul.mubr.f32.gmra.mxu0 %v258
        %v657 = vpop.f32.mrf.mxu0
        %v658 = vadd.f32 0.0, %v657
        %v659 = vpop.f32.mrf.mxu0
        %v660 = vadd.f32 0.0, %v659
        %661 = vmatprep.mubr.f32.mxu0 0.0
        %662 = vmatmul.mubr.f32.gmra.mxu0 %v261
        %v663 = vpop.f32.mrf.mxu0
        %v664 = vadd.f32 0.0, %v663
        %v665 = vpop.f32.mrf.mxu0
        %v666 = vadd.f32 0.0, %v665
        %667 = vmatprep.mubr.f32.mxu0 0.0
        %668 = vmatmul.mubr.f32.gmra.mxu0 %v264
        %v669 = vpop.f32.mrf.mxu0
        %v670 = vadd.f32 0.0, %v669
        %v671 = vpop.f32.mrf.mxu0
        %v672 = vadd.f32 0.0, %v671
        %673 = vmatprep.mubr.f32.mxu0 0.0
        %674 = vmatmul.mubr.f32.gmra.mxu0 %v267
        %v675 = vpop.f32.mrf.mxu0
        %v676 = vadd.f32 0.0, %v675
        %v677 = vpop.f32.mrf.mxu0
        %v678 = vadd.f32 0.0, %v677
        %679 = vmatprep.mubr.f32.mxu0 0.0
        %680 = vmatmul.mubr.f32.gmra.mxu0 %v270
        %v681 = vpop.f32.mrf.mxu0
        %v682 = vadd.f32 0.0, %v681
        %v683 = vpop.f32.mrf.mxu0
        %v684 = vadd.f32 0.0, %v683
        %685 = vmatprep.mubr.f32.mxu0 0.0
        %686 = vmatmul.mubr.f32.gmra.mxu0 %v273
        %v687 = vpop.f32.mrf.mxu0
        %v688 = vadd.f32 0.0, %v687
        %v689 = vpop.f32.mrf.mxu0
        %v690 = vadd.f32 0.0, %v689
        %691 = vmatprep.mubr.f32.mxu0 0.0
        %692 = vmatmul.mubr.f32.gmra.mxu0 %v276
        %v693 = vpop.f32.mrf.mxu0
        %v694 = vadd.f32 0.0, %v693
        %v695 = vpop.f32.mrf.mxu0
        %v696 = vadd.f32 0.0, %v695
        %697 = vmatprep.mubr.f32.mxu0 0.0
        %698 = vmatmul.mubr.f32.gmra.mxu0 %v279
        %v699 = vpop.f32.mrf.mxu0
        %v700 = vadd.f32 0.0, %v699
        %v701 = vpop.f32.mrf.mxu0
        %v702 = vadd.f32 0.0, %v701
        %703 = vmatprep.mubr.f32.mxu0 0.0
        %704 = vmatmul.mubr.f32.gmra.mxu0 %v282
        %v705 = vpop.f32.mrf.mxu0
        %v706 = vadd.f32 0.0, %v705
        %v707 = vpop.f32.mrf.mxu0
        %v708 = vadd.f32 0.0, %v707
        %709 = vmatprep.mubr.f32.mxu0 0.0
        %710 = vmatmul.mubr.f32.gmra.mxu0 %v285
        %v711 = vpop.f32.mrf.mxu0
        %v712 = vadd.f32 0.0, %v711
        %v713 = vpop.f32.mrf.mxu0
        %v714 = vadd.f32 0.0, %v713
        %715 = vmatprep.mubr.f32.mxu0 0.0
        %716 = vmatmul.mubr.f32.gmra.mxu0 %v288
        %v717 = vpop.f32.mrf.mxu0
        %v718 = vadd.f32 0.0, %v717
        %v719 = vpop.f32.mrf.mxu0
        %v720 = vadd.f32 0.0, %v719
        %721 = vmatprep.mubr.f32.mxu0 0.0
        %722 = vmatmul.mubr.f32.gmra.mxu0 %v291
        %v723 = vpop.f32.mrf.mxu0
        %v724 = vadd.f32 0.0, %v723
        %v725 = vpop.f32.mrf.mxu0
        %v726 = vadd.f32 0.0, %v725
        %727 = vmatprep.mubr.f32.mxu0 0.0
        %728 = vmatmul.mubr.f32.gmra.mxu0 %v294
        %v729 = vpop.f32.mrf.mxu0
        %v730 = vadd.f32 0.0, %v729
        %v731 = vpop.f32.mrf.mxu0
        %v732 = vadd.f32 0.0, %v731
        %733 = vmatprep.mubr.f32.mxu0 0.0
        %734 = vmatmul.mubr.f32.gmra.mxu0 %v297
        %v735 = vpop.f32.mrf.mxu0
        %v736 = vadd.f32 0.0, %v735
        %v737 = vpop.f32.mrf.mxu0
        %v738 = vadd.f32 0.0, %v737
        %739 = vmatprep.mubr.f32.mxu0 0.0
        %740 = vmatmul.mubr.f32.gmra.mxu0 %v300
        %v741 = vpop.f32.mrf.mxu0
        %v742 = vadd.f32 0.0, %v741
        %v743 = vpop.f32.mrf.mxu0
        %v744 = vadd.f32 0.0, %v743
        %745 = vmatprep.mubr.f32.mxu0 0.0
        %746 = vmatmul.mubr.f32.gmra.mxu0 %v303
        %v747 = vpop.f32.mrf.mxu0
        %v748 = vadd.f32 0.0, %v747
        %v749 = vpop.f32.mrf.mxu0
        %v750 = vadd.f32 0.0, %v749
        %751 = vmatprep.mubr.f32.mxu0 0.0
        %752 = vmatmul.mubr.f32.gmra.mxu0 %v306
        %v753 = vpop.f32.mrf.mxu0
        %v754 = vadd.f32 0.0, %v753
        %v755 = vpop.f32.mrf.mxu0
        %v756 = vadd.f32 0.0, %v755
        %757 = vdwg.mxu0
        %758 = vmatprep.subr.mxu0 0.0
        %759 = vmatpush1.msra.mxu0 0.0
        %760 = vmatprep.subr.mxu0 0.0
        %761 = vmatpush1.msra.mxu0 0.0
        %762 = vmatprep.subr.mxu0 0.0
        %763 = vmatpush1.msra.mxu0 0.0
        %764 = vmatprep.subr.mxu0 0.0
        %765 = vmatpush1.msra.mxu0 0.0
        %766 = vmatprep.subr.mxu0 0.0
        %767 = vmatpush1.msra.mxu0 0.0
        %768 = vmatprep.subr.mxu0 0.0
        %769 = vmatpush1.msra.mxu0 0.0
        %770 = vmatprep.subr.mxu0 0.0
        %771 = vmatpush1.msra.mxu0 0.0
        %772 = vmatprep.subr.mxu0 0.0
        %773 = vmatpush1.msra.mxu0 0.0
        %774 = vmatprep.subr.mxu0 0.0
        %775 = vmatpush1.msra.mxu0 0.0
        %776 = vmatprep.subr.mxu0 0.0
        %777 = vmatpush1.msra.mxu0 0.0
        %778 = vmatprep.subr.mxu0 0.0
        %779 = vmatpush1.msra.mxu0 0.0
        %780 = vmatprep.subr.mxu0 0.0
        %781 = vmatpush1.msra.mxu0 0.0
        %782 = vmatprep.subr.mxu0 0.0
        %783 = vmatpush1.msra.mxu0 0.0
        %784 = vmatprep.subr.mxu0 0.0
        %785 = vmatpush1.msra.mxu0 0.0
        %786 = vmatprep.subr.mxu0 0.0
        %787 = vmatpush1.msra.mxu0 0.0
        %788 = vmatprep.subr.mxu0 %v319
        %789 = vmatpush1.msra.mxu0 %v317
        %790 = vmatprep.subr.mxu0 0.0
        %791 = vmatpush2.msra.mxu0 0.0
        %792 = vmatprep.subr.mxu0 0.0
        %793 = vmatpush2.msra.mxu0 0.0
        %794 = vmatprep.subr.mxu0 0.0
        %795 = vmatpush2.msra.mxu0 0.0
        %796 = vmatprep.subr.mxu0 0.0
        %797 = vmatpush2.msra.mxu0 0.0
        %798 = vmatprep.subr.mxu0 0.0
        %799 = vmatpush2.msra.mxu0 0.0
        %800 = vmatprep.subr.mxu0 0.0
        %801 = vmatpush2.msra.mxu0 0.0
        %802 = vmatprep.subr.mxu0 0.0
        %803 = vmatpush2.msra.mxu0 0.0
        %804 = vmatprep.subr.mxu0 0.0
        %805 = vmatpush2.msra.mxu0 0.0
        %806 = vmatprep.subr.mxu0 0.0
        %807 = vmatpush2.msra.mxu0 0.0
        %808 = vmatprep.subr.mxu0 0.0
        %809 = vmatpush2.msra.mxu0 0.0
        %810 = vmatprep.subr.mxu0 0.0
        %811 = vmatpush2.msra.mxu0 0.0
        %812 = vmatprep.subr.mxu0 0.0
        %813 = vmatpush2.msra.mxu0 0.0
        %814 = vmatprep.subr.mxu0 0.0
        %815 = vmatpush2.msra.mxu0 0.0
        %816 = vmatprep.subr.mxu0 0.0
        %817 = vmatpush2.msra.mxu0 0.0
        %818 = vmatprep.subr.mxu0 0.0
        %819 = vmatpush2.msra.mxu0 0.0
        %820 = vmatprep.subr.mxu0 0.0
        %821 = vmatpush2.msra.mxu0 0.0
        %822 = vmatprep.mubr.f32.mxu0 0.0
        %823 = vmatmul.mubr.f32.gmra.mxu0 %v234
        %v824 = vpop.f32.mrf.mxu0
        %v825 = vadd.f32 0.0, %v824
        %v826 = vpop.f32.mrf.mxu0
        %v827 = vadd.f32 0.0, %v826
        %828 = vmatprep.mubr.f32.mxu0 0.0
        %829 = vmatmul.mubr.f32.gmra.mxu0 %v237
        %v830 = vpop.f32.mrf.mxu0
        %v831 = vadd.f32 0.0, %v830
        %v832 = vpop.f32.mrf.mxu0
        %v833 = vadd.f32 0.0, %v832
        %834 = vmatprep.mubr.f32.mxu0 0.0
        %835 = vmatmul.mubr.f32.gmra.mxu0 %v240
        %v836 = vpop.f32.mrf.mxu0
        %v837 = vadd.f32 0.0, %v836
        %v838 = vpop.f32.mrf.mxu0
        %v839 = vadd.f32 0.0, %v838
        %840 = vmatprep.mubr.f32.mxu0 0.0
        %841 = vmatmul.mubr.f32.gmra.mxu0 %v243
        %v842 = vpop.f32.mrf.mxu0
        %v843 = vadd.f32 0.0, %v842
        %v844 = vpop.f32.mrf.mxu0
        %v845 = vadd.f32 0.0, %v844
        %846 = vmatprep.mubr.f32.mxu0 0.0
        %847 = vmatmul.mubr.f32.gmra.mxu0 %v246
        %v848 = vpop.f32.mrf.mxu0
        %v849 = vadd.f32 0.0, %v848
        %v850 = vpop.f32.mrf.mxu0
        %v851 = vadd.f32 0.0, %v850
        %852 = vmatprep.mubr.f32.mxu0 0.0
        %853 = vmatmul.mubr.f32.gmra.mxu0 %v249
        %v854 = vpop.f32.mrf.mxu0
        %v855 = vadd.f32 0.0, %v854
        %v856 = vpop.f32.mrf.mxu0
        %v857 = vadd.f32 0.0, %v856
        %858 = vmatprep.mubr.f32.mxu0 0.0
        %859 = vmatmul.mubr.f32.gmra.mxu0 %v252
        %v860 = vpop.f32.mrf.mxu0
        %v861 = vadd.f32 0.0, %v860
        %v862 = vpop.f32.mrf.mxu0
        %v863 = vadd.f32 0.0, %v862
        %864 = vmatprep.mubr.f32.mxu0 0.0
        %865 = vmatmul.mubr.f32.gmra.mxu0 %v255
        %v866 = vpop.f32.mrf.mxu0
        %v867 = vadd.f32 0.0, %v866
        %v868 = vpop.f32.mrf.mxu0
        %v869 = vadd.f32 0.0, %v868
        %870 = vmatprep.mubr.f32.mxu0 0.0
        %871 = vmatmul.mubr.f32.gmra.mxu0 %v258
        %v872 = vpop.f32.mrf.mxu0
        %v873 = vadd.f32 0.0, %v872
        %v874 = vpop.f32.mrf.mxu0
        %v875 = vadd.f32 0.0, %v874
        %876 = vmatprep.mubr.f32.mxu0 0.0
        %877 = vmatmul.mubr.f32.gmra.mxu0 %v261
        %v878 = vpop.f32.mrf.mxu0
        %v879 = vadd.f32 0.0, %v878
        %v880 = vpop.f32.mrf.mxu0
        %v881 = vadd.f32 0.0, %v880
        %882 = vmatprep.mubr.f32.mxu0 0.0
        %883 = vmatmul.mubr.f32.gmra.mxu0 %v264
        %v884 = vpop.f32.mrf.mxu0
        %v885 = vadd.f32 0.0, %v884
        %v886 = vpop.f32.mrf.mxu0
        %v887 = vadd.f32 0.0, %v886
        %888 = vmatprep.mubr.f32.mxu0 0.0
        %889 = vmatmul.mubr.f32.gmra.mxu0 %v267
        %v890 = vpop.f32.mrf.mxu0
        %v891 = vadd.f32 0.0, %v890
        %v892 = vpop.f32.mrf.mxu0
        %v893 = vadd.f32 0.0, %v892
        %894 = vmatprep.mubr.f32.mxu0 0.0
        %895 = vmatmul.mubr.f32.gmra.mxu0 %v270
        %v896 = vpop.f32.mrf.mxu0
        %v897 = vadd.f32 0.0, %v896
        %v898 = vpop.f32.mrf.mxu0
        %v899 = vadd.f32 0.0, %v898
        %900 = vmatprep.mubr.f32.mxu0 0.0
        %901 = vmatmul.mubr.f32.gmra.mxu0 %v273
        %v902 = vpop.f32.mrf.mxu0
        %v903 = vadd.f32 0.0, %v902
        %v904 = vpop.f32.mrf.mxu0
        %v905 = vadd.f32 0.0, %v904
        %906 = vmatprep.mubr.f32.mxu0 0.0
        %907 = vmatmul.mubr.f32.gmra.mxu0 %v276
        %v908 = vpop.f32.mrf.mxu0
        %v909 = vadd.f32 0.0, %v908
        %v910 = vpop.f32.mrf.mxu0
        %v911 = vadd.f32 0.0, %v910
        %912 = vmatprep.mubr.f32.mxu0 0.0
        %913 = vmatmul.mubr.f32.gmra.mxu0 %v279
        %v914 = vpop.f32.mrf.mxu0
        %v915 = vadd.f32 0.0, %v914
        %v916 = vpop.f32.mrf.mxu0
        %v917 = vadd.f32 0.0, %v916
        %918 = vmatprep.mubr.f32.mxu0 0.0
        %919 = vmatmul.mubr.f32.gmra.mxu0 %v282
        %v920 = vpop.f32.mrf.mxu0
        %v921 = vadd.f32 0.0, %v920
        %v922 = vpop.f32.mrf.mxu0
        %v923 = vadd.f32 0.0, %v922
        %924 = vmatprep.mubr.f32.mxu0 0.0
        %925 = vmatmul.mubr.f32.gmra.mxu0 %v285
        %v926 = vpop.f32.mrf.mxu0
        %v927 = vadd.f32 0.0, %v926
        %v928 = vpop.f32.mrf.mxu0
        %v929 = vadd.f32 0.0, %v928
        %930 = vmatprep.mubr.f32.mxu0 0.0
        %931 = vmatmul.mubr.f32.gmra.mxu0 %v288
        %v932 = vpop.f32.mrf.mxu0
        %v933 = vadd.f32 0.0, %v932
        %v934 = vpop.f32.mrf.mxu0
        %v935 = vadd.f32 0.0, %v934
        %936 = vmatprep.mubr.f32.mxu0 0.0
        %937 = vmatmul.mubr.f32.gmra.mxu0 %v291
        %v938 = vpop.f32.mrf.mxu0
        %v939 = vadd.f32 0.0, %v938
        %v940 = vpop.f32.mrf.mxu0
        %v941 = vadd.f32 0.0, %v940
        %942 = vmatprep.mubr.f32.mxu0 0.0
        %943 = vmatmul.mubr.f32.gmra.mxu0 %v294
        %v944 = vpop.f32.mrf.mxu0
        %v945 = vadd.f32 0.0, %v944
        %v946 = vpop.f32.mrf.mxu0
        %v947 = vadd.f32 0.0, %v946
        %948 = vmatprep.mubr.f32.mxu0 0.0
        %949 = vmatmul.mubr.f32.gmra.mxu0 %v297
        %v950 = vpop.f32.mrf.mxu0
        %v951 = vadd.f32 0.0, %v950
        %v952 = vpop.f32.mrf.mxu0
        %v953 = vadd.f32 0.0, %v952
        %954 = vmatprep.mubr.f32.mxu0 0.0
        %955 = vmatmul.mubr.f32.gmra.mxu0 %v300
        %v956 = vpop.f32.mrf.mxu0
        %v957 = vadd.f32 0.0, %v956
        %v958 = vpop.f32.mrf.mxu0
        %v959 = vadd.f32 0.0, %v958
        %960 = vmatprep.mubr.f32.mxu0 0.0
        %961 = vmatmul.mubr.f32.gmra.mxu0 %v303
        %v962 = vpop.f32.mrf.mxu0
        %v963 = vadd.f32 0.0, %v962
        %v964 = vpop.f32.mrf.mxu0
        %v965 = vadd.f32 0.0, %v964
        %966 = vmatprep.mubr.f32.mxu0 0.0
        %967 = vmatmul.mubr.f32.gmra.mxu0 %v306
        %v968 = vpop.f32.mrf.mxu0
        %v969 = vadd.f32 0.0, %v968
        %v970 = vpop.f32.mrf.mxu0
        %v971 = vadd.f32 0.0, %v970
        %972 = vdwg.mxu0
        %973 = vmatprep.subr.mxu0 0.0
        %974 = vmatpush1.msra.mxu0 0.0
        %975 = vmatprep.subr.mxu0 0.0
        %976 = vmatpush1.msra.mxu0 0.0
        %977 = vmatprep.subr.mxu0 0.0
        %978 = vmatpush1.msra.mxu0 0.0
        %979 = vmatprep.subr.mxu0 0.0
        %980 = vmatpush1.msra.mxu0 0.0
        %981 = vmatprep.subr.mxu0 0.0
        %982 = vmatpush1.msra.mxu0 0.0
        %983 = vmatprep.subr.mxu0 0.0
        %984 = vmatpush1.msra.mxu0 0.0
        %985 = vmatprep.subr.mxu0 0.0
        %986 = vmatpush1.msra.mxu0 0.0
        %987 = vmatprep.subr.mxu0 0.0
        %988 = vmatpush1.msra.mxu0 0.0
        %989 = vmatprep.subr.mxu0 0.0
        %990 = vmatpush1.msra.mxu0 0.0
        %991 = vmatprep.subr.mxu0 0.0
        %992 = vmatpush1.msra.mxu0 0.0
        %993 = vmatprep.subr.mxu0 0.0
        %994 = vmatpush1.msra.mxu0 0.0
        %995 = vmatprep.subr.mxu0 0.0
        %996 = vmatpush1.msra.mxu0 0.0
        %997 = vmatprep.subr.mxu0 0.0
        %998 = vmatpush1.msra.mxu0 0.0
        %999 = vmatprep.subr.mxu0 0.0
        %1000 = vmatpush1.msra.mxu0 0.0
        %1001 = vmatprep.subr.mxu0 0.0
        %1002 = vmatpush1.msra.mxu0 0.0
        %1003 = vmatprep.subr.mxu0 %v323
        %1004 = vmatpush1.msra.mxu0 %v321
        %1005 = vmatprep.subr.mxu0 0.0
        %1006 = vmatpush2.msra.mxu0 0.0
        %1007 = vmatprep.subr.mxu0 0.0
        %1008 = vmatpush2.msra.mxu0 0.0
        %1009 = vmatprep.subr.mxu0 0.0
        %1010 = vmatpush2.msra.mxu0 0.0
        %1011 = vmatprep.subr.mxu0 0.0
        %1012 = vmatpush2.msra.mxu0 0.0
        %1013 = vmatprep.subr.mxu0 0.0
        %1014 = vmatpush2.msra.mxu0 0.0
        %1015 = vmatprep.subr.mxu0 0.0
        %1016 = vmatpush2.msra.mxu0 0.0
        %1017 = vmatprep.subr.mxu0 0.0
        %1018 = vmatpush2.msra.mxu0 0.0
        %1019 = vmatprep.subr.mxu0 0.0
        %1020 = vmatpush2.msra.mxu0 0.0
        %1021 = vmatprep.subr.mxu0 0.0
        %1022 = vmatpush2.msra.mxu0 0.0
        %1023 = vmatprep.subr.mxu0 0.0
        %1024 = vmatpush2.msra.mxu0 0.0
        %1025 = vmatprep.subr.mxu0 0.0
        %1026 = vmatpush2.msra.mxu0 0.0
        %1027 = vmatprep.subr.mxu0 0.0
        %1028 = vmatpush2.msra.mxu0 0.0
        %1029 = vmatprep.subr.mxu0 0.0
        %1030 = vmatpush2.msra.mxu0 0.0
        %1031 = vmatprep.subr.mxu0 0.0
        %1032 = vmatpush2.msra.mxu0 0.0
        %1033 = vmatprep.subr.mxu0 0.0
        %1034 = vmatpush2.msra.mxu0 0.0
        %1035 = vmatprep.subr.mxu0 0.0
        %1036 = vmatpush2.msra.mxu0 0.0
        %1037 = vmatprep.mubr.f32.mxu0 0.0
        %1038 = vmatmul.mubr.f32.gmra.mxu0 %v234
        %v1039 = vpop.f32.mrf.mxu0
        %v1040 = vadd.f32 0.0, %v1039
        %v1041 = vpop.f32.mrf.mxu0
        %v1042 = vadd.f32 0.0, %v1041
        %1043 = vmatprep.mubr.f32.mxu0 0.0
        %1044 = vmatmul.mubr.f32.gmra.mxu0 %v237
        %v1045 = vpop.f32.mrf.mxu0
        %v1046 = vadd.f32 0.0, %v1045
        %v1047 = vpop.f32.mrf.mxu0
        %v1048 = vadd.f32 0.0, %v1047
        %1049 = vmatprep.mubr.f32.mxu0 0.0
        %1050 = vmatmul.mubr.f32.gmra.mxu0 %v240
        %v1051 = vpop.f32.mrf.mxu0
        %v1052 = vadd.f32 0.0, %v1051
        %v1053 = vpop.f32.mrf.mxu0
        %v1054 = vadd.f32 0.0, %v1053
        %1055 = vmatprep.mubr.f32.mxu0 0.0
        %1056 = vmatmul.mubr.f32.gmra.mxu0 %v243
        %v1057 = vpop.f32.mrf.mxu0
        %v1058 = vadd.f32 0.0, %v1057
        %v1059 = vpop.f32.mrf.mxu0
        %v1060 = vadd.f32 0.0, %v1059
        %1061 = vmatprep.mubr.f32.mxu0 0.0
        %1062 = vmatmul.mubr.f32.gmra.mxu0 %v246
        %v1063 = vpop.f32.mrf.mxu0
        %v1064 = vadd.f32 0.0, %v1063
        %v1065 = vpop.f32.mrf.mxu0
        %v1066 = vadd.f32 0.0, %v1065
        %1067 = vmatprep.mubr.f32.mxu0 0.0
        %1068 = vmatmul.mubr.f32.gmra.mxu0 %v249
        %v1069 = vpop.f32.mrf.mxu0
        %v1070 = vadd.f32 0.0, %v1069
        %v1071 = vpop.f32.mrf.mxu0
        %v1072 = vadd.f32 0.0, %v1071
        %1073 = vmatprep.mubr.f32.mxu0 0.0
        %1074 = vmatmul.mubr.f32.gmra.mxu0 %v252
        %v1075 = vpop.f32.mrf.mxu0
        %v1076 = vadd.f32 0.0, %v1075
        %v1077 = vpop.f32.mrf.mxu0
        %v1078 = vadd.f32 0.0, %v1077
        %1079 = vmatprep.mubr.f32.mxu0 0.0
        %1080 = vmatmul.mubr.f32.gmra.mxu0 %v255
        %v1081 = vpop.f32.mrf.mxu0
        %v1082 = vadd.f32 0.0, %v1081
        %v1083 = vpop.f32.mrf.mxu0
        %v1084 = vadd.f32 0.0, %v1083
        %1085 = vmatprep.mubr.f32.mxu0 0.0
        %1086 = vmatmul.mubr.f32.gmra.mxu0 %v258
        %v1087 = vpop.f32.mrf.mxu0
        %v1088 = vadd.f32 0.0, %v1087
        %v1089 = vpop.f32.mrf.mxu0
        %v1090 = vadd.f32 0.0, %v1089
        %1091 = vmatprep.mubr.f32.mxu0 0.0
        %1092 = vmatmul.mubr.f32.gmra.mxu0 %v261
        %v1093 = vpop.f32.mrf.mxu0
        %v1094 = vadd.f32 0.0, %v1093
        %v1095 = vpop.f32.mrf.mxu0
        %v1096 = vadd.f32 0.0, %v1095
        %1097 = vmatprep.mubr.f32.mxu0 0.0
        %1098 = vmatmul.mubr.f32.gmra.mxu0 %v264
        %v1099 = vpop.f32.mrf.mxu0
        %v1100 = vadd.f32 0.0, %v1099
        %v1101 = vpop.f32.mrf.mxu0
        %v1102 = vadd.f32 0.0, %v1101
        %1103 = vmatprep.mubr.f32.mxu0 0.0
        %1104 = vmatmul.mubr.f32.gmra.mxu0 %v267
        %v1105 = vpop.f32.mrf.mxu0
        %v1106 = vadd.f32 0.0, %v1105
        %v1107 = vpop.f32.mrf.mxu0
        %v1108 = vadd.f32 0.0, %v1107
        %1109 = vmatprep.mubr.f32.mxu0 0.0
        %1110 = vmatmul.mubr.f32.gmra.mxu0 %v270
        %v1111 = vpop.f32.mrf.mxu0
        %v1112 = vadd.f32 0.0, %v1111
        %v1113 = vpop.f32.mrf.mxu0
        %v1114 = vadd.f32 0.0, %v1113
        %1115 = vmatprep.mubr.f32.mxu0 0.0
        %1116 = vmatmul.mubr.f32.gmra.mxu0 %v273
        %v1117 = vpop.f32.mrf.mxu0
        %v1118 = vadd.f32 0.0, %v1117
        %v1119 = vpop.f32.mrf.mxu0
        %v1120 = vadd.f32 0.0, %v1119
        %1121 = vmatprep.mubr.f32.mxu0 0.0
        %1122 = vmatmul.mubr.f32.gmra.mxu0 %v276
        %v1123 = vpop.f32.mrf.mxu0
        %v1124 = vadd.f32 0.0, %v1123
        %v1125 = vpop.f32.mrf.mxu0
        %v1126 = vadd.f32 0.0, %v1125
        %1127 = vmatprep.mubr.f32.mxu0 0.0
        %1128 = vmatmul.mubr.f32.gmra.mxu0 %v279
        %v1129 = vpop.f32.mrf.mxu0
        %v1130 = vadd.f32 0.0, %v1129
        %v1131 = vpop.f32.mrf.mxu0
        %v1132 = vadd.f32 0.0, %v1131
        %1133 = vmatprep.mubr.f32.mxu0 0.0
        %1134 = vmatmul.mubr.f32.gmra.mxu0 %v282
        %v1135 = vpop.f32.mrf.mxu0
        %v1136 = vadd.f32 0.0, %v1135
        %v1137 = vpop.f32.mrf.mxu0
        %v1138 = vadd.f32 0.0, %v1137
        %1139 = vmatprep.mubr.f32.mxu0 0.0
        %1140 = vmatmul.mubr.f32.gmra.mxu0 %v285
        %v1141 = vpop.f32.mrf.mxu0
        %v1142 = vadd.f32 0.0, %v1141
        %v1143 = vpop.f32.mrf.mxu0
        %v1144 = vadd.f32 0.0, %v1143
        %1145 = vmatprep.mubr.f32.mxu0 0.0
        %1146 = vmatmul.mubr.f32.gmra.mxu0 %v288
        %v1147 = vpop.f32.mrf.mxu0
        %v1148 = vadd.f32 0.0, %v1147
        %v1149 = vpop.f32.mrf.mxu0
        %v1150 = vadd.f32 0.0, %v1149
        %1151 = vmatprep.mubr.f32.mxu0 0.0
        %1152 = vmatmul.mubr.f32.gmra.mxu0 %v291
        %v1153 = vpop.f32.mrf.mxu0
        %v1154 = vadd.f32 0.0, %v1153
        %v1155 = vpop.f32.mrf.mxu0
        %v1156 = vadd.f32 0.0, %v1155
        %1157 = vmatprep.mubr.f32.mxu0 0.0
        %1158 = vmatmul.mubr.f32.gmra.mxu0 %v294
        %v1159 = vpop.f32.mrf.mxu0
        %v1160 = vadd.f32 0.0, %v1159
        %v1161 = vpop.f32.mrf.mxu0
        %v1162 = vadd.f32 0.0, %v1161
        %1163 = vmatprep.mubr.f32.mxu0 0.0
        %1164 = vmatmul.mubr.f32.gmra.mxu0 %v297
        %v1165 = vpop.f32.mrf.mxu0
        %v1166 = vadd.f32 0.0, %v1165
        %v1167 = vpop.f32.mrf.mxu0
        %v1168 = vadd.f32 0.0, %v1167
        %1169 = vmatprep.mubr.f32.mxu0 0.0
        %1170 = vmatmul.mubr.f32.gmra.mxu0 %v300
        %v1171 = vpop.f32.mrf.mxu0
        %v1172 = vadd.f32 0.0, %v1171
        %v1173 = vpop.f32.mrf.mxu0
        %v1174 = vadd.f32 0.0, %v1173
        %1175 = vmatprep.mubr.f32.mxu0 0.0
        %1176 = vmatmul.mubr.f32.gmra.mxu0 %v303
        %v1177 = vpop.f32.mrf.mxu0
        %v1178 = vadd.f32 0.0, %v1177
        %v1179 = vpop.f32.mrf.mxu0
        %v1180 = vadd.f32 0.0, %v1179
        %1181 = vmatprep.mubr.f32.mxu0 0.0
        %1182 = vmatmul.mubr.f32.gmra.mxu0 %v306
        %v1183 = vpop.f32.mrf.mxu0
        %v1184 = vadd.f32 0.0, %v1183
        %v1185 = vpop.f32.mrf.mxu0
        %v1186 = vadd.f32 0.0, %v1185
        %1187 = vdwg.mxu0
        %1188 = vmatprep.subr.mxu0 0.0
        %1189 = vmatpush1.msra.mxu0 0.0
        %1190 = vmatprep.subr.mxu0 0.0
        %1191 = vmatpush1.msra.mxu0 0.0
        %1192 = vmatprep.subr.mxu0 0.0
        %1193 = vmatpush1.msra.mxu0 0.0
        %1194 = vmatprep.subr.mxu0 0.0
        %1195 = vmatpush1.msra.mxu0 0.0
        %1196 = vmatprep.subr.mxu0 0.0
        %1197 = vmatpush1.msra.mxu0 0.0
        %1198 = vmatprep.subr.mxu0 0.0
        %1199 = vmatpush1.msra.mxu0 0.0
        %1200 = vmatprep.subr.mxu0 0.0
        %1201 = vmatpush1.msra.mxu0 0.0
        %1202 = vmatprep.subr.mxu0 0.0
        %1203 = vmatpush1.msra.mxu0 0.0
        %1204 = vmatprep.subr.mxu0 0.0
        %1205 = vmatpush1.msra.mxu0 0.0
        %1206 = vmatprep.subr.mxu0 0.0
        %1207 = vmatpush1.msra.mxu0 0.0
        %1208 = vmatprep.subr.mxu0 0.0
        %1209 = vmatpush1.msra.mxu0 0.0
        %1210 = vmatprep.subr.mxu0 0.0
        %1211 = vmatpush1.msra.mxu0 0.0
        %1212 = vmatprep.subr.mxu0 0.0
        %1213 = vmatpush1.msra.mxu0 0.0
        %1214 = vmatprep.subr.mxu0 0.0
        %1215 = vmatpush1.msra.mxu0 0.0
        %1216 = vmatprep.subr.mxu0 0.0
        %1217 = vmatpush1.msra.mxu0 0.0
        %1218 = vmatprep.subr.mxu0 %v326
        %1219 = vmatpush1.msra.mxu0 %v326
        %1220 = vmatprep.subr.mxu0 0.0
        %1221 = vmatpush2.msra.mxu0 0.0
        %1222 = vmatprep.subr.mxu0 0.0
        %1223 = vmatpush2.msra.mxu0 0.0
        %1224 = vmatprep.subr.mxu0 0.0
        %1225 = vmatpush2.msra.mxu0 0.0
        %1226 = vmatprep.subr.mxu0 0.0
        %1227 = vmatpush2.msra.mxu0 0.0
        %1228 = vmatprep.subr.mxu0 0.0
        %1229 = vmatpush2.msra.mxu0 0.0
        %1230 = vmatprep.subr.mxu0 0.0
        %1231 = vmatpush2.msra.mxu0 0.0
        %1232 = vmatprep.subr.mxu0 0.0
        %1233 = vmatpush2.msra.mxu0 0.0
        %1234 = vmatprep.subr.mxu0 0.0
        %1235 = vmatpush2.msra.mxu0 0.0
        %1236 = vmatprep.subr.mxu0 0.0
        %1237 = vmatpush2.msra.mxu0 0.0
        %1238 = vmatprep.subr.mxu0 0.0
        %1239 = vmatpush2.msra.mxu0 0.0
        %1240 = vmatprep.subr.mxu0 0.0
        %1241 = vmatpush2.msra.mxu0 0.0
        %1242 = vmatprep.subr.mxu0 0.0
        %1243 = vmatpush2.msra.mxu0 0.0
        %1244 = vmatprep.subr.mxu0 0.0
        %1245 = vmatpush2.msra.mxu0 0.0
        %1246 = vmatprep.subr.mxu0 0.0
        %1247 = vmatpush2.msra.mxu0 0.0
        %1248 = vmatprep.subr.mxu0 0.0
        %1249 = vmatpush2.msra.mxu0 0.0
        %1250 = vmatprep.subr.mxu0 0.0
        %1251 = vmatpush2.msra.mxu0 0.0
        %1252 = vmatprep.mubr.f32.mxu0 0.0
        %1253 = vmatmul.mubr.f32.gmra.mxu0 %v234
        %v1254 = vpop.f32.mrf.mxu0
        %v1255 = vadd.f32 0.0, %v1254
        %v1256 = vpop.f32.mrf.mxu0
        %v1257 = vadd.f32 0.0, %v1256
        %1258 = vmatprep.mubr.f32.mxu0 0.0
        %1259 = vmatmul.mubr.f32.gmra.mxu0 %v237
        %v1260 = vpop.f32.mrf.mxu0
        %v1261 = vadd.f32 0.0, %v1260
        %v1262 = vpop.f32.mrf.mxu0
        %v1263 = vadd.f32 0.0, %v1262
        %1264 = vmatprep.mubr.f32.mxu0 0.0
        %1265 = vmatmul.mubr.f32.gmra.mxu0 %v240
        %v1266 = vpop.f32.mrf.mxu0
        %v1267 = vadd.f32 0.0, %v1266
        %v1268 = vpop.f32.mrf.mxu0
        %v1269 = vadd.f32 0.0, %v1268
        %1270 = vmatprep.mubr.f32.mxu0 0.0
        %1271 = vmatmul.mubr.f32.gmra.mxu0 %v243
        %v1272 = vpop.f32.mrf.mxu0
        %v1273 = vadd.f32 0.0, %v1272
        %v1274 = vpop.f32.mrf.mxu0
        %v1275 = vadd.f32 0.0, %v1274
        %1276 = vmatprep.mubr.f32.mxu0 0.0
        %1277 = vmatmul.mubr.f32.gmra.mxu0 %v246
        %v1278 = vpop.f32.mrf.mxu0
        %v1279 = vadd.f32 0.0, %v1278
        %v1280 = vpop.f32.mrf.mxu0
        %v1281 = vadd.f32 0.0, %v1280
        %1282 = vmatprep.mubr.f32.mxu0 0.0
        %1283 = vmatmul.mubr.f32.gmra.mxu0 %v249
        %v1284 = vpop.f32.mrf.mxu0
        %v1285 = vadd.f32 0.0, %v1284
        %v1286 = vpop.f32.mrf.mxu0
        %v1287 = vadd.f32 0.0, %v1286
        %1288 = vmatprep.mubr.f32.mxu0 0.0
        %1289 = vmatmul.mubr.f32.gmra.mxu0 %v252
        %v1290 = vpop.f32.mrf.mxu0
        %v1291 = vadd.f32 0.0, %v1290
        %v1292 = vpop.f32.mrf.mxu0
        %v1293 = vadd.f32 0.0, %v1292
        %1294 = vmatprep.mubr.f32.mxu0 0.0
        %1295 = vmatmul.mubr.f32.gmra.mxu0 %v255
        %v1296 = vpop.f32.mrf.mxu0
        %v1297 = vadd.f32 0.0, %v1296
        %v1298 = vpop.f32.mrf.mxu0
        %v1299 = vadd.f32 0.0, %v1298
        %1300 = vmatprep.mubr.f32.mxu0 0.0
        %1301 = vmatmul.mubr.f32.gmra.mxu0 %v258
        %v1302 = vpop.f32.mrf.mxu0
        %v1303 = vadd.f32 0.0, %v1302
        %v1304 = vpop.f32.mrf.mxu0
        %v1305 = vadd.f32 0.0, %v1304
        %1306 = vmatprep.mubr.f32.mxu0 0.0
        %1307 = vmatmul.mubr.f32.gmra.mxu0 %v261
        %v1308 = vpop.f32.mrf.mxu0
        %v1309 = vadd.f32 0.0, %v1308
        %v1310 = vpop.f32.mrf.mxu0
        %v1311 = vadd.f32 0.0, %v1310
        %1312 = vmatprep.mubr.f32.mxu0 0.0
        %1313 = vmatmul.mubr.f32.gmra.mxu0 %v264
        %v1314 = vpop.f32.mrf.mxu0
        %v1315 = vadd.f32 0.0, %v1314
        %v1316 = vpop.f32.mrf.mxu0
        %v1317 = vadd.f32 0.0, %v1316
        %1318 = vmatprep.mubr.f32.mxu0 0.0
        %1319 = vmatmul.mubr.f32.gmra.mxu0 %v267
        %v1320 = vpop.f32.mrf.mxu0
        %v1321 = vadd.f32 0.0, %v1320
        %v1322 = vpop.f32.mrf.mxu0
        %v1323 = vadd.f32 0.0, %v1322
        %1324 = vmatprep.mubr.f32.mxu0 0.0
        %1325 = vmatmul.mubr.f32.gmra.mxu0 %v270
        %v1326 = vpop.f32.mrf.mxu0
        %v1327 = vadd.f32 0.0, %v1326
        %v1328 = vpop.f32.mrf.mxu0
        %v1329 = vadd.f32 0.0, %v1328
        %1330 = vmatprep.mubr.f32.mxu0 0.0
        %1331 = vmatmul.mubr.f32.gmra.mxu0 %v273
        %v1332 = vpop.f32.mrf.mxu0
        %v1333 = vadd.f32 0.0, %v1332
        %v1334 = vpop.f32.mrf.mxu0
        %v1335 = vadd.f32 0.0, %v1334
        %1336 = vmatprep.mubr.f32.mxu0 0.0
        %1337 = vmatmul.mubr.f32.gmra.mxu0 %v276
        %v1338 = vpop.f32.mrf.mxu0
        %v1339 = vadd.f32 0.0, %v1338
        %v1340 = vpop.f32.mrf.mxu0
        %v1341 = vadd.f32 0.0, %v1340
        %1342 = vmatprep.mubr.f32.mxu0 0.0
        %1343 = vmatmul.mubr.f32.gmra.mxu0 %v279
        %v1344 = vpop.f32.mrf.mxu0
        %v1345 = vadd.f32 0.0, %v1344
        %v1346 = vpop.f32.mrf.mxu0
        %v1347 = vadd.f32 0.0, %v1346
        %1348 = vmatprep.mubr.f32.mxu0 0.0
        %1349 = vmatmul.mubr.f32.gmra.mxu0 %v282
        %v1350 = vpop.f32.mrf.mxu0
        %v1351 = vadd.f32 0.0, %v1350
        %v1352 = vpop.f32.mrf.mxu0
        %v1353 = vadd.f32 0.0, %v1352
        %1354 = vmatprep.mubr.f32.mxu0 0.0
        %1355 = vmatmul.mubr.f32.gmra.mxu0 %v285
        %v1356 = vpop.f32.mrf.mxu0
        %v1357 = vadd.f32 0.0, %v1356
        %v1358 = vpop.f32.mrf.mxu0
        %v1359 = vadd.f32 0.0, %v1358
        %1360 = vmatprep.mubr.f32.mxu0 0.0
        %1361 = vmatmul.mubr.f32.gmra.mxu0 %v288
        %v1362 = vpop.f32.mrf.mxu0
        %v1363 = vadd.f32 0.0, %v1362
        %v1364 = vpop.f32.mrf.mxu0
        %v1365 = vadd.f32 0.0, %v1364
        %1366 = vmatprep.mubr.f32.mxu0 0.0
        %1367 = vmatmul.mubr.f32.gmra.mxu0 %v291
        %v1368 = vpop.f32.mrf.mxu0
        %v1369 = vadd.f32 0.0, %v1368
        %v1370 = vpop.f32.mrf.mxu0
        %v1371 = vadd.f32 0.0, %v1370
        %1372 = vmatprep.mubr.f32.mxu0 0.0
        %1373 = vmatmul.mubr.f32.gmra.mxu0 %v294
        %v1374 = vpop.f32.mrf.mxu0
        %v1375 = vadd.f32 0.0, %v1374
        %v1376 = vpop.f32.mrf.mxu0
        %v1377 = vadd.f32 0.0, %v1376
        %1378 = vmatprep.mubr.f32.mxu0 0.0
        %1379 = vmatmul.mubr.f32.gmra.mxu0 %v297
        %v1380 = vpop.f32.mrf.mxu0
        %v1381 = vadd.f32 0.0, %v1380
        %v1382 = vpop.f32.mrf.mxu0
        %v1383 = vadd.f32 0.0, %v1382
        %1384 = vmatprep.mubr.f32.mxu0 0.0
        %1385 = vmatmul.mubr.f32.gmra.mxu0 %v300
        %v1386 = vpop.f32.mrf.mxu0
        %v1387 = vadd.f32 0.0, %v1386
        %v1388 = vpop.f32.mrf.mxu0
        %v1389 = vadd.f32 0.0, %v1388
        %1390 = vmatprep.mubr.f32.mxu0 0.0
        %1391 = vmatmul.mubr.f32.gmra.mxu0 %v303
        %v1392 = vpop.f32.mrf.mxu0
        %v1393 = vadd.f32 0.0, %v1392
        %v1394 = vpop.f32.mrf.mxu0
        %v1395 = vadd.f32 0.0, %v1394
        %1396 = vmatprep.mubr.f32.mxu0 0.0
        %1397 = vmatmul.mubr.f32.gmra.mxu0 %v306
        %v1398 = vpop.f32.mrf.mxu0
        %v1399 = vadd.f32 0.0, %v1398
        %v1400 = vpop.f32.mrf.mxu0
        %v1401 = vadd.f32 0.0, %v1400
        %1402 = vdwg.mxu0
        %1403 = vst [vmem:[#allocation2] sm:$0xff] %v395
        %1404 = vst [vmem:[#allocation2 + $0x8] sm:$0xff] %v397
        %1405 = vst [vmem:[#allocation2 + $0x10] sm:$0xff] %v610
        %1406 = vst [vmem:[#allocation2 + $0x18] sm:$0xff] %v612
        %1407 = vst [vmem:[#allocation2 + $0x20] sm:$0xff] %v825
        %1408 = vst [vmem:[#allocation2 + $0x28] sm:$0xff] %v827
        %1409 = vst [vmem:[#allocation2 + $0x30] sm:$0xff] %v1040
        %1410 = vst [vmem:[#allocation2 + $0x38] sm:$0xff] %v1042
        %1411 = vst [vmem:[#allocation2 + $0x40] sm:$0xff] %v1255
        %1412 = vst [vmem:[#allocation2 + $0x48] sm:$0xff] %v1257
        %1413 = vst [vmem:[#allocation2 + $0x50] sm:$0xff] %v401
        %1414 = vst [vmem:[#allocation2 + $0x58] sm:$0xff] %v403
        %1415 = vst [vmem:[#allocation2 + $0x60] sm:$0xff] %v616
        %1416 = vst [vmem:[#allocation2 + $0x68] sm:$0xff] %v618
        %1417 = vst [vmem:[#allocation2 + $0x70] sm:$0xff] %v831
        %1418 = vst [vmem:[#allocation2 + $0x78] sm:$0xff] %v833
        %1419 = vst [vmem:[#allocation2 + $0x80] sm:$0xff] %v1046
        %1420 = vst [vmem:[#allocation2 + $0x88] sm:$0xff] %v1048
        %1421 = vst [vmem:[#allocation2 + $0x90] sm:$0xff] %v1261
        %1422 = vst [vmem:[#allocation2 + $0x98] sm:$0xff] %v1263
        %1423 = vst [vmem:[#allocation2 + $0xa0] sm:$0xff] %v407
        %1424 = vst [vmem:[#allocation2 + $0xa8] sm:$0xff] %v409
        %1425 = vst [vmem:[#allocation2 + $0xb0] sm:$0xff] %v622
        %1426 = vst [vmem:[#allocation2 + $0xb8] sm:$0xff] %v624
        %1427 = vst [vmem:[#allocation2 + $0xc0] sm:$0xff] %v837
        %1428 = vst [vmem:[#allocation2 + $0xc8] sm:$0xff] %v839
        %1429 = vst [vmem:[#allocation2 + $0xd0] sm:$0xff] %v1052
        %1430 = vst [vmem:[#allocation2 + $0xd8] sm:$0xff] %v1054
        %1431 = vst [vmem:[#allocation2 + $0xe0] sm:$0xff] %v1267
        %1432 = vst [vmem:[#allocation2 + $0xe8] sm:$0xff] %v1269
        %1433 = vst [vmem:[#allocation2 + $0xf0] sm:$0xff] %v413
        %1434 = vst [vmem:[#allocation2 + $0xf8] sm:$0xff] %v415
        %1435 = vst [vmem:[#allocation2 + $0x100] sm:$0xff] %v628
        %1436 = vst [vmem:[#allocation2 + $0x108] sm:$0xff] %v630
        %1437 = vst [vmem:[#allocation2 + $0x110] sm:$0xff] %v843
        %1438 = vst [vmem:[#allocation2 + $0x118] sm:$0xff] %v845
        %1439 = vst [vmem:[#allocation2 + $0x120] sm:$0xff] %v1058
        %1440 = vst [vmem:[#allocation2 + $0x128] sm:$0xff] %v1060
        %1441 = vst [vmem:[#allocation2 + $0x130] sm:$0xff] %v1273
        %1442 = vst [vmem:[#allocation2 + $0x138] sm:$0xff] %v1275
        %1443 = vst [vmem:[#allocation2 + $0x140] sm:$0xff] %v419
        %1444 = vst [vmem:[#allocation2 + $0x148] sm:$0xff] %v421
        %1445 = vst [vmem:[#allocation2 + $0x150] sm:$0xff] %v634
        %1446 = vst [vmem:[#allocation2 + $0x158] sm:$0xff] %v636
        %1447 = vst [vmem:[#allocation2 + $0x160] sm:$0xff] %v849
        %1448 = vst [vmem:[#allocation2 + $0x168] sm:$0xff] %v851
        %1449 = vst [vmem:[#allocation2 + $0x170] sm:$0xff] %v1064
        %1450 = vst [vmem:[#allocation2 + $0x178] sm:$0xff] %v1066
        %1451 = vst [vmem:[#allocation2 + $0x180] sm:$0xff] %v1279
        %1452 = vst [vmem:[#allocation2 + $0x188] sm:$0xff] %v1281
        %1453 = vst [vmem:[#allocation2 + $0x190] sm:$0xff] %v425
        %1454 = vst [vmem:[#allocation2 + $0x198] sm:$0xff] %v427
        %1455 = vst [vmem:[#allocation2 + $0x1a0] sm:$0xff] %v640
        %1456 = vst [vmem:[#allocation2 + $0x1a8] sm:$0xff] %v642
        %1457 = vst [vmem:[#allocation2 + $0x1b0] sm:$0xff] %v855
        %1458 = vst [vmem:[#allocation2 + $0x1b8] sm:$0xff] %v857
        %1459 = vst [vmem:[#allocation2 + $0x1c0] sm:$0xff] %v1070
        %1460 = vst [vmem:[#allocation2 + $0x1c8] sm:$0xff] %v1072
        %1461 = vst [vmem:[#allocation2 + $0x1d0] sm:$0xff] %v1285
        %1462 = vst [vmem:[#allocation2 + $0x1d8] sm:$0xff] %v1287
        %1463 = vst [vmem:[#allocation2 + $0x1e0] sm:$0xff] %v431
        %1464 = vst [vmem:[#allocation2 + $0x1e8] sm:$0xff] %v433
        %1465 = vst [vmem:[#allocation2 + $0x1f0] sm:$0xff] %v646
        %1466 = vst [vmem:[#allocation2 + $0x1f8] sm:$0xff] %v648
        %1467 = vst [vmem:[#allocation2 + $0x200] sm:$0xff] %v861
        %1468 = vst [vmem:[#allocation2 + $0x208] sm:$0xff] %v863
        %1469 = vst [vmem:[#allocation2 + $0x210] sm:$0xff] %v1076
        %1470 = vst [vmem:[#allocation2 + $0x218] sm:$0xff] %v1078
        %1471 = vst [vmem:[#allocation2 + $0x220] sm:$0xff] %v1291
        %1472 = vst [vmem:[#allocation2 + $0x228] sm:$0xff] %v1293
        %1473 = vst [vmem:[#allocation2 + $0x230] sm:$0xff] %v437
        %1474 = vst [vmem:[#allocation2 + $0x238] sm:$0xff] %v439
        %1475 = vst [vmem:[#allocation2 + $0x240] sm:$0xff] %v652
        %1476 = vst [vmem:[#allocation2 + $0x248] sm:$0xff] %v654
        %1477 = vst [vmem:[#allocation2 + $0x250] sm:$0xff] %v867
        %1478 = vst [vmem:[#allocation2 + $0x258] sm:$0xff] %v869
        %1479 = vst [vmem:[#allocation2 + $0x260] sm:$0xff] %v1082
        %1480 = vst [vmem:[#allocation2 + $0x268] sm:$0xff] %v1084
        %1481 = vst [vmem:[#allocation2 + $0x270] sm:$0xff] %v1297
        %1482 = vst [vmem:[#allocation2 + $0x278] sm:$0xff] %v1299
        %1483 = vst [vmem:[#allocation2 + $0x280] sm:$0xff] %v443
        %1484 = vst [vmem:[#allocation2 + $0x288] sm:$0xff] %v445
        %1485 = vst [vmem:[#allocation2 + $0x290] sm:$0xff] %v658
        %1486 = vst [vmem:[#allocation2 + $0x298] sm:$0xff] %v660
        %1487 = vst [vmem:[#allocation2 + $0x2a0] sm:$0xff] %v873
        %1488 = vst [vmem:[#allocation2 + $0x2a8] sm:$0xff] %v875
        %1489 = vst [vmem:[#allocation2 + $0x2b0] sm:$0xff] %v1088
        %1490 = vst [vmem:[#allocation2 + $0x2b8] sm:$0xff] %v1090
        %1491 = vst [vmem:[#allocation2 + $0x2c0] sm:$0xff] %v1303
        %1492 = vst [vmem:[#allocation2 + $0x2c8] sm:$0xff] %v1305
        %1493 = vst [vmem:[#allocation2 + $0x2d0] sm:$0xff] %v449
        %1494 = vst [vmem:[#allocation2 + $0x2d8] sm:$0xff] %v451
        %1495 = vst [vmem:[#allocation2 + $0x2e0] sm:$0xff] %v664
        %1496 = vst [vmem:[#allocation2 + $0x2e8] sm:$0xff] %v666
        %1497 = vst [vmem:[#allocation2 + $0x2f0] sm:$0xff] %v879
        %1498 = vst [vmem:[#allocation2 + $0x2f8] sm:$0xff] %v881
        %1499 = vst [vmem:[#allocation2 + $0x300] sm:$0xff] %v1094
        %1500 = vst [vmem:[#allocation2 + $0x308] sm:$0xff] %v1096
        %1501 = vst [vmem:[#allocation2 + $0x310] sm:$0xff] %v1309
        %1502 = vst [vmem:[#allocation2 + $0x318] sm:$0xff] %v1311
        %1503 = vst [vmem:[#allocation2 + $0x320] sm:$0xff] %v455
        %1504 = vst [vmem:[#allocation2 + $0x328] sm:$0xff] %v457
        %1505 = vst [vmem:[#allocation2 + $0x330] sm:$0xff] %v670
        %1506 = vst [vmem:[#allocation2 + $0x338] sm:$0xff] %v672
        %1507 = vst [vmem:[#allocation2 + $0x340] sm:$0xff] %v885
        %1508 = vst [vmem:[#allocation2 + $0x348] sm:$0xff] %v887
        %1509 = vst [vmem:[#allocation2 + $0x350] sm:$0xff] %v1100
        %1510 = vst [vmem:[#allocation2 + $0x358] sm:$0xff] %v1102
        %1511 = vst [vmem:[#allocation2 + $0x360] sm:$0xff] %v1315
        %1512 = vst [vmem:[#allocation2 + $0x368] sm:$0xff] %v1317
        %1513 = vst [vmem:[#allocation2 + $0x370] sm:$0xff] %v461
        %1514 = vst [vmem:[#allocation2 + $0x378] sm:$0xff] %v463
        %1515 = vst [vmem:[#allocation2 + $0x380] sm:$0xff] %v676
        %1516 = vst [vmem:[#allocation2 + $0x388] sm:$0xff] %v678
        %1517 = vst [vmem:[#allocation2 + $0x390] sm:$0xff] %v891
        %1518 = vst [vmem:[#allocation2 + $0x398] sm:$0xff] %v893
        %1519 = vst [vmem:[#allocation2 + $0x3a0] sm:$0xff] %v1106
        %1520 = vst [vmem:[#allocation2 + $0x3a8] sm:$0xff] %v1108
        %1521 = vst [vmem:[#allocation2 + $0x3b0] sm:$0xff] %v1321
        %1522 = vst [vmem:[#allocation2 + $0x3b8] sm:$0xff] %v1323
        %1523 = vst [vmem:[#allocation2 + $0x3c0] sm:$0xff] %v467
        %1524 = vst [vmem:[#allocation2 + $0x3c8] sm:$0xff] %v469
        %1525 = vst [vmem:[#allocation2 + $0x3d0] sm:$0xff] %v682
        %1526 = vst [vmem:[#allocation2 + $0x3d8] sm:$0xff] %v684
        %1527 = vst [vmem:[#allocation2 + $0x3e0] sm:$0xff] %v897
        %1528 = vst [vmem:[#allocation2 + $0x3e8] sm:$0xff] %v899
        %1529 = vst [vmem:[#allocation2 + $0x3f0] sm:$0xff] %v1112
        %1530 = vst [vmem:[#allocation2 + $0x3f8] sm:$0xff] %v1114
        %1531 = vst [vmem:[#allocation2 + $0x400] sm:$0xff] %v1327
        %1532 = vst [vmem:[#allocation2 + $0x408] sm:$0xff] %v1329
        %1533 = vst [vmem:[#allocation2 + $0x410] sm:$0xff] %v473
        %1534 = vst [vmem:[#allocation2 + $0x418] sm:$0xff] %v475
        %1535 = vst [vmem:[#allocation2 + $0x420] sm:$0xff] %v688
        %1536 = vst [vmem:[#allocation2 + $0x428] sm:$0xff] %v690
        %1537 = vst [vmem:[#allocation2 + $0x430] sm:$0xff] %v903
        %1538 = vst [vmem:[#allocation2 + $0x438] sm:$0xff] %v905
        %1539 = vst [vmem:[#allocation2 + $0x440] sm:$0xff] %v1118
        %1540 = vst [vmem:[#allocation2 + $0x448] sm:$0xff] %v1120
        %1541 = vst [vmem:[#allocation2 + $0x450] sm:$0xff] %v1333
        %1542 = vst [vmem:[#allocation2 + $0x458] sm:$0xff] %v1335
        %1543 = vst [vmem:[#allocation2 + $0x460] sm:$0xff] %v479
        %1544 = vst [vmem:[#allocation2 + $0x468] sm:$0xff] %v481
        %1545 = vst [vmem:[#allocation2 + $0x470] sm:$0xff] %v694
        %1546 = vst [vmem:[#allocation2 + $0x478] sm:$0xff] %v696
        %1547 = vst [vmem:[#allocation2 + $0x480] sm:$0xff] %v909
        %1548 = vst [vmem:[#allocation2 + $0x488] sm:$0xff] %v911
        %1549 = vst [vmem:[#allocation2 + $0x490] sm:$0xff] %v1124
        %1550 = vst [vmem:[#allocation2 + $0x498] sm:$0xff] %v1126
        %1551 = vst [vmem:[#allocation2 + $0x4a0] sm:$0xff] %v1339
        %1552 = vst [vmem:[#allocation2 + $0x4a8] sm:$0xff] %v1341
        %1553 = vst [vmem:[#allocation2 + $0x4b0] sm:$0xff] %v485
        %1554 = vst [vmem:[#allocation2 + $0x4b8] sm:$0xff] %v487
        %1555 = vst [vmem:[#allocation2 + $0x4c0] sm:$0xff] %v700
        %1556 = vst [vmem:[#allocation2 + $0x4c8] sm:$0xff] %v702
        %1557 = vst [vmem:[#allocation2 + $0x4d0] sm:$0xff] %v915
        %1558 = vst [vmem:[#allocation2 + $0x4d8] sm:$0xff] %v917
        %1559 = vst [vmem:[#allocation2 + $0x4e0] sm:$0xff] %v1130
        %1560 = vst [vmem:[#allocation2 + $0x4e8] sm:$0xff] %v1132
        %1561 = vst [vmem:[#allocation2 + $0x4f0] sm:$0xff] %v1345
        %1562 = vst [vmem:[#allocation2 + $0x4f8] sm:$0xff] %v1347
        %1563 = vst [vmem:[#allocation2 + $0x500] sm:$0xff] %v491
        %1564 = vst [vmem:[#allocation2 + $0x508] sm:$0xff] %v493
        %1565 = vst [vmem:[#allocation2 + $0x510] sm:$0xff] %v706
        %1566 = vst [vmem:[#allocation2 + $0x518] sm:$0xff] %v708
        %1567 = vst [vmem:[#allocation2 + $0x520] sm:$0xff] %v921
        %1568 = vst [vmem:[#allocation2 + $0x528] sm:$0xff] %v923
        %1569 = vst [vmem:[#allocation2 + $0x530] sm:$0xff] %v1136
        %1570 = vst [vmem:[#allocation2 + $0x538] sm:$0xff] %v1138
        %1571 = vst [vmem:[#allocation2 + $0x540] sm:$0xff] %v1351
        %1572 = vst [vmem:[#allocation2 + $0x548] sm:$0xff] %v1353
        %1573 = vst [vmem:[#allocation2 + $0x550] sm:$0xff] %v497
        %1574 = vst [vmem:[#allocation2 + $0x558] sm:$0xff] %v499
        %1575 = vst [vmem:[#allocation2 + $0x560] sm:$0xff] %v712
        %1576 = vst [vmem:[#allocation2 + $0x568] sm:$0xff] %v714
        %1577 = vst [vmem:[#allocation2 + $0x570] sm:$0xff] %v927
        %1578 = vst [vmem:[#allocation2 + $0x578] sm:$0xff] %v929
        %1579 = vst [vmem:[#allocation2 + $0x580] sm:$0xff] %v1142
        %1580 = vst [vmem:[#allocation2 + $0x588] sm:$0xff] %v1144
        %1581 = vst [vmem:[#allocation2 + $0x590] sm:$0xff] %v1357
        %1582 = vst [vmem:[#allocation2 + $0x598] sm:$0xff] %v1359
        %1583 = vst [vmem:[#allocation2 + $0x5a0] sm:$0xff] %v503
        %1584 = vst [vmem:[#allocation2 + $0x5a8] sm:$0xff] %v505
        %1585 = vst [vmem:[#allocation2 + $0x5b0] sm:$0xff] %v718
        %1586 = vst [vmem:[#allocation2 + $0x5b8] sm:$0xff] %v720
        %1587 = vst [vmem:[#allocation2 + $0x5c0] sm:$0xff] %v933
        %1588 = vst [vmem:[#allocation2 + $0x5c8] sm:$0xff] %v935
        %1589 = vst [vmem:[#allocation2 + $0x5d0] sm:$0xff] %v1148
        %1590 = vst [vmem:[#allocation2 + $0x5d8] sm:$0xff] %v1150
        %1591 = vst [vmem:[#allocation2 + $0x5e0] sm:$0xff] %v1363
        %1592 = vst [vmem:[#allocation2 + $0x5e8] sm:$0xff] %v1365
        %1593 = vst [vmem:[#allocation2 + $0x5f0] sm:$0xff] %v509
        %1594 = vst [vmem:[#allocation2 + $0x5f8] sm:$0xff] %v511
        %1595 = vst [vmem:[#allocation2 + $0x600] sm:$0xff] %v724
        %1596 = vst [vmem:[#allocation2 + $0x608] sm:$0xff] %v726
        %1597 = vst [vmem:[#allocation2 + $0x610] sm:$0xff] %v939
        %1598 = vst [vmem:[#allocation2 + $0x618] sm:$0xff] %v941
        %1599 = vst [vmem:[#allocation2 + $0x620] sm:$0xff] %v1154
        %1600 = vst [vmem:[#allocation2 + $0x628] sm:$0xff] %v1156
        %1601 = vst [vmem:[#allocation2 + $0x630] sm:$0xff] %v1369
        %1602 = vst [vmem:[#allocation2 + $0x638] sm:$0xff] %v1371
        %1603 = vst [vmem:[#allocation2 + $0x640] sm:$0xff] %v515
        %1604 = vst [vmem:[#allocation2 + $0x648] sm:$0xff] %v517
        %1605 = vst [vmem:[#allocation2 + $0x650] sm:$0xff] %v730
        %1606 = vst [vmem:[#allocation2 + $0x658] sm:$0xff] %v732
        %1607 = vst [vmem:[#allocation2 + $0x660] sm:$0xff] %v945
        %1608 = vst [vmem:[#allocation2 + $0x668] sm:$0xff] %v947
        %1609 = vst [vmem:[#allocation2 + $0x670] sm:$0xff] %v1160
        %1610 = vst [vmem:[#allocation2 + $0x678] sm:$0xff] %v1162
        %1611 = vst [vmem:[#allocation2 + $0x680] sm:$0xff] %v1375
        %1612 = vst [vmem:[#allocation2 + $0x688] sm:$0xff] %v1377
        %1613 = vst [vmem:[#allocation2 + $0x690] sm:$0xff] %v521
        %1614 = vst [vmem:[#allocation2 + $0x698] sm:$0xff] %v523
        %1615 = vst [vmem:[#allocation2 + $0x6a0] sm:$0xff] %v736
        %1616 = vst [vmem:[#allocation2 + $0x6a8] sm:$0xff] %v738
        %1617 = vst [vmem:[#allocation2 + $0x6b0] sm:$0xff] %v951
        %1618 = vst [vmem:[#allocation2 + $0x6b8] sm:$0xff] %v953
        %1619 = vst [vmem:[#allocation2 + $0x6c0] sm:$0xff] %v1166
        %1620 = vst [vmem:[#allocation2 + $0x6c8] sm:$0xff] %v1168
        %1621 = vst [vmem:[#allocation2 + $0x6d0] sm:$0xff] %v1381
        %1622 = vst [vmem:[#allocation2 + $0x6d8] sm:$0xff] %v1383
        %1623 = vst [vmem:[#allocation2 + $0x6e0] sm:$0xff] %v527
        %1624 = vst [vmem:[#allocation2 + $0x6e8] sm:$0xff] %v529
        %1625 = vst [vmem:[#allocation2 + $0x6f0] sm:$0xff] %v742
        %1626 = vst [vmem:[#allocation2 + $0x6f8] sm:$0xff] %v744
        %1627 = vst [vmem:[#allocation2 + $0x700] sm:$0xff] %v957
        %1628 = vst [vmem:[#allocation2 + $0x708] sm:$0xff] %v959
        %1629 = vst [vmem:[#allocation2 + $0x710] sm:$0xff] %v1172
        %1630 = vst [vmem:[#allocation2 + $0x718] sm:$0xff] %v1174
        %1631 = vst [vmem:[#allocation2 + $0x720] sm:$0xff] %v1387
        %1632 = vst [vmem:[#allocation2 + $0x728] sm:$0xff] %v1389
        %1633 = vst [vmem:[#allocation2 + $0x730] sm:$0xff] %v533
        %1634 = vst [vmem:[#allocation2 + $0x738] sm:$0xff] %v535
        %1635 = vst [vmem:[#allocation2 + $0x740] sm:$0xff] %v748
        %1636 = vst [vmem:[#allocation2 + $0x748] sm:$0xff] %v750
        %1637 = vst [vmem:[#allocation2 + $0x750] sm:$0xff] %v963
        %1638 = vst [vmem:[#allocation2 + $0x758] sm:$0xff] %v965
        %1639 = vst [vmem:[#allocation2 + $0x760] sm:$0xff] %v1178
        %1640 = vst [vmem:[#allocation2 + $0x768] sm:$0xff] %v1180
        %1641 = vst [vmem:[#allocation2 + $0x770] sm:$0xff] %v1393
        %1642 = vst [vmem:[#allocation2 + $0x778] sm:$0xff] %v1395
        %1643 = vst [vmem:[#allocation2 + $0x780] sm:$0xff] %v539
        %1644 = vst [vmem:[#allocation2 + $0x788] sm:$0xff] %v541
        %1645 = vst [vmem:[#allocation2 + $0x790] sm:$0xff] %v754
        %1646 = vst [vmem:[#allocation2 + $0x798] sm:$0xff] %v756
        %1647 = vst [vmem:[#allocation2 + $0x7a0] sm:$0xff] %v969
        %1648 = vst [vmem:[#allocation2 + $0x7a8] sm:$0xff] %v971
        %1649 = vst [vmem:[#allocation2 + $0x7b0] sm:$0xff] %v1184
        %1650 = vst [vmem:[#allocation2 + $0x7b8] sm:$0xff] %v1186
        %1651 = vst [vmem:[#allocation2 + $0x7c0] sm:$0xff] %v1399
        %1652 = vst [vmem:[#allocation2 + $0x7c8] sm:$0xff] %v1401
        %v1653 = vld [vmem:[#allocation2] sm:$0xff]
        %v1654 = vld [vmem:[#allocation2 + $0x8] sm:$0xff]
        %v1655 = vld [vmem:[#allocation2 + $0x10] sm:$0xff]
        %v1656 = vld [vmem:[#allocation2 + $0x18] sm:$0xff]
        %v1657 = vld [vmem:[#allocation2 + $0x20] sm:$0xff]
        %v1658 = vld [vmem:[#allocation2 + $0x28] sm:$0xff]
        %v1659 = vld [vmem:[#allocation2 + $0x30] sm:$0xff]
        %v1660 = vld [vmem:[#allocation2 + $0x38] sm:$0xff]
        %v1661 = vld [vmem:[#allocation2 + $0x50] sm:$0xff]
        %v1662 = vld [vmem:[#allocation2 + $0x58] sm:$0xff]
        %v1663 = vld [vmem:[#allocation2 + $0x60] sm:$0xff]
        %v1664 = vld [vmem:[#allocation2 + $0x68] sm:$0xff]
        %v1665 = vld [vmem:[#allocation2 + $0x70] sm:$0xff]
        %v1666 = vld [vmem:[#allocation2 + $0x78] sm:$0xff]
        %v1667 = vld [vmem:[#allocation2 + $0x80] sm:$0xff]
        %v1668 = vld [vmem:[#allocation2 + $0x88] sm:$0xff]
        %v1669 = vld [vmem:[#allocation2 + $0x90] sm:$0xff]
        %1679 = vrot.lane.b32.xlu0 %v1661, 127
        %v1680 = vpop.permute.xlu0 %1679
        %1681 = vrot.lane.b32.xlu0 %v1662, 127
        %v1682 = vpop.permute.xlu0 %1681
        %1683 = vrot.lane.b32.xlu0 %v1663, 127
        %v1684 = vpop.permute.xlu0 %1683
        %1685 = vrot.lane.b32.xlu0 %v1664, 127
        %v1686 = vpop.permute.xlu0 %1685
        %1687 = vrot.lane.b32.xlu0 %v1665, 127
        %v1688 = vpop.permute.xlu0 %1687
        %1689 = vrot.lane.b32.xlu0 %v1666, 127
        %v1690 = vpop.permute.xlu0 %1689
        %1691 = vrot.lane.b32.xlu0 %v1667, 127
        %v1692 = vpop.permute.xlu0 %1691
        %1693 = vrot.lane.b32.xlu0 %v1668, 127
        %v1694 = vpop.permute.xlu0 %1693
        %1695 = vrot.lane.b32.xlu0 %v1669, 127
        %v1696 = vpop.permute.xlu0 %1695
        %vm1697 = vcmask 1039360
        %v1698 = vsel %vm1697, %v1680, %v1682
        %v1699 = vsel %vm1697, %v1682, %v1684
        %v1700 = vsel %vm1697, %v1684, %v1686
        %v1701 = vsel %vm1697, %v1686, %v1688
        %v1702 = vsel %vm1697, %v1688, %v1690
        %v1703 = vsel %vm1697, %v1690, %v1692
        %v1704 = vsel %vm1697, %v1692, %v1694
        %v1705 = vsel %vm1697, %v1694, %v1696
        %v1714 = vadd.f32 %v1653, %v1698
        %v1715 = vadd.f32 %v1654, %v1699
        %v1716 = vadd.f32 %v1655, %v1700
        %v1717 = vadd.f32 %v1656, %v1701
        %v1718 = vadd.f32 %v1657, %v1702
        %v1719 = vadd.f32 %v1658, %v1703
        %v1720 = vadd.f32 %v1659, %v1704
        %v1721 = vadd.f32 %v1660, %v1705
        %v1722 = vld [vmem:[#allocation2 + $0xa0] sm:$0xff]
        %v1723 = vld [vmem:[#allocation2 + $0xa8] sm:$0xff]
        %v1724 = vld [vmem:[#allocation2 + $0xb0] sm:$0xff]
        %v1725 = vld [vmem:[#allocation2 + $0xb8] sm:$0xff]
        %v1726 = vld [vmem:[#allocation2 + $0xc0] sm:$0xff]
        %v1727 = vld [vmem:[#allocation2 + $0xc8] sm:$0xff]
        %v1728 = vld [vmem:[#allocation2 + $0xd0] sm:$0xff]
        %v1729 = vld [vmem:[#allocation2 + $0xd8] sm:$0xff]
        %v1730 = vld [vmem:[#allocation2 + $0xe0] sm:$0xff]
        %1740 = vrot.lane.b32.xlu0 %v1722, 126
        %v1741 = vpop.permute.xlu0 %1740
        %1742 = vrot.lane.b32.xlu0 %v1723, 126
        %v1743 = vpop.permute.xlu0 %1742
        %1744 = vrot.lane.b32.xlu0 %v1724, 126
        %v1745 = vpop.permute.xlu0 %1744
        %1746 = vrot.lane.b32.xlu0 %v1725, 126
        %v1747 = vpop.permute.xlu0 %1746
        %1748 = vrot.lane.b32.xlu0 %v1726, 126
        %v1749 = vpop.permute.xlu0 %1748
        %1750 = vrot.lane.b32.xlu0 %v1727, 126
        %v1751 = vpop.permute.xlu0 %1750
        %1752 = vrot.lane.b32.xlu0 %v1728, 126
        %v1753 = vpop.permute.xlu0 %1752
        %1754 = vrot.lane.b32.xlu0 %v1729, 126
        %v1755 = vpop.permute.xlu0 %1754
        %1756 = vrot.lane.b32.xlu0 %v1730, 126
        %v1757 = vpop.permute.xlu0 %1756
        %vm1758 = vcmask 1031168
        %v1759 = vsel %vm1758, %v1741, %v1743
        %v1760 = vsel %vm1758, %v1743, %v1745
        %v1761 = vsel %vm1758, %v1745, %v1747
        %v1762 = vsel %vm1758, %v1747, %v1749
        %v1763 = vsel %vm1758, %v1749, %v1751
        %v1764 = vsel %vm1758, %v1751, %v1753
        %v1765 = vsel %vm1758, %v1753, %v1755
        %v1766 = vsel %vm1758, %v1755, %v1757
        %v1775 = vadd.f32 %v1714, %v1759
        %v1776 = vadd.f32 %v1715, %v1760
        %v1777 = vadd.f32 %v1716, %v1761
        %v1778 = vadd.f32 %v1717, %v1762
        %v1779 = vadd.f32 %v1718, %v1763
        %v1780 = vadd.f32 %v1719, %v1764
        %v1781 = vadd.f32 %v1720, %v1765
        %v1782 = vadd.f32 %v1721, %v1766
        %v1783 = vld [vmem:[#allocation2 + $0xf0] sm:$0xff]
        %v1784 = vld [vmem:[#allocation2 + $0xf8] sm:$0xff]
        %v1785 = vld [vmem:[#allocation2 + $0x100] sm:$0xff]
        %v1786 = vld [vmem:[#allocation2 + $0x108] sm:$0xff]
        %v1787 = vld [vmem:[#allocation2 + $0x110] sm:$0xff]
        %v1788 = vld [vmem:[#allocation2 + $0x118] sm:$0xff]
        %v1789 = vld [vmem:[#allocation2 + $0x120] sm:$0xff]
        %v1790 = vld [vmem:[#allocation2 + $0x128] sm:$0xff]
        %v1791 = vld [vmem:[#allocation2 + $0x130] sm:$0xff]
        %1801 = vrot.lane.b32.xlu0 %v1783, 125
        %v1802 = vpop.permute.xlu0 %1801
        %1803 = vrot.lane.b32.xlu0 %v1784, 125
        %v1804 = vpop.permute.xlu0 %1803
        %1805 = vrot.lane.b32.xlu0 %v1785, 125
        %v1806 = vpop.permute.xlu0 %1805
        %1807 = vrot.lane.b32.xlu0 %v1786, 125
        %v1808 = vpop.permute.xlu0 %1807
        %1809 = vrot.lane.b32.xlu0 %v1787, 125
        %v1810 = vpop.permute.xlu0 %1809
        %1811 = vrot.lane.b32.xlu0 %v1788, 125
        %v1812 = vpop.permute.xlu0 %1811
        %1813 = vrot.lane.b32.xlu0 %v1789, 125
        %v1814 = vpop.permute.xlu0 %1813
        %1815 = vrot.lane.b32.xlu0 %v1790, 125
        %v1816 = vpop.permute.xlu0 %1815
        %1817 = vrot.lane.b32.xlu0 %v1791, 125
        %v1818 = vpop.permute.xlu0 %1817
        %vm1819 = vcmask 1022976
        %v1820 = vsel %vm1819, %v1802, %v1804
        %v1821 = vsel %vm1819, %v1804, %v1806
        %v1822 = vsel %vm1819, %v1806, %v1808
        %v1823 = vsel %vm1819, %v1808, %v1810
        %v1824 = vsel %vm1819, %v1810, %v1812
        %v1825 = vsel %vm1819, %v1812, %v1814
        %v1826 = vsel %vm1819, %v1814, %v1816
        %v1827 = vsel %vm1819, %v1816, %v1818
        %v1836 = vadd.f32 %v1775, %v1820
        %v1837 = vadd.f32 %v1776, %v1821
        %v1838 = vadd.f32 %v1777, %v1822
        %v1839 = vadd.f32 %v1778, %v1823
        %v1840 = vadd.f32 %v1779, %v1824
        %v1841 = vadd.f32 %v1780, %v1825
        %v1842 = vadd.f32 %v1781, %v1826
        %v1843 = vadd.f32 %v1782, %v1827
        %v1844 = vld [vmem:[#allocation2 + $0x140] sm:$0xff]
        %v1845 = vld [vmem:[#allocation2 + $0x148] sm:$0xff]
        %v1846 = vld [vmem:[#allocation2 + $0x150] sm:$0xff]
        %v1847 = vld [vmem:[#allocation2 + $0x158] sm:$0xff]
        %v1848 = vld [vmem:[#allocation2 + $0x160] sm:$0xff]
        %v1849 = vld [vmem:[#allocation2 + $0x168] sm:$0xff]
        %v1850 = vld [vmem:[#allocation2 + $0x170] sm:$0xff]
        %v1851 = vld [vmem:[#allocation2 + $0x178] sm:$0xff]
        %v1852 = vld [vmem:[#allocation2 + $0x180] sm:$0xff]
        %1862 = vrot.lane.b32.xlu0 %v1844, 124
        %v1863 = vpop.permute.xlu0 %1862
        %1864 = vrot.lane.b32.xlu0 %v1845, 124
        %v1865 = vpop.permute.xlu0 %1864
        %1866 = vrot.lane.b32.xlu0 %v1846, 124
        %v1867 = vpop.permute.xlu0 %1866
        %1868 = vrot.lane.b32.xlu0 %v1847, 124
        %v1869 = vpop.permute.xlu0 %1868
        %1870 = vrot.lane.b32.xlu0 %v1848, 124
        %v1871 = vpop.permute.xlu0 %1870
        %1872 = vrot.lane.b32.xlu0 %v1849, 124
        %v1873 = vpop.permute.xlu0 %1872
        %1874 = vrot.lane.b32.xlu0 %v1850, 124
        %v1875 = vpop.permute.xlu0 %1874
        %1876 = vrot.lane.b32.xlu0 %v1851, 124
        %v1877 = vpop.permute.xlu0 %1876
        %1878 = vrot.lane.b32.xlu0 %v1852, 124
        %v1879 = vpop.permute.xlu0 %1878
        %vm1880 = vcmask 1014784
        %v1881 = vsel %vm1880, %v1863, %v1865
        %v1882 = vsel %vm1880, %v1865, %v1867
        %v1883 = vsel %vm1880, %v1867, %v1869
        %v1884 = vsel %vm1880, %v1869, %v1871
        %v1885 = vsel %vm1880, %v1871, %v1873
        %v1886 = vsel %vm1880, %v1873, %v1875
        %v1887 = vsel %vm1880, %v1875, %v1877
        %v1888 = vsel %vm1880, %v1877, %v1879
        %v1897 = vadd.f32 %v1836, %v1881
        %v1898 = vadd.f32 %v1837, %v1882
        %v1899 = vadd.f32 %v1838, %v1883
        %v1900 = vadd.f32 %v1839, %v1884
        %v1901 = vadd.f32 %v1840, %v1885
        %v1902 = vadd.f32 %v1841, %v1886
        %v1903 = vadd.f32 %v1842, %v1887
        %v1904 = vadd.f32 %v1843, %v1888
        %v1905 = vld [vmem:[#allocation2 + $0x190] sm:$0xff]
        %v1906 = vld [vmem:[#allocation2 + $0x198] sm:$0xff]
        %v1907 = vld [vmem:[#allocation2 + $0x1a0] sm:$0xff]
        %v1908 = vld [vmem:[#allocation2 + $0x1a8] sm:$0xff]
        %v1909 = vld [vmem:[#allocation2 + $0x1b0] sm:$0xff]
        %v1910 = vld [vmem:[#allocation2 + $0x1b8] sm:$0xff]
        %v1911 = vld [vmem:[#allocation2 + $0x1c0] sm:$0xff]
        %v1912 = vld [vmem:[#allocation2 + $0x1c8] sm:$0xff]
        %v1913 = vld [vmem:[#allocation2 + $0x1d0] sm:$0xff]
        %1923 = vrot.lane.b32.xlu0 %v1905, 96
        %v1924 = vpop.permute.xlu0 %1923
        %1925 = vrot.lane.b32.xlu0 %v1906, 96
        %v1926 = vpop.permute.xlu0 %1925
        %1927 = vrot.lane.b32.xlu0 %v1907, 96
        %v1928 = vpop.permute.xlu0 %1927
        %1929 = vrot.lane.b32.xlu0 %v1908, 96
        %v1930 = vpop.permute.xlu0 %1929
        %1931 = vrot.lane.b32.xlu0 %v1909, 96
        %v1932 = vpop.permute.xlu0 %1931
        %1933 = vrot.lane.b32.xlu0 %v1910, 96
        %v1934 = vpop.permute.xlu0 %1933
        %1935 = vrot.lane.b32.xlu0 %v1911, 96
        %v1936 = vpop.permute.xlu0 %1935
        %1937 = vrot.lane.b32.xlu0 %v1912, 96
        %v1938 = vpop.permute.xlu0 %1937
        %1939 = vrot.lane.b32.xlu0 %v1913, 96
        %v1940 = vpop.permute.xlu0 %1939
        %vm1941 = vcmask 785408
        %v1942 = vsel %vm1941, %v1924, %v1926
        %v1943 = vsel %vm1941, %v1926, %v1928
        %v1944 = vsel %vm1941, %v1928, %v1930
        %v1945 = vsel %vm1941, %v1930, %v1932
        %v1946 = vsel %vm1941, %v1932, %v1934
        %v1947 = vsel %vm1941, %v1934, %v1936
        %v1948 = vsel %vm1941, %v1936, %v1938
        %v1949 = vsel %vm1941, %v1938, %v1940
        %v1958 = vadd.f32 %v1897, %v1942
        %v1959 = vadd.f32 %v1898, %v1943
        %v1960 = vadd.f32 %v1899, %v1944
        %v1961 = vadd.f32 %v1900, %v1945
        %v1962 = vadd.f32 %v1901, %v1946
        %v1963 = vadd.f32 %v1902, %v1947
        %v1964 = vadd.f32 %v1903, %v1948
        %v1965 = vadd.f32 %v1904, %v1949
        %v1966 = vld [vmem:[#allocation2 + $0x1e0] sm:$0xff]
        %v1967 = vld [vmem:[#allocation2 + $0x1e8] sm:$0xff]
        %v1968 = vld [vmem:[#allocation2 + $0x1f0] sm:$0xff]
        %v1969 = vld [vmem:[#allocation2 + $0x1f8] sm:$0xff]
        %v1970 = vld [vmem:[#allocation2 + $0x200] sm:$0xff]
        %v1971 = vld [vmem:[#allocation2 + $0x208] sm:$0xff]
        %v1972 = vld [vmem:[#allocation2 + $0x210] sm:$0xff]
        %v1973 = vld [vmem:[#allocation2 + $0x218] sm:$0xff]
        %v1974 = vld [vmem:[#allocation2 + $0x220] sm:$0xff]
        %1984 = vrot.lane.b32.xlu0 %v1966, 95
        %v1985 = vpop.permute.xlu0 %1984
        %1986 = vrot.lane.b32.xlu0 %v1967, 95
        %v1987 = vpop.permute.xlu0 %1986
        %1988 = vrot.lane.b32.xlu0 %v1968, 95
        %v1989 = vpop.permute.xlu0 %1988
        %1990 = vrot.lane.b32.xlu0 %v1969, 95
        %v1991 = vpop.permute.xlu0 %1990
        %1992 = vrot.lane.b32.xlu0 %v1970, 95
        %v1993 = vpop.permute.xlu0 %1992
        %1994 = vrot.lane.b32.xlu0 %v1971, 95
        %v1995 = vpop.permute.xlu0 %1994
        %1996 = vrot.lane.b32.xlu0 %v1972, 95
        %v1997 = vpop.permute.xlu0 %1996
        %1998 = vrot.lane.b32.xlu0 %v1973, 95
        %v1999 = vpop.permute.xlu0 %1998
        %2000 = vrot.lane.b32.xlu0 %v1974, 95
        %v2001 = vpop.permute.xlu0 %2000
        %vm2002 = vcmask 777216
        %v2003 = vsel %vm2002, %v1985, %v1987
        %v2004 = vsel %vm2002, %v1987, %v1989
        %v2005 = vsel %vm2002, %v1989, %v1991
        %v2006 = vsel %vm2002, %v1991, %v1993
        %v2007 = vsel %vm2002, %v1993, %v1995
        %v2008 = vsel %vm2002, %v1995, %v1997
        %v2009 = vsel %vm2002, %v1997, %v1999
        %v2010 = vsel %vm2002, %v1999, %v2001
        %v2019 = vadd.f32 %v1958, %v2003
        %v2020 = vadd.f32 %v1959, %v2004
        %v2021 = vadd.f32 %v1960, %v2005
        %v2022 = vadd.f32 %v1961, %v2006
        %v2023 = vadd.f32 %v1962, %v2007
        %v2024 = vadd.f32 %v1963, %v2008
        %v2025 = vadd.f32 %v1964, %v2009
        %v2026 = vadd.f32 %v1965, %v2010
        %v2027 = vld [vmem:[#allocation2 + $0x230] sm:$0xff]
        %v2028 = vld [vmem:[#allocation2 + $0x238] sm:$0xff]
        %v2029 = vld [vmem:[#allocation2 + $0x240] sm:$0xff]
        %v2030 = vld [vmem:[#allocation2 + $0x248] sm:$0xff]
        %v2031 = vld [vmem:[#allocation2 + $0x250] sm:$0xff]
        %v2032 = vld [vmem:[#allocation2 + $0x258] sm:$0xff]
        %v2033 = vld [vmem:[#allocation2 + $0x260] sm:$0xff]
        %v2034 = vld [vmem:[#allocation2 + $0x268] sm:$0xff]
        %v2035 = vld [vmem:[#allocation2 + $0x270] sm:$0xff]
        %2045 = vrot.lane.b32.xlu0 %v2027, 94
        %v2046 = vpop.permute.xlu0 %2045
        %2047 = vrot.lane.b32.xlu0 %v2028, 94
        %v2048 = vpop.permute.xlu0 %2047
        %2049 = vrot.lane.b32.xlu0 %v2029, 94
        %v2050 = vpop.permute.xlu0 %2049
        %2051 = vrot.lane.b32.xlu0 %v2030, 94
        %v2052 = vpop.permute.xlu0 %2051
        %2053 = vrot.lane.b32.xlu0 %v2031, 94
        %v2054 = vpop.permute.xlu0 %2053
        %2055 = vrot.lane.b32.xlu0 %v2032, 94
        %v2056 = vpop.permute.xlu0 %2055
        %2057 = vrot.lane.b32.xlu0 %v2033, 94
        %v2058 = vpop.permute.xlu0 %2057
        %2059 = vrot.lane.b32.xlu0 %v2034, 94
        %v2060 = vpop.permute.xlu0 %2059
        %2061 = vrot.lane.b32.xlu0 %v2035, 94
        %v2062 = vpop.permute.xlu0 %2061
        %vm2063 = vcmask 769024
        %v2064 = vsel %vm2063, %v2046, %v2048
        %v2065 = vsel %vm2063, %v2048, %v2050
        %v2066 = vsel %vm2063, %v2050, %v2052
        %v2067 = vsel %vm2063, %v2052, %v2054
        %v2068 = vsel %vm2063, %v2054, %v2056
        %v2069 = vsel %vm2063, %v2056, %v2058
        %v2070 = vsel %vm2063, %v2058, %v2060
        %v2071 = vsel %vm2063, %v2060, %v2062
        %v2080 = vadd.f32 %v2019, %v2064
        %v2081 = vadd.f32 %v2020, %v2065
        %v2082 = vadd.f32 %v2021, %v2066
        %v2083 = vadd.f32 %v2022, %v2067
        %v2084 = vadd.f32 %v2023, %v2068
        %v2085 = vadd.f32 %v2024, %v2069
        %v2086 = vadd.f32 %v2025, %v2070
        %v2087 = vadd.f32 %v2026, %v2071
        %v2088 = vld [vmem:[#allocation2 + $0x280] sm:$0xff]
        %v2089 = vld [vmem:[#allocation2 + $0x288] sm:$0xff]
        %v2090 = vld [vmem:[#allocation2 + $0x290] sm:$0xff]
        %v2091 = vld [vmem:[#allocation2 + $0x298] sm:$0xff]
        %v2092 = vld [vmem:[#allocation2 + $0x2a0] sm:$0xff]
        %v2093 = vld [vmem:[#allocation2 + $0x2a8] sm:$0xff]
        %v2094 = vld [vmem:[#allocation2 + $0x2b0] sm:$0xff]
        %v2095 = vld [vmem:[#allocation2 + $0x2b8] sm:$0xff]
        %v2096 = vld [vmem:[#allocation2 + $0x2c0] sm:$0xff]
        %2106 = vrot.lane.b32.xlu0 %v2088, 93
        %v2107 = vpop.permute.xlu0 %2106
        %2108 = vrot.lane.b32.xlu0 %v2089, 93
        %v2109 = vpop.permute.xlu0 %2108
        %2110 = vrot.lane.b32.xlu0 %v2090, 93
        %v2111 = vpop.permute.xlu0 %2110
        %2112 = vrot.lane.b32.xlu0 %v2091, 93
        %v2113 = vpop.permute.xlu0 %2112
        %2114 = vrot.lane.b32.xlu0 %v2092, 93
        %v2115 = vpop.permute.xlu0 %2114
        %2116 = vrot.lane.b32.xlu0 %v2093, 93
        %v2117 = vpop.permute.xlu0 %2116
        %2118 = vrot.lane.b32.xlu0 %v2094, 93
        %v2119 = vpop.permute.xlu0 %2118
        %2120 = vrot.lane.b32.xlu0 %v2095, 93
        %v2121 = vpop.permute.xlu0 %2120
        %2122 = vrot.lane.b32.xlu0 %v2096, 93
        %v2123 = vpop.permute.xlu0 %2122
        %vm2124 = vcmask 760832
        %v2125 = vsel %vm2124, %v2107, %v2109
        %v2126 = vsel %vm2124, %v2109, %v2111
        %v2127 = vsel %vm2124, %v2111, %v2113
        %v2128 = vsel %vm2124, %v2113, %v2115
        %v2129 = vsel %vm2124, %v2115, %v2117
        %v2130 = vsel %vm2124, %v2117, %v2119
        %v2131 = vsel %vm2124, %v2119, %v2121
        %v2132 = vsel %vm2124, %v2121, %v2123
        %v2141 = vadd.f32 %v2080, %v2125
        %v2142 = vadd.f32 %v2081, %v2126
        %v2143 = vadd.f32 %v2082, %v2127
        %v2144 = vadd.f32 %v2083, %v2128
        %v2145 = vadd.f32 %v2084, %v2129
        %v2146 = vadd.f32 %v2085, %v2130
        %v2147 = vadd.f32 %v2086, %v2131
        %v2148 = vadd.f32 %v2087, %v2132
        %v2149 = vld [vmem:[#allocation2 + $0x2d0] sm:$0xff]
        %v2150 = vld [vmem:[#allocation2 + $0x2d8] sm:$0xff]
        %v2151 = vld [vmem:[#allocation2 + $0x2e0] sm:$0xff]
        %v2152 = vld [vmem:[#allocation2 + $0x2e8] sm:$0xff]
        %v2153 = vld [vmem:[#allocation2 + $0x2f0] sm:$0xff]
        %v2154 = vld [vmem:[#allocation2 + $0x2f8] sm:$0xff]
        %v2155 = vld [vmem:[#allocation2 + $0x300] sm:$0xff]
        %v2156 = vld [vmem:[#allocation2 + $0x308] sm:$0xff]
        %v2157 = vld [vmem:[#allocation2 + $0x310] sm:$0xff]
        %2167 = vrot.lane.b32.xlu0 %v2149, 92
        %v2168 = vpop.permute.xlu0 %2167
        %2169 = vrot.lane.b32.xlu0 %v2150, 92
        %v2170 = vpop.permute.xlu0 %2169
        %2171 = vrot.lane.b32.xlu0 %v2151, 92
        %v2172 = vpop.permute.xlu0 %2171
        %2173 = vrot.lane.b32.xlu0 %v2152, 92
        %v2174 = vpop.permute.xlu0 %2173
        %2175 = vrot.lane.b32.xlu0 %v2153, 92
        %v2176 = vpop.permute.xlu0 %2175
        %2177 = vrot.lane.b32.xlu0 %v2154, 92
        %v2178 = vpop.permute.xlu0 %2177
        %2179 = vrot.lane.b32.xlu0 %v2155, 92
        %v2180 = vpop.permute.xlu0 %2179
        %2181 = vrot.lane.b32.xlu0 %v2156, 92
        %v2182 = vpop.permute.xlu0 %2181
        %2183 = vrot.lane.b32.xlu0 %v2157, 92
        %v2184 = vpop.permute.xlu0 %2183
        %vm2185 = vcmask 752640
        %v2186 = vsel %vm2185, %v2168, %v2170
        %v2187 = vsel %vm2185, %v2170, %v2172
        %v2188 = vsel %vm2185, %v2172, %v2174
        %v2189 = vsel %vm2185, %v2174, %v2176
        %v2190 = vsel %vm2185, %v2176, %v2178
        %v2191 = vsel %vm2185, %v2178, %v2180
        %v2192 = vsel %vm2185, %v2180, %v2182
        %v2193 = vsel %vm2185, %v2182, %v2184
        %v2202 = vadd.f32 %v2141, %v2186
        %v2203 = vadd.f32 %v2142, %v2187
        %v2204 = vadd.f32 %v2143, %v2188
        %v2205 = vadd.f32 %v2144, %v2189
        %v2206 = vadd.f32 %v2145, %v2190
        %v2207 = vadd.f32 %v2146, %v2191
        %v2208 = vadd.f32 %v2147, %v2192
        %v2209 = vadd.f32 %v2148, %v2193
        %v2210 = vld [vmem:[#allocation2 + $0x320] sm:$0xff]
        %v2211 = vld [vmem:[#allocation2 + $0x328] sm:$0xff]
        %v2212 = vld [vmem:[#allocation2 + $0x330] sm:$0xff]
        %v2213 = vld [vmem:[#allocation2 + $0x338] sm:$0xff]
        %v2214 = vld [vmem:[#allocation2 + $0x340] sm:$0xff]
        %v2215 = vld [vmem:[#allocation2 + $0x348] sm:$0xff]
        %v2216 = vld [vmem:[#allocation2 + $0x350] sm:$0xff]
        %v2217 = vld [vmem:[#allocation2 + $0x358] sm:$0xff]
        %v2218 = vld [vmem:[#allocation2 + $0x360] sm:$0xff]
        %2228 = vrot.lane.b32.xlu0 %v2210, 64
        %v2229 = vpop.permute.xlu0 %2228
        %2230 = vrot.lane.b32.xlu0 %v2211, 64
        %v2231 = vpop.permute.xlu0 %2230
        %2232 = vrot.lane.b32.xlu0 %v2212, 64
        %v2233 = vpop.permute.xlu0 %2232
        %2234 = vrot.lane.b32.xlu0 %v2213, 64
        %v2235 = vpop.permute.xlu0 %2234
        %2236 = vrot.lane.b32.xlu0 %v2214, 64
        %v2237 = vpop.permute.xlu0 %2236
        %2238 = vrot.lane.b32.xlu0 %v2215, 64
        %v2239 = vpop.permute.xlu0 %2238
        %2240 = vrot.lane.b32.xlu0 %v2216, 64
        %v2241 = vpop.permute.xlu0 %2240
        %2242 = vrot.lane.b32.xlu0 %v2217, 64
        %v2243 = vpop.permute.xlu0 %2242
        %2244 = vrot.lane.b32.xlu0 %v2218, 64
        %v2245 = vpop.permute.xlu0 %2244
        %vm2246 = vcmask 523264
        %v2247 = vsel %vm2246, %v2229, %v2231
        %v2248 = vsel %vm2246, %v2231, %v2233
        %v2249 = vsel %vm2246, %v2233, %v2235
        %v2250 = vsel %vm2246, %v2235, %v2237
        %v2251 = vsel %vm2246, %v2237, %v2239
        %v2252 = vsel %vm2246, %v2239, %v2241
        %v2253 = vsel %vm2246, %v2241, %v2243
        %v2254 = vsel %vm2246, %v2243, %v2245
        %v2263 = vadd.f32 %v2202, %v2247
        %v2264 = vadd.f32 %v2203, %v2248
        %v2265 = vadd.f32 %v2204, %v2249
        %v2266 = vadd.f32 %v2205, %v2250
        %v2267 = vadd.f32 %v2206, %v2251
        %v2268 = vadd.f32 %v2207, %v2252
        %v2269 = vadd.f32 %v2208, %v2253
        %v2270 = vadd.f32 %v2209, %v2254
        %v2271 = vld [vmem:[#allocation2 + $0x370] sm:$0xff]
        %v2272 = vld [vmem:[#allocation2 + $0x378] sm:$0xff]
        %v2273 = vld [vmem:[#allocation2 + $0x380] sm:$0xff]
        %v2274 = vld [vmem:[#allocation2 + $0x388] sm:$0xff]
        %v2275 = vld [vmem:[#allocation2 + $0x390] sm:$0xff]
        %v2276 = vld [vmem:[#allocation2 + $0x398] sm:$0xff]
        %v2277 = vld [vmem:[#allocation2 + $0x3a0] sm:$0xff]
        %v2278 = vld [vmem:[#allocation2 + $0x3a8] sm:$0xff]
        %v2279 = vld [vmem:[#allocation2 + $0x3b0] sm:$0xff]
        %2289 = vrot.lane.b32.xlu0 %v2271, 63
        %v2290 = vpop.permute.xlu0 %2289
        %2291 = vrot.lane.b32.xlu0 %v2272, 63
        %v2292 = vpop.permute.xlu0 %2291
        %2293 = vrot.lane.b32.xlu0 %v2273, 63
        %v2294 = vpop.permute.xlu0 %2293
        %2295 = vrot.lane.b32.xlu0 %v2274, 63
        %v2296 = vpop.permute.xlu0 %2295
        %2297 = vrot.lane.b32.xlu0 %v2275, 63
        %v2298 = vpop.permute.xlu0 %2297
        %2299 = vrot.lane.b32.xlu0 %v2276, 63
        %v2300 = vpop.permute.xlu0 %2299
        %2301 = vrot.lane.b32.xlu0 %v2277, 63
        %v2302 = vpop.permute.xlu0 %2301
        %2303 = vrot.lane.b32.xlu0 %v2278, 63
        %v2304 = vpop.permute.xlu0 %2303
        %2305 = vrot.lane.b32.xlu0 %v2279, 63
        %v2306 = vpop.permute.xlu0 %2305
        %vm2307 = vcmask 515072
        %v2308 = vsel %vm2307, %v2290, %v2292
        %v2309 = vsel %vm2307, %v2292, %v2294
        %v2310 = vsel %vm2307, %v2294, %v2296
        %v2311 = vsel %vm2307, %v2296, %v2298
        %v2312 = vsel %vm2307, %v2298, %v2300
        %v2313 = vsel %vm2307, %v2300, %v2302
        %v2314 = vsel %vm2307, %v2302, %v2304
        %v2315 = vsel %vm2307, %v2304, %v2306
        %v2324 = vadd.f32 %v2263, %v2308
        %v2325 = vadd.f32 %v2264, %v2309
        %v2326 = vadd.f32 %v2265, %v2310
        %v2327 = vadd.f32 %v2266, %v2311
        %v2328 = vadd.f32 %v2267, %v2312
        %v2329 = vadd.f32 %v2268, %v2313
        %v2330 = vadd.f32 %v2269, %v2314
        %v2331 = vadd.f32 %v2270, %v2315
        %v2332 = vld [vmem:[#allocation2 + $0x3c0] sm:$0xff]
        %v2333 = vld [vmem:[#allocation2 + $0x3c8] sm:$0xff]
        %v2334 = vld [vmem:[#allocation2 + $0x3d0] sm:$0xff]
        %v2335 = vld [vmem:[#allocation2 + $0x3d8] sm:$0xff]
        %v2336 = vld [vmem:[#allocation2 + $0x3e0] sm:$0xff]
        %v2337 = vld [vmem:[#allocation2 + $0x3e8] sm:$0xff]
        %v2338 = vld [vmem:[#allocation2 + $0x3f0] sm:$0xff]
        %v2339 = vld [vmem:[#allocation2 + $0x3f8] sm:$0xff]
        %v2340 = vld [vmem:[#allocation2 + $0x400] sm:$0xff]
        %2350 = vrot.lane.b32.xlu0 %v2332, 62
        %v2351 = vpop.permute.xlu0 %2350
        %2352 = vrot.lane.b32.xlu0 %v2333, 62
        %v2353 = vpop.permute.xlu0 %2352
        %2354 = vrot.lane.b32.xlu0 %v2334, 62
        %v2355 = vpop.permute.xlu0 %2354
        %2356 = vrot.lane.b32.xlu0 %v2335, 62
        %v2357 = vpop.permute.xlu0 %2356
        %2358 = vrot.lane.b32.xlu0 %v2336, 62
        %v2359 = vpop.permute.xlu0 %2358
        %2360 = vrot.lane.b32.xlu0 %v2337, 62
        %v2361 = vpop.permute.xlu0 %2360
        %2362 = vrot.lane.b32.xlu0 %v2338, 62
        %v2363 = vpop.permute.xlu0 %2362
        %2364 = vrot.lane.b32.xlu0 %v2339, 62
        %v2365 = vpop.permute.xlu0 %2364
        %2366 = vrot.lane.b32.xlu0 %v2340, 62
        %v2367 = vpop.permute.xlu0 %2366
        %vm2368 = vcmask 506880
        %v2369 = vsel %vm2368, %v2351, %v2353
        %v2370 = vsel %vm2368, %v2353, %v2355
        %v2371 = vsel %vm2368, %v2355, %v2357
        %v2372 = vsel %vm2368, %v2357, %v2359
        %v2373 = vsel %vm2368, %v2359, %v2361
        %v2374 = vsel %vm2368, %v2361, %v2363
        %v2375 = vsel %vm2368, %v2363, %v2365
        %v2376 = vsel %vm2368, %v2365, %v2367
        %v2385 = vadd.f32 %v2324, %v2369
        %v2386 = vadd.f32 %v2325, %v2370
        %v2387 = vadd.f32 %v2326, %v2371
        %v2388 = vadd.f32 %v2327, %v2372
        %v2389 = vadd.f32 %v2328, %v2373
        %v2390 = vadd.f32 %v2329, %v2374
        %v2391 = vadd.f32 %v2330, %v2375
        %v2392 = vadd.f32 %v2331, %v2376
        %v2393 = vld [vmem:[#allocation2 + $0x410] sm:$0xff]
        %v2394 = vld [vmem:[#allocation2 + $0x418] sm:$0xff]
        %v2395 = vld [vmem:[#allocation2 + $0x420] sm:$0xff]
        %v2396 = vld [vmem:[#allocation2 + $0x428] sm:$0xff]
        %v2397 = vld [vmem:[#allocation2 + $0x430] sm:$0xff]
        %v2398 = vld [vmem:[#allocation2 + $0x438] sm:$0xff]
        %v2399 = vld [vmem:[#allocation2 + $0x440] sm:$0xff]
        %v2400 = vld [vmem:[#allocation2 + $0x448] sm:$0xff]
        %v2401 = vld [vmem:[#allocation2 + $0x450] sm:$0xff]
        %2411 = vrot.lane.b32.xlu0 %v2393, 61
        %v2412 = vpop.permute.xlu0 %2411
        %2413 = vrot.lane.b32.xlu0 %v2394, 61
        %v2414 = vpop.permute.xlu0 %2413
        %2415 = vrot.lane.b32.xlu0 %v2395, 61
        %v2416 = vpop.permute.xlu0 %2415
        %2417 = vrot.lane.b32.xlu0 %v2396, 61
        %v2418 = vpop.permute.xlu0 %2417
        %2419 = vrot.lane.b32.xlu0 %v2397, 61
        %v2420 = vpop.permute.xlu0 %2419
        %2421 = vrot.lane.b32.xlu0 %v2398, 61
        %v2422 = vpop.permute.xlu0 %2421
        %2423 = vrot.lane.b32.xlu0 %v2399, 61
        %v2424 = vpop.permute.xlu0 %2423
        %2425 = vrot.lane.b32.xlu0 %v2400, 61
        %v2426 = vpop.permute.xlu0 %2425
        %2427 = vrot.lane.b32.xlu0 %v2401, 61
        %v2428 = vpop.permute.xlu0 %2427
        %vm2429 = vcmask 498688
        %v2430 = vsel %vm2429, %v2412, %v2414
        %v2431 = vsel %vm2429, %v2414, %v2416
        %v2432 = vsel %vm2429, %v2416, %v2418
        %v2433 = vsel %vm2429, %v2418, %v2420
        %v2434 = vsel %vm2429, %v2420, %v2422
        %v2435 = vsel %vm2429, %v2422, %v2424
        %v2436 = vsel %vm2429, %v2424, %v2426
        %v2437 = vsel %vm2429, %v2426, %v2428
        %v2446 = vadd.f32 %v2385, %v2430
        %v2447 = vadd.f32 %v2386, %v2431
        %v2448 = vadd.f32 %v2387, %v2432
        %v2449 = vadd.f32 %v2388, %v2433
        %v2450 = vadd.f32 %v2389, %v2434
        %v2451 = vadd.f32 %v2390, %v2435
        %v2452 = vadd.f32 %v2391, %v2436
        %v2453 = vadd.f32 %v2392, %v2437
        %v2454 = vld [vmem:[#allocation2 + $0x460] sm:$0xff]
        %v2455 = vld [vmem:[#allocation2 + $0x468] sm:$0xff]
        %v2456 = vld [vmem:[#allocation2 + $0x470] sm:$0xff]
        %v2457 = vld [vmem:[#allocation2 + $0x478] sm:$0xff]
        %v2458 = vld [vmem:[#allocation2 + $0x480] sm:$0xff]
        %v2459 = vld [vmem:[#allocation2 + $0x488] sm:$0xff]
        %v2460 = vld [vmem:[#allocation2 + $0x490] sm:$0xff]
        %v2461 = vld [vmem:[#allocation2 + $0x498] sm:$0xff]
        %v2462 = vld [vmem:[#allocation2 + $0x4a0] sm:$0xff]
        %2472 = vrot.lane.b32.xlu0 %v2454, 60
        %v2473 = vpop.permute.xlu0 %2472
        %2474 = vrot.lane.b32.xlu0 %v2455, 60
        %v2475 = vpop.permute.xlu0 %2474
        %2476 = vrot.lane.b32.xlu0 %v2456, 60
        %v2477 = vpop.permute.xlu0 %2476
        %2478 = vrot.lane.b32.xlu0 %v2457, 60
        %v2479 = vpop.permute.xlu0 %2478
        %2480 = vrot.lane.b32.xlu0 %v2458, 60
        %v2481 = vpop.permute.xlu0 %2480
        %2482 = vrot.lane.b32.xlu0 %v2459, 60
        %v2483 = vpop.permute.xlu0 %2482
        %2484 = vrot.lane.b32.xlu0 %v2460, 60
        %v2485 = vpop.permute.xlu0 %2484
        %2486 = vrot.lane.b32.xlu0 %v2461, 60
        %v2487 = vpop.permute.xlu0 %2486
        %2488 = vrot.lane.b32.xlu0 %v2462, 60
        %v2489 = vpop.permute.xlu0 %2488
        %vm2490 = vcmask 490496
        %v2491 = vsel %vm2490, %v2473, %v2475
        %v2492 = vsel %vm2490, %v2475, %v2477
        %v2493 = vsel %vm2490, %v2477, %v2479
        %v2494 = vsel %vm2490, %v2479, %v2481
        %v2495 = vsel %vm2490, %v2481, %v2483
        %v2496 = vsel %vm2490, %v2483, %v2485
        %v2497 = vsel %vm2490, %v2485, %v2487
        %v2498 = vsel %vm2490, %v2487, %v2489
        %v2507 = vadd.f32 %v2446, %v2491
        %v2508 = vadd.f32 %v2447, %v2492
        %v2509 = vadd.f32 %v2448, %v2493
        %v2510 = vadd.f32 %v2449, %v2494
        %v2511 = vadd.f32 %v2450, %v2495
        %v2512 = vadd.f32 %v2451, %v2496
        %v2513 = vadd.f32 %v2452, %v2497
        %v2514 = vadd.f32 %v2453, %v2498
        %v2515 = vld [vmem:[#allocation2 + $0x4b0] sm:$0xff]
        %v2516 = vld [vmem:[#allocation2 + $0x4b8] sm:$0xff]
        %v2517 = vld [vmem:[#allocation2 + $0x4c0] sm:$0xff]
        %v2518 = vld [vmem:[#allocation2 + $0x4c8] sm:$0xff]
        %v2519 = vld [vmem:[#allocation2 + $0x4d0] sm:$0xff]
        %v2520 = vld [vmem:[#allocation2 + $0x4d8] sm:$0xff]
        %v2521 = vld [vmem:[#allocation2 + $0x4e0] sm:$0xff]
        %v2522 = vld [vmem:[#allocation2 + $0x4e8] sm:$0xff]
        %v2523 = vld [vmem:[#allocation2 + $0x4f0] sm:$0xff]
        %2533 = vrot.lane.b32.xlu0 %v2515, 32
        %v2534 = vpop.permute.xlu0 %2533
        %2535 = vrot.lane.b32.xlu0 %v2516, 32
        %v2536 = vpop.permute.xlu0 %2535
        %2537 = vrot.lane.b32.xlu0 %v2517, 32
        %v2538 = vpop.permute.xlu0 %2537
        %2539 = vrot.lane.b32.xlu0 %v2518, 32
        %v2540 = vpop.permute.xlu0 %2539
        %2541 = vrot.lane.b32.xlu0 %v2519, 32
        %v2542 = vpop.permute.xlu0 %2541
        %2543 = vrot.lane.b32.xlu0 %v2520, 32
        %v2544 = vpop.permute.xlu0 %2543
        %2545 = vrot.lane.b32.xlu0 %v2521, 32
        %v2546 = vpop.permute.xlu0 %2545
        %2547 = vrot.lane.b32.xlu0 %v2522, 32
        %v2548 = vpop.permute.xlu0 %2547
        %2549 = vrot.lane.b32.xlu0 %v2523, 32
        %v2550 = vpop.permute.xlu0 %2549
        %vm2551 = vcmask 261120
        %v2552 = vsel %vm2551, %v2534, %v2536
        %v2553 = vsel %vm2551, %v2536, %v2538
        %v2554 = vsel %vm2551, %v2538, %v2540
        %v2555 = vsel %vm2551, %v2540, %v2542
        %v2556 = vsel %vm2551, %v2542, %v2544
        %v2557 = vsel %vm2551, %v2544, %v2546
        %v2558 = vsel %vm2551, %v2546, %v2548
        %v2559 = vsel %vm2551, %v2548, %v2550
        %v2568 = vadd.f32 %v2507, %v2552
        %v2569 = vadd.f32 %v2508, %v2553
        %v2570 = vadd.f32 %v2509, %v2554
        %v2571 = vadd.f32 %v2510, %v2555
        %v2572 = vadd.f32 %v2511, %v2556
        %v2573 = vadd.f32 %v2512, %v2557
        %v2574 = vadd.f32 %v2513, %v2558
        %v2575 = vadd.f32 %v2514, %v2559
        %v2576 = vld [vmem:[#allocation2 + $0x500] sm:$0xff]
        %v2577 = vld [vmem:[#allocation2 + $0x508] sm:$0xff]
        %v2578 = vld [vmem:[#allocation2 + $0x510] sm:$0xff]
        %v2579 = vld [vmem:[#allocation2 + $0x518] sm:$0xff]
        %v2580 = vld [vmem:[#allocation2 + $0x520] sm:$0xff]
        %v2581 = vld [vmem:[#allocation2 + $0x528] sm:$0xff]
        %v2582 = vld [vmem:[#allocation2 + $0x530] sm:$0xff]
        %v2583 = vld [vmem:[#allocation2 + $0x538] sm:$0xff]
        %v2584 = vld [vmem:[#allocation2 + $0x540] sm:$0xff]
        %2594 = vrot.lane.b32.xlu0 %v2576, 31
        %v2595 = vpop.permute.xlu0 %2594
        %2596 = vrot.lane.b32.xlu0 %v2577, 31
        %v2597 = vpop.permute.xlu0 %2596
        %2598 = vrot.lane.b32.xlu0 %v2578, 31
        %v2599 = vpop.permute.xlu0 %2598
        %2600 = vrot.lane.b32.xlu0 %v2579, 31
        %v2601 = vpop.permute.xlu0 %2600
        %2602 = vrot.lane.b32.xlu0 %v2580, 31
        %v2603 = vpop.permute.xlu0 %2602
        %2604 = vrot.lane.b32.xlu0 %v2581, 31
        %v2605 = vpop.permute.xlu0 %2604
        %2606 = vrot.lane.b32.xlu0 %v2582, 31
        %v2607 = vpop.permute.xlu0 %2606
        %2608 = vrot.lane.b32.xlu0 %v2583, 31
        %v2609 = vpop.permute.xlu0 %2608
        %2610 = vrot.lane.b32.xlu0 %v2584, 31
        %v2611 = vpop.permute.xlu0 %2610
        %vm2612 = vcmask 252928
        %v2613 = vsel %vm2612, %v2595, %v2597
        %v2614 = vsel %vm2612, %v2597, %v2599
        %v2615 = vsel %vm2612, %v2599, %v2601
        %v2616 = vsel %vm2612, %v2601, %v2603
        %v2617 = vsel %vm2612, %v2603, %v2605
        %v2618 = vsel %vm2612, %v2605, %v2607
        %v2619 = vsel %vm2612, %v2607, %v2609
        %v2620 = vsel %vm2612, %v2609, %v2611
        %v2629 = vadd.f32 %v2568, %v2613
        %v2630 = vadd.f32 %v2569, %v2614
        %v2631 = vadd.f32 %v2570, %v2615
        %v2632 = vadd.f32 %v2571, %v2616
        %v2633 = vadd.f32 %v2572, %v2617
        %v2634 = vadd.f32 %v2573, %v2618
        %v2635 = vadd.f32 %v2574, %v2619
        %v2636 = vadd.f32 %v2575, %v2620
        %v2637 = vld [vmem:[#allocation2 + $0x550] sm:$0xff]
        %v2638 = vld [vmem:[#allocation2 + $0x558] sm:$0xff]
        %v2639 = vld [vmem:[#allocation2 + $0x560] sm:$0xff]
        %v2640 = vld [vmem:[#allocation2 + $0x568] sm:$0xff]
        %v2641 = vld [vmem:[#allocation2 + $0x570] sm:$0xff]
        %v2642 = vld [vmem:[#allocation2 + $0x578] sm:$0xff]
        %v2643 = vld [vmem:[#allocation2 + $0x580] sm:$0xff]
        %v2644 = vld [vmem:[#allocation2 + $0x588] sm:$0xff]
        %v2645 = vld [vmem:[#allocation2 + $0x590] sm:$0xff]
        %2655 = vrot.lane.b32.xlu0 %v2637, 30
        %v2656 = vpop.permute.xlu0 %2655
        %2657 = vrot.lane.b32.xlu0 %v2638, 30
        %v2658 = vpop.permute.xlu0 %2657
        %2659 = vrot.lane.b32.xlu0 %v2639, 30
        %v2660 = vpop.permute.xlu0 %2659
        %2661 = vrot.lane.b32.xlu0 %v2640, 30
        %v2662 = vpop.permute.xlu0 %2661
        %2663 = vrot.lane.b32.xlu0 %v2641, 30
        %v2664 = vpop.permute.xlu0 %2663
        %2665 = vrot.lane.b32.xlu0 %v2642, 30
        %v2666 = vpop.permute.xlu0 %2665
        %2667 = vrot.lane.b32.xlu0 %v2643, 30
        %v2668 = vpop.permute.xlu0 %2667
        %2669 = vrot.lane.b32.xlu0 %v2644, 30
        %v2670 = vpop.permute.xlu0 %2669
        %2671 = vrot.lane.b32.xlu0 %v2645, 30
        %v2672 = vpop.permute.xlu0 %2671
        %vm2673 = vcmask 244736
        %v2674 = vsel %vm2673, %v2656, %v2658
        %v2675 = vsel %vm2673, %v2658, %v2660
        %v2676 = vsel %vm2673, %v2660, %v2662
        %v2677 = vsel %vm2673, %v2662, %v2664
        %v2678 = vsel %vm2673, %v2664, %v2666
        %v2679 = vsel %vm2673, %v2666, %v2668
        %v2680 = vsel %vm2673, %v2668, %v2670
        %v2681 = vsel %vm2673, %v2670, %v2672
        %v2690 = vadd.f32 %v2629, %v2674
        %v2691 = vadd.f32 %v2630, %v2675
        %v2692 = vadd.f32 %v2631, %v2676
        %v2693 = vadd.f32 %v2632, %v2677
        %v2694 = vadd.f32 %v2633, %v2678
        %v2695 = vadd.f32 %v2634, %v2679
        %v2696 = vadd.f32 %v2635, %v2680
        %v2697 = vadd.f32 %v2636, %v2681
        %v2698 = vld [vmem:[#allocation2 + $0x5a0] sm:$0xff]
        %v2699 = vld [vmem:[#allocation2 + $0x5a8] sm:$0xff]
        %v2700 = vld [vmem:[#allocation2 + $0x5b0] sm:$0xff]
        %v2701 = vld [vmem:[#allocation2 + $0x5b8] sm:$0xff]
        %v2702 = vld [vmem:[#allocation2 + $0x5c0] sm:$0xff]
        %v2703 = vld [vmem:[#allocation2 + $0x5c8] sm:$0xff]
        %v2704 = vld [vmem:[#allocation2 + $0x5d0] sm:$0xff]
        %v2705 = vld [vmem:[#allocation2 + $0x5d8] sm:$0xff]
        %v2706 = vld [vmem:[#allocation2 + $0x5e0] sm:$0xff]
        %2716 = vrot.lane.b32.xlu0 %v2698, 29
        %v2717 = vpop.permute.xlu0 %2716
        %2718 = vrot.lane.b32.xlu0 %v2699, 29
        %v2719 = vpop.permute.xlu0 %2718
        %2720 = vrot.lane.b32.xlu0 %v2700, 29
        %v2721 = vpop.permute.xlu0 %2720
        %2722 = vrot.lane.b32.xlu0 %v2701, 29
        %v2723 = vpop.permute.xlu0 %2722
        %2724 = vrot.lane.b32.xlu0 %v2702, 29
        %v2725 = vpop.permute.xlu0 %2724
        %2726 = vrot.lane.b32.xlu0 %v2703, 29
        %v2727 = vpop.permute.xlu0 %2726
        %2728 = vrot.lane.b32.xlu0 %v2704, 29
        %v2729 = vpop.permute.xlu0 %2728
        %2730 = vrot.lane.b32.xlu0 %v2705, 29
        %v2731 = vpop.permute.xlu0 %2730
        %2732 = vrot.lane.b32.xlu0 %v2706, 29
        %v2733 = vpop.permute.xlu0 %2732
        %vm2734 = vcmask 236544
        %v2735 = vsel %vm2734, %v2717, %v2719
        %v2736 = vsel %vm2734, %v2719, %v2721
        %v2737 = vsel %vm2734, %v2721, %v2723
        %v2738 = vsel %vm2734, %v2723, %v2725
        %v2739 = vsel %vm2734, %v2725, %v2727
        %v2740 = vsel %vm2734, %v2727, %v2729
        %v2741 = vsel %vm2734, %v2729, %v2731
        %v2742 = vsel %vm2734, %v2731, %v2733
        %v2751 = vadd.f32 %v2690, %v2735
        %v2752 = vadd.f32 %v2691, %v2736
        %v2753 = vadd.f32 %v2692, %v2737
        %v2754 = vadd.f32 %v2693, %v2738
        %v2755 = vadd.f32 %v2694, %v2739
        %v2756 = vadd.f32 %v2695, %v2740
        %v2757 = vadd.f32 %v2696, %v2741
        %v2758 = vadd.f32 %v2697, %v2742
        %v2759 = vld [vmem:[#allocation2 + $0x5f0] sm:$0xff]
        %v2760 = vld [vmem:[#allocation2 + $0x5f8] sm:$0xff]
        %v2761 = vld [vmem:[#allocation2 + $0x600] sm:$0xff]
        %v2762 = vld [vmem:[#allocation2 + $0x608] sm:$0xff]
        %v2763 = vld [vmem:[#allocation2 + $0x610] sm:$0xff]
        %v2764 = vld [vmem:[#allocation2 + $0x618] sm:$0xff]
        %v2765 = vld [vmem:[#allocation2 + $0x620] sm:$0xff]
        %v2766 = vld [vmem:[#allocation2 + $0x628] sm:$0xff]
        %v2767 = vld [vmem:[#allocation2 + $0x630] sm:$0xff]
        %2777 = vrot.lane.b32.xlu0 %v2759, 28
        %v2778 = vpop.permute.xlu0 %2777
        %2779 = vrot.lane.b32.xlu0 %v2760, 28
        %v2780 = vpop.permute.xlu0 %2779
        %2781 = vrot.lane.b32.xlu0 %v2761, 28
        %v2782 = vpop.permute.xlu0 %2781
        %2783 = vrot.lane.b32.xlu0 %v2762, 28
        %v2784 = vpop.permute.xlu0 %2783
        %2785 = vrot.lane.b32.xlu0 %v2763, 28
        %v2786 = vpop.permute.xlu0 %2785
        %2787 = vrot.lane.b32.xlu0 %v2764, 28
        %v2788 = vpop.permute.xlu0 %2787
        %2789 = vrot.lane.b32.xlu0 %v2765, 28
        %v2790 = vpop.permute.xlu0 %2789
        %2791 = vrot.lane.b32.xlu0 %v2766, 28
        %v2792 = vpop.permute.xlu0 %2791
        %2793 = vrot.lane.b32.xlu0 %v2767, 28
        %v2794 = vpop.permute.xlu0 %2793
        %vm2795 = vcmask 228352
        %v2796 = vsel %vm2795, %v2778, %v2780
        %v2797 = vsel %vm2795, %v2780, %v2782
        %v2798 = vsel %vm2795, %v2782, %v2784
        %v2799 = vsel %vm2795, %v2784, %v2786
        %v2800 = vsel %vm2795, %v2786, %v2788
        %v2801 = vsel %vm2795, %v2788, %v2790
        %v2802 = vsel %vm2795, %v2790, %v2792
        %v2803 = vsel %vm2795, %v2792, %v2794
        %v2812 = vadd.f32 %v2751, %v2796
        %v2813 = vadd.f32 %v2752, %v2797
        %v2814 = vadd.f32 %v2753, %v2798
        %v2815 = vadd.f32 %v2754, %v2799
        %v2816 = vadd.f32 %v2755, %v2800
        %v2817 = vadd.f32 %v2756, %v2801
        %v2818 = vadd.f32 %v2757, %v2802
        %v2819 = vadd.f32 %v2758, %v2803
        %v2820 = vld [vmem:[#allocation2 + $0x648] sm:$0xff]
        %v2821 = vld [vmem:[#allocation2 + $0x650] sm:$0xff]
        %v2822 = vld [vmem:[#allocation2 + $0x658] sm:$0xff]
        %v2823 = vld [vmem:[#allocation2 + $0x660] sm:$0xff]
        %v2824 = vld [vmem:[#allocation2 + $0x668] sm:$0xff]
        %v2825 = vld [vmem:[#allocation2 + $0x670] sm:$0xff]
        %v2826 = vld [vmem:[#allocation2 + $0x678] sm:$0xff]
        %v2827 = vld [vmem:[#allocation2 + $0x680] sm:$0xff]
        %v2828 = vadd.f32 %v2812, %v2820
        %v2829 = vadd.f32 %v2813, %v2821
        %v2830 = vadd.f32 %v2814, %v2822
        %v2831 = vadd.f32 %v2815, %v2823
        %v2832 = vadd.f32 %v2816, %v2824
        %v2833 = vadd.f32 %v2817, %v2825
        %v2834 = vadd.f32 %v2818, %v2826
        %v2835 = vadd.f32 %v2819, %v2827
        %v2836 = vld [vmem:[#allocation2 + $0x698] sm:$0xff]
        %v2837 = vld [vmem:[#allocation2 + $0x6a0] sm:$0xff]
        %v2838 = vld [vmem:[#allocation2 + $0x6a8] sm:$0xff]
        %v2839 = vld [vmem:[#allocation2 + $0x6b0] sm:$0xff]
        %v2840 = vld [vmem:[#allocation2 + $0x6b8] sm:$0xff]
        %v2841 = vld [vmem:[#allocation2 + $0x6c0] sm:$0xff]
        %v2842 = vld [vmem:[#allocation2 + $0x6c8] sm:$0xff]
        %v2843 = vld [vmem:[#allocation2 + $0x6d0] sm:$0xff]
        %v2844 = vld [vmem:[#allocation2 + $0x6d8] sm:$0xff]
        %2854 = vrot.lane.b32.xlu0 %v2836, 127
        %v2855 = vpop.permute.xlu0 %2854
        %2856 = vrot.lane.b32.xlu0 %v2837, 127
        %v2857 = vpop.permute.xlu0 %2856
        %2858 = vrot.lane.b32.xlu0 %v2838, 127
        %v2859 = vpop.permute.xlu0 %2858
        %2860 = vrot.lane.b32.xlu0 %v2839, 127
        %v2861 = vpop.permute.xlu0 %2860
        %2862 = vrot.lane.b32.xlu0 %v2840, 127
        %v2863 = vpop.permute.xlu0 %2862
        %2864 = vrot.lane.b32.xlu0 %v2841, 127
        %v2865 = vpop.permute.xlu0 %2864
        %2866 = vrot.lane.b32.xlu0 %v2842, 127
        %v2867 = vpop.permute.xlu0 %2866
        %2868 = vrot.lane.b32.xlu0 %v2843, 127
        %v2869 = vpop.permute.xlu0 %2868
        %2870 = vrot.lane.b32.xlu0 %v2844, 127
        %v2871 = vpop.permute.xlu0 %2870
        %v2872 = vsel %vm1697, %v2855, %v2857
        %v2873 = vsel %vm1697, %v2857, %v2859
        %v2874 = vsel %vm1697, %v2859, %v2861
        %v2875 = vsel %vm1697, %v2861, %v2863
        %v2876 = vsel %vm1697, %v2863, %v2865
        %v2877 = vsel %vm1697, %v2865, %v2867
        %v2878 = vsel %vm1697, %v2867, %v2869
        %v2879 = vsel %vm1697, %v2869, %v2871
        %v2888 = vadd.f32 %v2828, %v2872
        %v2889 = vadd.f32 %v2829, %v2873
        %v2890 = vadd.f32 %v2830, %v2874
        %v2891 = vadd.f32 %v2831, %v2875
        %v2892 = vadd.f32 %v2832, %v2876
        %v2893 = vadd.f32 %v2833, %v2877
        %v2894 = vadd.f32 %v2834, %v2878
        %v2895 = vadd.f32 %v2835, %v2879
        %v2896 = vld [vmem:[#allocation2 + $0x6e8] sm:$0xff]
        %v2897 = vld [vmem:[#allocation2 + $0x6f0] sm:$0xff]
        %v2898 = vld [vmem:[#allocation2 + $0x6f8] sm:$0xff]
        %v2899 = vld [vmem:[#allocation2 + $0x700] sm:$0xff]
        %v2900 = vld [vmem:[#allocation2 + $0x708] sm:$0xff]
        %v2901 = vld [vmem:[#allocation2 + $0x710] sm:$0xff]
        %v2902 = vld [vmem:[#allocation2 + $0x718] sm:$0xff]
        %v2903 = vld [vmem:[#allocation2 + $0x720] sm:$0xff]
        %v2904 = vld [vmem:[#allocation2 + $0x728] sm:$0xff]
        %2914 = vrot.lane.b32.xlu0 %v2896, 126
        %v2915 = vpop.permute.xlu0 %2914
        %2916 = vrot.lane.b32.xlu0 %v2897, 126
        %v2917 = vpop.permute.xlu0 %2916
        %2918 = vrot.lane.b32.xlu0 %v2898, 126
        %v2919 = vpop.permute.xlu0 %2918
        %2920 = vrot.lane.b32.xlu0 %v2899, 126
        %v2921 = vpop.permute.xlu0 %2920
        %2922 = vrot.lane.b32.xlu0 %v2900, 126
        %v2923 = vpop.permute.xlu0 %2922
        %2924 = vrot.lane.b32.xlu0 %v2901, 126
        %v2925 = vpop.permute.xlu0 %2924
        %2926 = vrot.lane.b32.xlu0 %v2902, 126
        %v2927 = vpop.permute.xlu0 %2926
        %2928 = vrot.lane.b32.xlu0 %v2903, 126
        %v2929 = vpop.permute.xlu0 %2928
        %2930 = vrot.lane.b32.xlu0 %v2904, 126
        %v2931 = vpop.permute.xlu0 %2930
        %v2932 = vsel %vm1758, %v2915, %v2917
        %v2933 = vsel %vm1758, %v2917, %v2919
        %v2934 = vsel %vm1758, %v2919, %v2921
        %v2935 = vsel %vm1758, %v2921, %v2923
        %v2936 = vsel %vm1758, %v2923, %v2925
        %v2937 = vsel %vm1758, %v2925, %v2927
        %v2938 = vsel %vm1758, %v2927, %v2929
        %v2939 = vsel %vm1758, %v2929, %v2931
        %v2948 = vadd.f32 %v2888, %v2932
        %v2949 = vadd.f32 %v2889, %v2933
        %v2950 = vadd.f32 %v2890, %v2934
        %v2951 = vadd.f32 %v2891, %v2935
        %v2952 = vadd.f32 %v2892, %v2936
        %v2953 = vadd.f32 %v2893, %v2937
        %v2954 = vadd.f32 %v2894, %v2938
        %v2955 = vadd.f32 %v2895, %v2939
        %v2956 = vld [vmem:[#allocation2 + $0x738] sm:$0xff]
        %v2957 = vld [vmem:[#allocation2 + $0x740] sm:$0xff]
        %v2958 = vld [vmem:[#allocation2 + $0x748] sm:$0xff]
        %v2959 = vld [vmem:[#allocation2 + $0x750] sm:$0xff]
        %v2960 = vld [vmem:[#allocation2 + $0x758] sm:$0xff]
        %v2961 = vld [vmem:[#allocation2 + $0x760] sm:$0xff]
        %v2962 = vld [vmem:[#allocation2 + $0x768] sm:$0xff]
        %v2963 = vld [vmem:[#allocation2 + $0x770] sm:$0xff]
        %v2964 = vld [vmem:[#allocation2 + $0x778] sm:$0xff]
        %2974 = vrot.lane.b32.xlu0 %v2956, 125
        %v2975 = vpop.permute.xlu0 %2974
        %2976 = vrot.lane.b32.xlu0 %v2957, 125
        %v2977 = vpop.permute.xlu0 %2976
        %2978 = vrot.lane.b32.xlu0 %v2958, 125
        %v2979 = vpop.permute.xlu0 %2978
        %2980 = vrot.lane.b32.xlu0 %v2959, 125
        %v2981 = vpop.permute.xlu0 %2980
        %2982 = vrot.lane.b32.xlu0 %v2960, 125
        %v2983 = vpop.permute.xlu0 %2982
        %2984 = vrot.lane.b32.xlu0 %v2961, 125
        %v2985 = vpop.permute.xlu0 %2984
        %2986 = vrot.lane.b32.xlu0 %v2962, 125
        %v2987 = vpop.permute.xlu0 %2986
        %2988 = vrot.lane.b32.xlu0 %v2963, 125
        %v2989 = vpop.permute.xlu0 %2988
        %2990 = vrot.lane.b32.xlu0 %v2964, 125
        %v2991 = vpop.permute.xlu0 %2990
        %v2992 = vsel %vm1819, %v2975, %v2977
        %v2993 = vsel %vm1819, %v2977, %v2979
        %v2994 = vsel %vm1819, %v2979, %v2981
        %v2995 = vsel %vm1819, %v2981, %v2983
        %v2996 = vsel %vm1819, %v2983, %v2985
        %v2997 = vsel %vm1819, %v2985, %v2987
        %v2998 = vsel %vm1819, %v2987, %v2989
        %v2999 = vsel %vm1819, %v2989, %v2991
        %v3008 = vadd.f32 %v2948, %v2992
        %v3009 = vadd.f32 %v2949, %v2993
        %v3010 = vadd.f32 %v2950, %v2994
        %v3011 = vadd.f32 %v2951, %v2995
        %v3012 = vadd.f32 %v2952, %v2996
        %v3013 = vadd.f32 %v2953, %v2997
        %v3014 = vadd.f32 %v2954, %v2998
        %v3015 = vadd.f32 %v2955, %v2999
        %v3016 = vld [vmem:[#allocation2 + $0x788] sm:$0xff]
        %v3017 = vld [vmem:[#allocation2 + $0x790] sm:$0xff]
        %v3018 = vld [vmem:[#allocation2 + $0x798] sm:$0xff]
        %v3019 = vld [vmem:[#allocation2 + $0x7a0] sm:$0xff]
        %v3020 = vld [vmem:[#allocation2 + $0x7a8] sm:$0xff]
        %v3021 = vld [vmem:[#allocation2 + $0x7b0] sm:$0xff]
        %v3022 = vld [vmem:[#allocation2 + $0x7b8] sm:$0xff]
        %v3023 = vld [vmem:[#allocation2 + $0x7c0] sm:$0xff]
        %v3024 = vld [vmem:[#allocation2 + $0x7c8] sm:$0xff]
        %3034 = vrot.lane.b32.xlu0 %v3016, 124
        %v3035 = vpop.permute.xlu0 %3034
        %3036 = vrot.lane.b32.xlu0 %v3017, 124
        %v3037 = vpop.permute.xlu0 %3036
        %3038 = vrot.lane.b32.xlu0 %v3018, 124
        %v3039 = vpop.permute.xlu0 %3038
        %3040 = vrot.lane.b32.xlu0 %v3019, 124
        %v3041 = vpop.permute.xlu0 %3040
        %3042 = vrot.lane.b32.xlu0 %v3020, 124
        %v3043 = vpop.permute.xlu0 %3042
        %3044 = vrot.lane.b32.xlu0 %v3021, 124
        %v3045 = vpop.permute.xlu0 %3044
        %3046 = vrot.lane.b32.xlu0 %v3022, 124
        %v3047 = vpop.permute.xlu0 %3046
        %3048 = vrot.lane.b32.xlu0 %v3023, 124
        %v3049 = vpop.permute.xlu0 %3048
        %3050 = vrot.lane.b32.xlu0 %v3024, 124
        %v3051 = vpop.permute.xlu0 %3050
        %v3052 = vsel %vm1880, %v3035, %v3037
        %v3053 = vsel %vm1880, %v3037, %v3039
        %v3054 = vsel %vm1880, %v3039, %v3041
        %v3055 = vsel %vm1880, %v3041, %v3043
        %v3056 = vsel %vm1880, %v3043, %v3045
        %v3057 = vsel %vm1880, %v3045, %v3047
        %v3058 = vsel %vm1880, %v3047, %v3049
        %v3059 = vsel %vm1880, %v3049, %v3051
        %v3068 = vadd.f32 %v3008, %v3052
        %v3069 = vadd.f32 %v3009, %v3053
        %v3070 = vadd.f32 %v3010, %v3054
        %v3071 = vadd.f32 %v3011, %v3055
        %v3072 = vadd.f32 %v3012, %v3056
        %v3073 = vadd.f32 %v3013, %v3057
        %v3074 = vadd.f32 %v3014, %v3058
        %v3075 = vadd.f32 %v3015, %v3059
        %v3076 = vld [vmem:[%s2] sm:$0xff]
        %v3077 = vld [vmem:[%s2 + $0x8] sm:$0xff]
        %v3078 = vld [vmem:[%s2 + $0x10] sm:$0xff]
        %v3079 = vld [vmem:[%s2 + $0x18] sm:$0xff]
        %v3080 = vld [vmem:[%s2 + $0x20] sm:$0xff]
        %v3081 = vld [vmem:[%s2 + $0x28] sm:$0xff]
        %v3082 = vld [vmem:[%s2 + $0x30] sm:$0xff]
        %v3083 = vld [vmem:[%s2 + $0x38] sm:$0xff]
        %v3084 = vld [vmem:[%s2 + $0x40] sm:$0xff]
        %v3085 = vld [vmem:[%s2 + $0x48] sm:$0xff]
        %v3086 = vld [vmem:[%s2 + $0x50] sm:$0xff]
        %v3087 = vld [vmem:[%s2 + $0x58] sm:$0xff]
        %v3088 = vld [vmem:[%s2 + $0x60] sm:$0xff]
        %v3089 = vld [vmem:[%s2 + $0x68] sm:$0xff]
        %v3090 = vld [vmem:[%s2 + $0x70] sm:$0xff]
        %v3091 = vld [vmem:[%s2 + $0x78] sm:$0xff]
        %v3092 = vld [vmem:[%s2 + $0x80] sm:$0xff]
        %v3093 = vld [vmem:[%s2 + $0x88] sm:$0xff]
        %v3094 = vld [vmem:[%s2 + $0x90] sm:$0xff]
        %v3095 = vld [vmem:[%s2 + $0x98] sm:$0xff]
        %v3096 = vld [vmem:[%s2 + $0xa0] sm:$0xff]
        %v3097 = vld [vmem:[%s2 + $0xa8] sm:$0xff]
        %v3098 = vld [vmem:[%s2 + $0xb0] sm:$0xff]
        %v3099 = vld [vmem:[%s2 + $0xb8] sm:$0xff]
        %v3100 = vld [vmem:[%s2 + $0xc0] sm:$0xff]
        %v3101 = vld [vmem:[%s2 + $0xc8] sm:$0xff]
        %v3102 = vld [vmem:[%s2 + $0xd0] sm:$0xff]
        %v3103 = vld [vmem:[%s2 + $0xd8] sm:$0xff]
        %v3104 = vld [vmem:[%s2 + $0xe0] sm:$0xff]
        %v3105 = vld [vmem:[%s2 + $0xe8] sm:$0xff]
        %v3106 = vld [vmem:[%s2 + $0xf0] sm:$0xff]
        %v3107 = vld [vmem:[%s2 + $0xf8] sm:$0xff]
        %v3108 = vld [vmem:[%s2 + $0x100] sm:$0xff]
        %v3109 = vld [vmem:[%s2 + $0x108] sm:$0xff]
        %v3110 = vld [vmem:[%s2 + $0x110] sm:$0xff]
        %v3111 = vld [vmem:[%s2 + $0x118] sm:$0xff]
        %v3112 = vld [vmem:[%s2 + $0x120] sm:$0xff]
        %v3113 = vld [vmem:[%s2 + $0x128] sm:$0xff]
        %v3114 = vld [vmem:[%s2 + $0x130] sm:$0xff]
        %v3115 = vld [vmem:[%s2 + $0x138] sm:$0xff]
        %v3116 = vunpack.c.l.bf16 %v3076
        %v3117 = vunpack.c.h.bf16 %v3076
        %v3118 = vunpack.c.l.bf16 %v3077
        %v3119 = vunpack.c.h.bf16 %v3077
        %v3120 = vunpack.c.l.bf16 %v3078
        %v3121 = vunpack.c.h.bf16 %v3078
        %v3122 = vunpack.c.l.bf16 %v3079
        %v3123 = vunpack.c.h.bf16 %v3079
        %v3124 = vunpack.c.l.bf16 %v3080
        %v3125 = vunpack.c.h.bf16 %v3080
        %v3126 = vunpack.c.l.bf16 %v3081
        %v3127 = vunpack.c.h.bf16 %v3081
        %v3128 = vunpack.c.l.bf16 %v3082
        %v3129 = vunpack.c.h.bf16 %v3082
        %v3130 = vunpack.c.l.bf16 %v3083
        %v3131 = vunpack.c.h.bf16 %v3083
        %v3132 = vunpack.c.l.bf16 %v3084
        %v3133 = vunpack.c.h.bf16 %v3084
        %v3134 = vunpack.c.l.bf16 %v3085
        %v3135 = vunpack.c.h.bf16 %v3085
        %v3136 = vunpack.c.l.bf16 %v3086
        %v3137 = vunpack.c.h.bf16 %v3086
        %v3138 = vunpack.c.l.bf16 %v3087
        %v3139 = vunpack.c.h.bf16 %v3087
        %v3140 = vunpack.c.l.bf16 %v3088
        %v3141 = vunpack.c.h.bf16 %v3088
        %v3142 = vunpack.c.l.bf16 %v3089
        %v3143 = vunpack.c.h.bf16 %v3089
        %v3144 = vunpack.c.l.bf16 %v3090
        %v3145 = vunpack.c.h.bf16 %v3090
        %v3146 = vunpack.c.l.bf16 %v3091
        %v3147 = vunpack.c.h.bf16 %v3091
        %v3148 = vunpack.c.l.bf16 %v3092
        %v3149 = vunpack.c.h.bf16 %v3092
        %v3150 = vunpack.c.l.bf16 %v3093
        %v3151 = vunpack.c.h.bf16 %v3093
        %v3152 = vunpack.c.l.bf16 %v3094
        %v3153 = vunpack.c.h.bf16 %v3094
        %v3154 = vunpack.c.l.bf16 %v3095
        %v3155 = vunpack.c.h.bf16 %v3095
        %v3156 = vunpack.c.l.bf16 %v3096
        %v3157 = vunpack.c.h.bf16 %v3096
        %v3158 = vunpack.c.l.bf16 %v3097
        %v3159 = vunpack.c.h.bf16 %v3097
        %v3160 = vunpack.c.l.bf16 %v3098
        %v3161 = vunpack.c.h.bf16 %v3098
        %v3162 = vunpack.c.l.bf16 %v3099
        %v3163 = vunpack.c.h.bf16 %v3099
        %v3164 = vunpack.c.l.bf16 %v3100
        %v3165 = vunpack.c.h.bf16 %v3100
        %v3166 = vunpack.c.l.bf16 %v3101
        %v3167 = vunpack.c.h.bf16 %v3101
        %v3168 = vunpack.c.l.bf16 %v3102
        %v3169 = vunpack.c.h.bf16 %v3102
        %v3170 = vunpack.c.l.bf16 %v3103
        %v3171 = vunpack.c.h.bf16 %v3103
        %v3172 = vunpack.c.l.bf16 %v3104
        %v3173 = vunpack.c.h.bf16 %v3104
        %v3174 = vunpack.c.l.bf16 %v3105
        %v3175 = vunpack.c.h.bf16 %v3105
        %v3176 = vunpack.c.l.bf16 %v3106
        %v3177 = vunpack.c.h.bf16 %v3106
        %v3178 = vunpack.c.l.bf16 %v3107
        %v3179 = vunpack.c.h.bf16 %v3107
        %v3180 = vunpack.c.l.bf16 %v3108
        %v3181 = vunpack.c.h.bf16 %v3108
        %v3182 = vunpack.c.l.bf16 %v3109
        %v3183 = vunpack.c.h.bf16 %v3109
        %v3184 = vunpack.c.l.bf16 %v3110
        %v3185 = vunpack.c.h.bf16 %v3110
        %v3186 = vunpack.c.l.bf16 %v3111
        %v3187 = vunpack.c.h.bf16 %v3111
        %v3188 = vunpack.c.l.bf16 %v3112
        %v3189 = vunpack.c.h.bf16 %v3112
        %v3190 = vunpack.c.l.bf16 %v3113
        %v3191 = vunpack.c.h.bf16 %v3113
        %v3192 = vunpack.c.l.bf16 %v3114
        %v3193 = vunpack.c.h.bf16 %v3114
        %v3194 = vunpack.c.l.bf16 %v3115
        %v3195 = vunpack.c.h.bf16 %v3115
        %v3196 = vmul.f32 %v3116, %v3068
        %v3197 = vmul.f32 %v3117, %v3069
        %v3198 = vmul.f32 %v3118, %v3070
        %v3199 = vmul.f32 %v3119, %v3071
        %v3200 = vmul.f32 %v3120, %v3072
        %v3201 = vmul.f32 %v3121, %v3073
        %v3202 = vmul.f32 %v3122, %v3074
        %v3203 = vmul.f32 %v3123, %v3075
        %v3204 = vmul.f32 %v3124, %v3068
        %v3205 = vmul.f32 %v3125, %v3069
        %v3206 = vmul.f32 %v3126, %v3070
        %v3207 = vmul.f32 %v3127, %v3071
        %v3208 = vmul.f32 %v3128, %v3072
        %v3209 = vmul.f32 %v3129, %v3073
        %v3210 = vmul.f32 %v3130, %v3074
        %v3211 = vmul.f32 %v3131, %v3075
        %v3212 = vmul.f32 %v3132, %v3068
        %v3213 = vmul.f32 %v3133, %v3069
        %v3214 = vmul.f32 %v3134, %v3070
        %v3215 = vmul.f32 %v3135, %v3071
        %v3216 = vmul.f32 %v3136, %v3072
        %v3217 = vmul.f32 %v3137, %v3073
        %v3218 = vmul.f32 %v3138, %v3074
        %v3219 = vmul.f32 %v3139, %v3075
        %v3220 = vmul.f32 %v3140, %v3068
        %v3221 = vmul.f32 %v3141, %v3069
        %v3222 = vmul.f32 %v3142, %v3070
        %v3223 = vmul.f32 %v3143, %v3071
        %v3224 = vmul.f32 %v3144, %v3072
        %v3225 = vmul.f32 %v3145, %v3073
        %v3226 = vmul.f32 %v3146, %v3074
        %v3227 = vmul.f32 %v3147, %v3075
        %v3228 = vmul.f32 %v3148, %v3068
        %v3229 = vmul.f32 %v3149, %v3069
        %v3230 = vmul.f32 %v3150, %v3070
        %v3231 = vmul.f32 %v3151, %v3071
        %v3232 = vmul.f32 %v3152, %v3072
        %v3233 = vmul.f32 %v3153, %v3073
        %v3234 = vmul.f32 %v3154, %v3074
        %v3235 = vmul.f32 %v3155, %v3075
        %v3236 = vmul.f32 %v3156, %v3068
        %v3237 = vmul.f32 %v3157, %v3069
        %v3238 = vmul.f32 %v3158, %v3070
        %v3239 = vmul.f32 %v3159, %v3071
        %v3240 = vmul.f32 %v3160, %v3072
        %v3241 = vmul.f32 %v3161, %v3073
        %v3242 = vmul.f32 %v3162, %v3074
        %v3243 = vmul.f32 %v3163, %v3075
        %v3244 = vmul.f32 %v3164, %v3068
        %v3245 = vmul.f32 %v3165, %v3069
        %v3246 = vmul.f32 %v3166, %v3070
        %v3247 = vmul.f32 %v3167, %v3071
        %v3248 = vmul.f32 %v3168, %v3072
        %v3249 = vmul.f32 %v3169, %v3073
        %v3250 = vmul.f32 %v3170, %v3074
        %v3251 = vmul.f32 %v3171, %v3075
        %v3252 = vmul.f32 %v3172, %v3068
        %v3253 = vmul.f32 %v3173, %v3069
        %v3254 = vmul.f32 %v3174, %v3070
        %v3255 = vmul.f32 %v3175, %v3071
        %v3256 = vmul.f32 %v3176, %v3072
        %v3257 = vmul.f32 %v3177, %v3073
        %v3258 = vmul.f32 %v3178, %v3074
        %v3259 = vmul.f32 %v3179, %v3075
        %v3260 = vmul.f32 %v3180, %v3068
        %v3261 = vmul.f32 %v3181, %v3069
        %v3262 = vmul.f32 %v3182, %v3070
        %v3263 = vmul.f32 %v3183, %v3071
        %v3264 = vmul.f32 %v3184, %v3072
        %v3265 = vmul.f32 %v3185, %v3073
        %v3266 = vmul.f32 %v3186, %v3074
        %v3267 = vmul.f32 %v3187, %v3075
        %v3268 = vmul.f32 %v3188, %v3068
        %v3269 = vmul.f32 %v3189, %v3069
        %v3270 = vmul.f32 %v3190, %v3070
        %v3271 = vmul.f32 %v3191, %v3071
        %v3272 = vmul.f32 %v3192, %v3072
        %v3273 = vmul.f32 %v3193, %v3073
        %v3274 = vmul.f32 %v3194, %v3074
        %v3275 = vmul.f32 %v3195, %v3075
        %v3276 = vadd.f32 %v3196, %v3197
        %v3277 = vadd.f32 %v3276, %v3198
        %v3278 = vadd.f32 %v3277, %v3199
        %v3279 = vadd.f32 %v3278, %v3200
        %v3280 = vadd.f32 %v3279, %v3201
        %v3281 = vadd.f32 %v3280, %v3202
        %v3282 = vadd.f32 %v3281, %v3203
        %3283 = vadd.xlane.f32.xlu0 %v3282
        %v3284 = vpop.xlane.xlu0 %3283
        %v3285 = vadd.f32 %v3204, %v3205
        %v3286 = vadd.f32 %v3285, %v3206
        %v3287 = vadd.f32 %v3286, %v3207
        %v3288 = vadd.f32 %v3287, %v3208
        %v3289 = vadd.f32 %v3288, %v3209
        %v3290 = vadd.f32 %v3289, %v3210
        %v3291 = vadd.f32 %v3290, %v3211
        %3292 = vadd.xlane.f32.xlu0 %v3291
        %v3293 = vpop.xlane.xlu0 %3292
        %v3294 = vadd.f32 %v3212, %v3213
        %v3295 = vadd.f32 %v3294, %v3214
        %v3296 = vadd.f32 %v3295, %v3215
        %v3297 = vadd.f32 %v3296, %v3216
        %v3298 = vadd.f32 %v3297, %v3217
        %v3299 = vadd.f32 %v3298, %v3218
        %v3300 = vadd.f32 %v3299, %v3219
        %3301 = vadd.xlane.f32.xlu0 %v3300
        %v3302 = vpop.xlane.xlu0 %3301
        %v3303 = vadd.f32 %v3220, %v3221
        %v3304 = vadd.f32 %v3303, %v3222
        %v3305 = vadd.f32 %v3304, %v3223
        %v3306 = vadd.f32 %v3305, %v3224
        %v3307 = vadd.f32 %v3306, %v3225
        %v3308 = vadd.f32 %v3307, %v3226
        %v3309 = vadd.f32 %v3308, %v3227
        %3310 = vadd.xlane.f32.xlu0 %v3309
        %v3311 = vpop.xlane.xlu0 %3310
        %v3312 = vadd.f32 %v3228, %v3229
        %v3313 = vadd.f32 %v3312, %v3230
        %v3314 = vadd.f32 %v3313, %v3231
        %v3315 = vadd.f32 %v3314, %v3232
        %v3316 = vadd.f32 %v3315, %v3233
        %v3317 = vadd.f32 %v3316, %v3234
        %v3318 = vadd.f32 %v3317, %v3235
        %3319 = vadd.xlane.f32.xlu0 %v3318
        %v3320 = vpop.xlane.xlu0 %3319
        %v3321 = vadd.f32 %v3236, %v3237
        %v3322 = vadd.f32 %v3321, %v3238
        %v3323 = vadd.f32 %v3322, %v3239
        %v3324 = vadd.f32 %v3323, %v3240
        %v3325 = vadd.f32 %v3324, %v3241
        %v3326 = vadd.f32 %v3325, %v3242
        %v3327 = vadd.f32 %v3326, %v3243
        %3328 = vadd.xlane.f32.xlu0 %v3327
        %v3329 = vpop.xlane.xlu0 %3328
        %v3330 = vadd.f32 %v3244, %v3245
        %v3331 = vadd.f32 %v3330, %v3246
        %v3332 = vadd.f32 %v3331, %v3247
        %v3333 = vadd.f32 %v3332, %v3248
        %v3334 = vadd.f32 %v3333, %v3249
        %v3335 = vadd.f32 %v3334, %v3250
        %v3336 = vadd.f32 %v3335, %v3251
        %3337 = vadd.xlane.f32.xlu0 %v3336
        %v3338 = vpop.xlane.xlu0 %3337
        %v3339 = vadd.f32 %v3252, %v3253
        %v3340 = vadd.f32 %v3339, %v3254
        %v3341 = vadd.f32 %v3340, %v3255
        %v3342 = vadd.f32 %v3341, %v3256
        %v3343 = vadd.f32 %v3342, %v3257
        %v3344 = vadd.f32 %v3343, %v3258
        %v3345 = vadd.f32 %v3344, %v3259
        %3346 = vadd.xlane.f32.xlu0 %v3345
        %v3347 = vpop.xlane.xlu0 %3346
        %v3348 = vadd.f32 %v3260, %v3261
        %v3349 = vadd.f32 %v3348, %v3262
        %v3350 = vadd.f32 %v3349, %v3263
        %v3351 = vadd.f32 %v3350, %v3264
        %v3352 = vadd.f32 %v3351, %v3265
        %v3353 = vadd.f32 %v3352, %v3266
        %v3354 = vadd.f32 %v3353, %v3267
        %3355 = vadd.xlane.f32.xlu0 %v3354
        %v3356 = vpop.xlane.xlu0 %3355
        %v3357 = vadd.f32 %v3268, %v3269
        %v3358 = vadd.f32 %v3357, %v3270
        %v3359 = vadd.f32 %v3358, %v3271
        %v3360 = vadd.f32 %v3359, %v3272
        %v3361 = vadd.f32 %v3360, %v3273
        %v3362 = vadd.f32 %v3361, %v3274
        %v3363 = vadd.f32 %v3362, %v3275
        %3364 = vadd.xlane.f32.xlu0 %v3363
        %v3365 = vpop.xlane.xlu0 %3364
        %v3376 = vlaneseq
        %v3377 = vand.u32 %v3376, 127
        %v3378 = vlaneseq
        %v3379 = vshrl.u32 %v3378, 7
        %v3380 = vsub.s32 %v3377, %v3379
        %v3381 = vrot.slane %v3284, %v3380
        %v3382 = vlaneseq
        %v3383 = vshrl.u32 %v3382, 7
        %v3384 = vsub.s32 %v3377, %v3383
        %v3385 = vrot.slane %v3293, %v3384
        %v3386 = vlaneseq
        %v3387 = vshrl.u32 %v3386, 7
        %v3388 = vsub.s32 %v3377, %v3387
        %v3389 = vrot.slane %v3302, %v3388
        %v3390 = vlaneseq
        %v3391 = vshrl.u32 %v3390, 7
        %v3392 = vsub.s32 %v3377, %v3391
        %v3393 = vrot.slane %v3311, %v3392
        %v3394 = vlaneseq
        %v3395 = vshrl.u32 %v3394, 7
        %v3396 = vsub.s32 %v3377, %v3395
        %v3397 = vrot.slane %v3320, %v3396
        %v3398 = vlaneseq
        %v3399 = vshrl.u32 %v3398, 7
        %v3400 = vsub.s32 %v3377, %v3399
        %v3401 = vrot.slane %v3329, %v3400
        %v3402 = vlaneseq
        %v3403 = vshrl.u32 %v3402, 7
        %v3404 = vsub.s32 %v3377, %v3403
        %v3405 = vrot.slane %v3338, %v3404
        %v3406 = vlaneseq
        %v3407 = vshrl.u32 %v3406, 7
        %v3408 = vsub.s32 %v3377, %v3407
        %v3409 = vrot.slane %v3347, %v3408
        %v3410 = vlaneseq
        %v3411 = vshrl.u32 %v3410, 7
        %v3412 = vsub.s32 %v3377, %v3411
        %v3413 = vrot.slane %v3356, %v3412
        %v3414 = vlaneseq
        %v3415 = vshrl.u32 %v3414, 7
        %v3416 = vsub.s32 %v3377, %v3415
        %v3417 = vrot.slane %v3365, %v3416
        %vm3418 = vcmask 1041409
        %v3419 = vsel %vm3418, %v3385, %v3381
        %vm3420 = vcmask 1042434
        %v3421 = vsel %vm3420, %v3389, %v3419
        %vm3422 = vcmask 1043459
        %v3423 = vsel %vm3422, %v3393, %v3421
        %vm3424 = vcmask 1044484
        %v3425 = vsel %vm3424, %v3397, %v3423
        %vm3426 = vcmask 1045509
        %v3427 = vsel %vm3426, %v3401, %v3425
        %vm3428 = vcmask 1046534
        %v3429 = vsel %vm3428, %v3405, %v3427
        %vm3430 = vcmask 1047559
        %v3431 = vsel %vm3430, %v3409, %v3429
        %v3432 = vsel %vm3418, %v3417, %v3413
        %vm3435 = vcmask 64512
        %v3436 = vsel %vm3435, %v3431, 0.0
        %3437 = vadd.xlane.f32.xlu0 %v3436
        %v3438 = vpop.xlane.xlu0 %3437
        %vm3439 = vcmask 58368
        %v3440 = vsel %vm3439, %v3432, 0.0
        %3441 = vadd.xlane.f32.xlu0 %v3440
        %v3442 = vpop.xlane.xlu0 %3441
        %v3443 = vld [vmem:[%s3] sm:$0x1]
        %v3445 = vlaneseq
        %v3446 = vshrl.u32 %v3445, 7
        %v3447 = vsub.s32 0, %v3446
        %v3448 = vrot.slane %v3443, %v3447
        %3450 = vbcast.lane.b32.xlu0 %v3448, 256
        %v3451 = vpop.permute.xlu0 %3450
        %s3453 = sor.u32 256, 8
        %3454 = vbcast.lane.b32.xlu0 %v3448, %s3453
        %v3455 = vpop.permute.xlu0 %3454
        %v3458 = vadd.f32 %v3438, %v3451
        %v3459 = vadd.f32 %v3442, %v3455
        %3462 = vset.pattern.permute.xlu0 0
        %3463 = vperm.xlu0 %3462, %v3458
        %v3464 = vpop.permute.xlu0 %3463
        %3465 = vset.pattern.permute.xlu0 0
        %3466 = vperm.xlu0 %3465, %v3459
        %v3467 = vpop.permute.xlu0 %3466
        %v3468 = vlaneseq
        %v3469 = vshrl.u32 %v3468, 7
        %v3470 = vsub.s32 %v3377, %v3469
        %v3471 = vrot.slane %v3464, %v3470
        %v3472 = vadd.s32 %v3377, 4294967288
        %v3473 = vlaneseq
        %v3474 = vshrl.u32 %v3473, 7
        %v3475 = vsub.s32 %v3472, %v3474
        %v3476 = vrot.slane %v3467, %v3475
        %vm3477 = vcmask 130112
        %v3478 = vsel %vm3477, %v3476, %v3471
        %vm3480 = vcmask 73728
        %3481 = vst.msk [vmem:[%s189] sm:$0x1] %vm3480, %v3478
        %s3482 = sand.u32 %s115, 1
        %s3483 = scalar_lea.sflag [#allocation4], %s3482
        %s3484 = sand.u32 %s115, 1
        %s3485 = scalar_lea.vmem [#allocation3], %s3484
        // Predicated region
        $region37: #{net_forward.1} parent=35 // pred_check
          %p3486 = pneg %p125
        $region38: #{net_forward.1} parent=35 // pred_check_branch
          %3488 = sbr.rel (%p3486) target = $region40
        $region39: #{net_forward.1} parent=35 // pred_region
          %s3490 = ssub.s32 16, 16
          %3491 = vsyncadd %s3483, %s3490
          %s3492 = smul.addr %s18, 16
          %s3493 = scalar_lea.hbm %s4, %s3492
          %s3495 = sshll.u32 %s3485, 4
          %s3496 = int_to_ptr.vmem [resolvable:$true] %s3495
          %3498 = dma.vmem_to_hbm [thread:$0]  %s3496, 16, %s3493, %s3483
        $region40: #{net_forward.1} parent=35 // pred_fallthru
          _
      $region36: #{net_forward.1} parent=5 // pred_fallthru
        _
      %p3499 = scmp.le.s32.totalorder 2, %s13
      // Predicated region
      $region41: #{net_forward.1} parent=5 // pred_check
        %p3500 = pneg %p3499
      $region42: #{net_forward.1} parent=5 // pred_check_branch
        %3502 = sbr.rel (%p3500) target = $region44
      $region43: #{net_forward.1} parent=5 // pred_region
        %s3503 = ssub.s32 %s13, 2
        // Predicated region
        $region45: #{net_forward.1} parent=43 // pred_check
          %p3504 = pneg %p131
        $region46: #{net_forward.1} parent=43 // pred_check_branch
          %3506 = sbr.rel (%p3504) target = $region48
        $region47: #{net_forward.1} parent=43 // pred_region
          %s3507 = sand.u32 %s116, 1
          %s3508 = scalar_lea.sflag [#allocation4], %s3507
          %s3509 = sand.u32 %s116, 1
          %s3510 = scalar_lea.vmem [#allocation3], %s3509
          %3511 = dma.done %s3508, 16
        $region48: #{net_forward.1} parent=43 // pred_fallthru
          _
      $region44: #{net_forward.1} parent=5 // pred_fallthru
        _
    $region6: #{net_forward.1} parent=1 // loop_footer
      %s17 = sadd.s32 1, %s13
    $region7: #{net_forward.1} parent=1 // loop_footer_branch
      %12 = sbr.rel target = $region3
    $region8: #{net_forward.1} parent=1 // loop_exit
      _
    %3512 = vsyncpa [#allocation4], 1
    %s3513 = scalar_lea.sflag [#allocation4], 1
    %3514 = vsyncpa %s3513, 1

</llo_original>
